<compile_context>
chip_gen: v7x
topology: tpu7x:2x2x1
jax: 0.10.0
libtpu: 0.0.40
codegen_flags: <defaults>
</compile_context>

<pallas_src>
import math

import jax
import jax.numpy as jnp
from jax import lax
from jax.experimental import pallas as pl
from jax.experimental.pallas import tpu as pltpu  # noqa: F401  (not needed at this size)

# ----------------------------- problem sizes --------------------------------
B, C, H, W = 2, 4, 16, 16        # backbone input (NCHW)
D = 32                           # conv out channels == transformer d_model
KH = KW = 3
STRIDE = 2
HO, WO = H // STRIDE, W // STRIDE    # 8 x 8 (padding = 1)
S = HO * WO                          # 64 tokens per batch element
BS = B * S                           # 128 tokens total (batch flattened into tokens)
NHEAD = 4
HD = D // NHEAD                      # 8
FF = 64                              # feed-forward hidden dim
K_IM2COL = C * KH * KW               # 36
EPS = 1e-5
LANES = 128

# rows of the packed bias/gain slab ([9, 128] f32)
(ROW_BQKV, ROW_BO, ROW_G1, ROW_BE1, ROW_BFF1,
 ROW_BFF2, ROW_G2, ROW_BE2, ROW_BCONV) = range(9)
N_VEC_ROWS = 9


# ------------------------------ fused kernel --------------------------------
def _layernorm(x, g, b):
    mu = jnp.mean(x, axis=-1, keepdims=True)
    var = jnp.mean((x - mu) ** 2, axis=-1, keepdims=True)
    return (x - mu) * lax.rsqrt(var + EPS) * g + b


def fused_kernel(patch_ref, wc_ref, wqkv_ref, wo_ref, w1_ref, w2_ref, vec_ref,
                 o_ref):
    # ---- 1) backbone conv as im2col matmul + bias + ReLU -> tokens [B*S, D]
    x = jnp.dot(patch_ref[...], wc_ref[...], preferred_element_type=jnp.float32)
    x = jnp.maximum(x + vec_ref[ROW_BCONV:ROW_BCONV + 1, :D], 0.0)        # [128, 32]

    # ---- 2) fused QKV projection (single [128,32] @ [32,96] matmul)
    qkv = (jnp.dot(x, wqkv_ref[...], preferred_element_type=jnp.float32)
           + vec_ref[ROW_BQKV:ROW_BQKV + 1, :3 * D])                      # [128, 96]
    scale = 1.0 / math.sqrt(HD)
    q3 = (qkv[:, 0 * D:1 * D] * scale).reshape(B, S, D)   # scale folded into q once
    k3 = qkv[:, 1 * D:2 * D].reshape(B, S, D)
    v3 = qkv[:, 2 * D:3 * D].reshape(B, S, D)

    # ---- 3) attention: static head loop, batched over B via einsum;
    #         output projection accumulated per head (no head concat)
    attn = None
    for h in range(NHEAD):
        c0 = h * HD
        qs = q3[:, :, c0:c0 + HD]                                   # [B, S, HD]
        ks = k3[:, :, c0:c0 + HD]
        vs = v3[:, :, c0:c0 + HD]
        sc = jnp.einsum('bqd,bkd->bqk', qs, ks,
                        preferred_element_type=jnp.float32)         # [B, S, S]
        sc = sc - jnp.max(sc, axis=-1, keepdims=True)
        p = jnp.exp(sc)
        p = p * pl.reciprocal(jnp.sum(p, axis=-1, keepdims=True), approx=True)
        ctx = jnp.einsum('bqk,bkd->bqd', p, vs,
                         preferred_element_type=jnp.float32)        # [B, S, HD]
        contrib = jnp.dot(ctx.reshape(BS, HD), wo_ref[c0:c0 + HD, :],
                          preferred_element_type=jnp.float32)       # [128, 32]
        attn = contrib if attn is None else attn + contrib
    attn = attn + vec_ref[ROW_BO:ROW_BO + 1, :D]

    # ---- 4) post-LN residual 1
    y = _layernorm(x + attn,
                   vec_ref[ROW_G1:ROW_G1 + 1, :D],
                   vec_ref[ROW_BE1:ROW_BE1 + 1, :D])

    # ---- 5) FFN (relu)
    ff = jnp.maximum(jnp.dot(y, w1_ref[...], preferred_element_type=jnp.float32)
                     + vec_ref[ROW_BFF1:ROW_BFF1 + 1, :FF], 0.0)
    ff = (jnp.dot(ff, w2_ref[...], preferred_element_type=jnp.float32)
          + vec_ref[ROW_BFF2:ROW_BFF2 + 1, :D])

    # ---- 6) post-LN residual 2 -> output tokens [B*S, D]
    o_ref[...] = _layernorm(y + ff,
                            vec_ref[ROW_G2:ROW_G2 + 1, :D],
                            vec_ref[ROW_BE2:ROW_BE2 + 1, :D])


# --------------------------- parameter packing -------------------------------
def pack_params(p):
    """PyTorch-layout weights -> kernel slabs (x @ W layouts, packed bias slab)."""
    w_conv = p['conv_w'].reshape(D, K_IM2COL).T          # [36, 32], feature = c*9+kh*3+kw
    w_qkv = p['in_proj_w'].T                             # [32, 96]  columns = q|k|v
    w_o = p['out_proj_w'].T                              # [32, 32]
    w1 = p['lin1_w'].T                                   # [32, 64]
    w2 = p['lin2_w'].T                                   # [64, 32]

    def row(v):
        v = v.astype(jnp.float32)
        return jnp.pad(v, (0, LANES - v.shape[0]))

    vec_rows = [None] * N_VEC_ROWS
    vec_rows[ROW_BQKV] = row(p['in_proj_b'])
    vec_rows[ROW_BO] = row(p['out_proj_b'])
    vec_rows[ROW_G1] = row(p['ln1_g'])
    vec_rows[ROW_BE1] = row(p['ln1_b'])
    vec_rows[ROW_BFF1] = row(p['lin1_b'])
    vec_rows[ROW_BFF2] = row(p['lin2_b'])
    vec_rows[ROW_G2] = row(p['ln2_g'])
    vec_rows[ROW_BE2] = row(p['ln2_b'])
    vec_rows[ROW_BCONV] = row(p['conv_b'])
    vecs = jnp.stack(vec_rows, axis=0)                   # [9, 128]
    return w_conv, w_qkv, w_o, w1, w2, vecs


# --------------------------------- driver ------------------------------------
@jax.jit
def backbone_encoder_only(x, w_conv, w_qkv, w_o, w1, w2, vecs):
    # im2col as ONE fused XLA op; feature order is channel-major (c, kh, kw),
    # matching PyTorch conv weight.reshape(D, C*KH*KW).
    patches = lax.conv_general_dilated_patches(
        x, filter_shape=(KH, KW), window_strides=(STRIDE, STRIDE),
        padding=((1, 1), (1, 1)),
        dimension_numbers=('NCHW', 'OIHW', 'NHWC'))      # [B, HO, WO, C*KH*KW]
    patches = patches.reshape(BS, K_IM2COL)

    def full(shape):
        n = len(shape)
        return pl.BlockSpec(shape, lambda i, _n=n: (0,) * _n)

    out = pl.pallas_call(
        fused_kernel,
        out_shape=jax.ShapeDtypeStruct((BS, D), jnp.float32),
        grid=(1,),
        in_specs=[full((BS, K_IM2COL)), full((K_IM2COL, D)), full((D, 3 * D)),
                  full((D, D)), full((D, FF)), full((FF, D)),
                  full((N_VEC_ROWS, LANES))],
        out_specs=full((BS, D)),
    )(patches, w_conv, w_qkv, w_o, w1, w2, vecs)
    return out.reshape(B, S, D)


# -------------------------- pure-JAX reference --------------------------------
def reference_forward(x, p):
    y = lax.conv_general_dilated(
        x, p['conv_w'], window_strides=(STRIDE, STRIDE), padding=((1, 1), (1, 1)),
        dimension_numbers=('NCHW', 'OIHW', 'NCHW'))
    y = jnp.maximum(y + p['conv_b'][None, :, None, None], 0.0)
    t = y.transpose(0, 2, 3, 1).reshape(B, S, D)

    qkv = t @ p['in_proj_w'].T + p['in_proj_b']
    q, k, v = qkv[..., :D], qkv[..., D:2 * D], qkv[..., 2 * D:]

    def heads(z):
        return z.reshape(B, S, NHEAD, HD).transpose(0, 2, 1, 3)

    qh, kh, vh = heads(q), heads(k), heads(v)
    sc = jnp.einsum('bhqd,bhkd->bhqk', qh, kh) / math.sqrt(HD)
    pw = jax.nn.softmax(sc, axis=-1)
    ctx = jnp.einsum('bhqk,bhkd->bhqd', pw, vh).transpose(0, 2, 1, 3).reshape(B, S, D)
    attn = ctx @ p['out_proj_w'].T + p['out_proj_b']

    def ln(z, g, b):
        mu = z.mean(-1, keepdims=True)
        var = ((z - mu) ** 2).mean(-1, keepdims=True)
        return (z - mu) / jnp.sqrt(var + EPS) * g + b

    y1 = ln(t + attn, p['ln1_g'], p['ln1_b'])
    ff = jnp.maximum(y1 @ p['lin1_w'].T + p['lin1_b'], 0.0) @ p['lin2_w'].T + p['lin2_b']
    return ln(y1 + ff, p['ln2_g'], p['ln2_b'])


if __name__ == "__main__":
    key = jax.random.PRNGKey(0)
    ks = jax.random.split(key, 12)

    def mk(k, shape, s=0.1):
        return (jax.random.normal(k, shape, jnp.float32) * s).astype(jnp.float32)

    x = jax.random.normal(ks[0], (B, C, H, W), jnp.float32)

    # Deterministic synthetic parameters in PyTorch layout ([out, in] linear weights,
    # packed in_proj [3D, D], conv weight [out, in, kh, kw]).
    params = dict(
        conv_w=mk(ks[1], (D, C, KH, KW)), conv_b=mk(ks[2], (D,)),
        in_proj_w=mk(ks[3], (3 * D, D)), in_proj_b=mk(ks[4], (3 * D,)),
        out_proj_w=mk(ks[5], (D, D)), out_proj_b=mk(ks[6], (D,)),
        ln1_g=jnp.ones((D,), jnp.float32), ln1_b=jnp.zeros((D,), jnp.float32),
        lin1_w=mk(ks[7], (FF, D)), lin1_b=mk(ks[8], (FF,)),
        lin2_w=mk(ks[9], (D, FF)), lin2_b=mk(ks[10], (D,)),
        ln2_g=jnp.ones((D,), jnp.float32), ln2_b=jnp.zeros((D,), jnp.float32),
    )

    slabs = pack_params(params)
    out = backbone_encoder_only(x, *slabs)
    jax.block_until_ready(out)
    assert out.shape == (B, S, D)

    ref = reference_forward(x, params)
    err = float(jnp.max(jnp.abs(out - ref)))
    assert err < 2e-2, f"kernel/reference mismatch: max abs err = {err}"

    # TODO(synk): the real `original_model` backbone/encoder weights are unavailable;
    # this implements a representative DETR-style conv backbone + one post-LN
    # transformer encoder layer (dropout omitted => eval semantics) with synthetic weights.
    print("KERNEL_OK")
</pallas_src>

<mosaic_0001>
module attributes {stable_mosaic.version = 11 : i64} {
  func.func @fused_kernel(%arg0: i32, %arg1: memref<128x36xf32, #tpu.memory_space<vmem>>, %arg2: memref<36x32xf32, #tpu.memory_space<vmem>>, %arg3: memref<32x96xf32, #tpu.memory_space<vmem>>, %arg4: memref<32x32xf32, #tpu.memory_space<vmem>>, %arg5: memref<32x64xf32, #tpu.memory_space<vmem>>, %arg6: memref<64x32xf32, #tpu.memory_space<vmem>>, %arg7: memref<9x128xf32, #tpu.memory_space<vmem>>, %arg8: memref<128x32xf32, #tpu.memory_space<vmem>>) attributes {dimension_semantics = [#tpu.dimension_semantics<arbitrary>], iteration_bounds = array<i64: 1>, scalar_prefetch = 0 : i64, scratch_operands = 0 : i64, tpu.core_type = #tpu.core_type<tc>, window_params = [{pipeline_mode = #tpu.pipeline_mode<synchronous>, transform_indices = @transform_0, window_bounds = array<i64: 128, 36>}, {pipeline_mode = #tpu.pipeline_mode<synchronous>, transform_indices = @transform_1, window_bounds = array<i64: 36, 32>}, {pipeline_mode = #tpu.pipeline_mode<synchronous>, transform_indices = @transform_2, window_bounds = array<i64: 32, 96>}, {pipeline_mode = #tpu.pipeline_mode<synchronous>, transform_indices = @transform_3, window_bounds = array<i64: 32, 32>}, {pipeline_mode = #tpu.pipeline_mode<synchronous>, transform_indices = @transform_4, window_bounds = array<i64: 32, 64>}, {pipeline_mode = #tpu.pipeline_mode<synchronous>, transform_indices = @transform_5, window_bounds = array<i64: 64, 32>}, {pipeline_mode = #tpu.pipeline_mode<synchronous>, transform_indices = @transform_6, window_bounds = array<i64: 9, 128>}, {pipeline_mode = #tpu.pipeline_mode<synchronous>, transform_indices = @transform_7, window_bounds = array<i64: 128, 32>}]} {
    %c0 = arith.constant 0 : index
    %c0_0 = arith.constant 0 : index
    %0 = vector.load %arg1[%c0, %c0_0] : memref<128x36xf32, #tpu.memory_space<vmem>>, vector<128x36xf32>
    %c0_1 = arith.constant 0 : index
    %c0_2 = arith.constant 0 : index
    %1 = vector.load %arg2[%c0_1, %c0_2] : memref<36x32xf32, #tpu.memory_space<vmem>>, vector<36x32xf32>
    %cst = arith.constant dense<0.000000e+00> : vector<128x32xf32>
    %2 = tpu.matmul %0, %1, %cst {dimension_numbers = #tpu.dot_dimension_numbers<[1], [0], [0], [1], [0, 0, 1, 1], [], []>} : vector<128x36xf32>, vector<36x32xf32>, vector<128x32xf32> -> vector<128x32xf32>
    %c8 = arith.constant 8 : index
    %c0_3 = arith.constant 0 : index
    %3 = vector.load %arg7[%c8, %c0_3] : memref<9x128xf32, #tpu.memory_space<vmem>>, vector<1x32xf32>
    %4 = vector.broadcast %3 : vector<1x32xf32> to vector<128x32xf32>
    %5 = arith.addf %2, %4 : vector<128x32xf32>
    %cst_4 = arith.constant 0.000000e+00 : f32
    %6 = vector.broadcast %cst_4 : f32 to vector<128x32xf32>
    %7 = arith.maximumf %5, %6 : vector<128x32xf32>
    %c0_5 = arith.constant 0 : index
    %c0_6 = arith.constant 0 : index
    %8 = vector.load %arg3[%c0_5, %c0_6] : memref<32x96xf32, #tpu.memory_space<vmem>>, vector<32x96xf32>
    %cst_7 = arith.constant dense<0.000000e+00> : vector<128x96xf32>
    %9 = tpu.matmul %7, %8, %cst_7 {dimension_numbers = #tpu.dot_dimension_numbers<[1], [0], [0], [1], [0, 0, 1, 1], [], []>} : vector<128x32xf32>, vector<32x96xf32>, vector<128x96xf32> -> vector<128x96xf32>
    %c0_8 = arith.constant 0 : index
    %c0_9 = arith.constant 0 : index
    %10 = vector.load %arg7[%c0_8, %c0_9] : memref<9x128xf32, #tpu.memory_space<vmem>>, vector<1x96xf32>
    %11 = vector.broadcast %10 : vector<1x96xf32> to vector<128x96xf32>
    %12 = arith.addf %9, %11 : vector<128x96xf32>
    %13 = vector.extract_strided_slice %12 {offsets = [0, 0], sizes = [128, 32], strides = [1, 1]} : vector<128x96xf32> to vector<128x32xf32>
    %cst_10 = arith.constant 0.353553385 : f32
    %14 = vector.broadcast %cst_10 : f32 to vector<128x32xf32>
    %15 = arith.mulf %13, %14 : vector<128x32xf32>
    %16 = vector.shape_cast %15 : vector<128x32xf32> to vector<2x64x32xf32>
    %17 = vector.extract_strided_slice %12 {offsets = [0, 32], sizes = [128, 32], strides = [1, 1]} : vector<128x96xf32> to vector<128x32xf32>
    %18 = vector.shape_cast %17 : vector<128x32xf32> to vector<2x64x32xf32>
    %19 = vector.extract_strided_slice %12 {offsets = [0, 64], sizes = [128, 32], strides = [1, 1]} : vector<128x96xf32> to vector<128x32xf32>
    %20 = vector.shape_cast %19 : vector<128x32xf32> to vector<2x64x32xf32>
    %21 = vector.extract_strided_slice %16 {offsets = [0, 0, 0], sizes = [2, 64, 8], strides = [1, 1, 1]} : vector<2x64x32xf32> to vector<2x64x8xf32>
    %22 = vector.extract_strided_slice %18 {offsets = [0, 0, 0], sizes = [2, 64, 8], strides = [1, 1, 1]} : vector<2x64x32xf32> to vector<2x64x8xf32>
    %23 = vector.extract_strided_slice %20 {offsets = [0, 0, 0], sizes = [2, 64, 8], strides = [1, 1, 1]} : vector<2x64x32xf32> to vector<2x64x8xf32>
    "tpu.trace_start"() <{level = 10 : i32, message = "bqd,bkd->bqk"}> : () -> ()
    %cst_11 = arith.constant dense<0.000000e+00> : vector<2x64x64xf32>
    %24 = tpu.matmul %21, %22, %cst_11 {dimension_numbers = #tpu.dot_dimension_numbers<[2], [2], [1], [1], [0, 0, 0, 1, 1, 1], [0], [0]>} : vector<2x64x8xf32>, vector<2x64x8xf32>, vector<2x64x64xf32> -> vector<2x64x64xf32>
    "tpu.trace_stop"() : () -> ()
    %cst_12 = arith.constant dense<0xFF800000> : vector<2x64xf32>
    %25 = vector.multi_reduction <maximumf>, %24, %cst_12 [2] : vector<2x64x64xf32> to vector<2x64xf32>
    %26 = vector.shape_cast %25 : vector<2x64xf32> to vector<2x64x1xf32>
    %27 = vector.broadcast %26 : vector<2x64x1xf32> to vector<2x64x64xf32>
    %28 = arith.subf %24, %27 : vector<2x64x64xf32>
    %29 = math.exp %28 : vector<2x64x64xf32>
    %cst_13 = arith.constant dense<0.000000e+00> : vector<2x64xf32>
    %30 = vector.multi_reduction <add>, %29, %cst_13 [2] : vector<2x64x64xf32> to vector<2x64xf32>
    %31 = vector.shape_cast %30 : vector<2x64xf32> to vector<2x64x1xf32>
    %32 = tpu.reciprocal %31 {approx = true} : vector<2x64x1xf32> -> vector<2x64x1xf32>
    %33 = vector.broadcast %32 : vector<2x64x1xf32> to vector<2x64x64xf32>
    %34 = arith.mulf %29, %33 : vector<2x64x64xf32>
    "tpu.trace_start"() <{level = 10 : i32, message = "bqk,bkd->bqd"}> : () -> ()
    %cst_14 = arith.constant dense<0.000000e+00> : vector<2x64x8xf32>
    %35 = tpu.matmul %34, %23, %cst_14 {dimension_numbers = #tpu.dot_dimension_numbers<[2], [1], [1], [2], [0, 0, 0, 1, 1, 2], [0], [0]>} : vector<2x64x64xf32>, vector<2x64x8xf32>, vector<2x64x8xf32> -> vector<2x64x8xf32>
    "tpu.trace_stop"() : () -> ()
    %36 = vector.shape_cast %35 : vector<2x64x8xf32> to vector<128x8xf32>
    %c0_15 = arith.constant 0 : index
    %c0_16 = arith.constant 0 : index
    %37 = vector.load %arg4[%c0_15, %c0_16] : memref<32x32xf32, #tpu.memory_space<vmem>>, vector<8x32xf32>
    %cst_17 = arith.constant dense<0.000000e+00> : vector<128x32xf32>
    %38 = tpu.matmul %36, %37, %cst_17 {dimension_numbers = #tpu.dot_dimension_numbers<[1], [0], [0], [1], [0, 0, 1, 1], [], []>} : vector<128x8xf32>, vector<8x32xf32>, vector<128x32xf32> -> vector<128x32xf32>
    %39 = vector.extract_strided_slice %16 {offsets = [0, 0, 8], sizes = [2, 64, 8], strides = [1, 1, 1]} : vector<2x64x32xf32> to vector<2x64x8xf32>
    %40 = vector.extract_strided_slice %18 {offsets = [0, 0, 8], sizes = [2, 64, 8], strides = [1, 1, 1]} : vector<2x64x32xf32> to vector<2x64x8xf32>
    %41 = vector.extract_strided_slice %20 {offsets = [0, 0, 8], sizes = [2, 64, 8], strides = [1, 1, 1]} : vector<2x64x32xf32> to vector<2x64x8xf32>
    "tpu.trace_start"() <{level = 10 : i32, message = "bqd,bkd->bqk"}> : () -> ()
    %cst_18 = arith.constant dense<0.000000e+00> : vector<2x64x64xf32>
    %42 = tpu.matmul %39, %40, %cst_18 {dimension_numbers = #tpu.dot_dimension_numbers<[2], [2], [1], [1], [0, 0, 0, 1, 1, 1], [0], [0]>} : vector<2x64x8xf32>, vector<2x64x8xf32>, vector<2x64x64xf32> -> vector<2x64x64xf32>
    "tpu.trace_stop"() : () -> ()
    %cst_19 = arith.constant dense<0xFF800000> : vector<2x64xf32>
    %43 = vector.multi_reduction <maximumf>, %42, %cst_19 [2] : vector<2x64x64xf32> to vector<2x64xf32>
    %44 = vector.shape_cast %43 : vector<2x64xf32> to vector<2x64x1xf32>
    %45 = vector.broadcast %44 : vector<2x64x1xf32> to vector<2x64x64xf32>
    %46 = arith.subf %42, %45 : vector<2x64x64xf32>
    %47 = math.exp %46 : vector<2x64x64xf32>
    %cst_20 = arith.constant dense<0.000000e+00> : vector<2x64xf32>
    %48 = vector.multi_reduction <add>, %47, %cst_20 [2] : vector<2x64x64xf32> to vector<2x64xf32>
    %49 = vector.shape_cast %48 : vector<2x64xf32> to vector<2x64x1xf32>
    %50 = tpu.reciprocal %49 {approx = true} : vector<2x64x1xf32> -> vector<2x64x1xf32>
    %51 = vector.broadcast %50 : vector<2x64x1xf32> to vector<2x64x64xf32>
    %52 = arith.mulf %47, %51 : vector<2x64x64xf32>
    "tpu.trace_start"() <{level = 10 : i32, message = "bqk,bkd->bqd"}> : () -> ()
    %cst_21 = arith.constant dense<0.000000e+00> : vector<2x64x8xf32>
    %53 = tpu.matmul %52, %41, %cst_21 {dimension_numbers = #tpu.dot_dimension_numbers<[2], [1], [1], [2], [0, 0, 0, 1, 1, 2], [0], [0]>} : vector<2x64x64xf32>, vector<2x64x8xf32>, vector<2x64x8xf32> -> vector<2x64x8xf32>
    "tpu.trace_stop"() : () -> ()
    %54 = vector.shape_cast %53 : vector<2x64x8xf32> to vector<128x8xf32>
    %c8_22 = arith.constant 8 : index
    %c0_23 = arith.constant 0 : index
    %55 = vector.load %arg4[%c8_22, %c0_23] : memref<32x32xf32, #tpu.memory_space<vmem>>, vector<8x32xf32>
    %cst_24 = arith.constant dense<0.000000e+00> : vector<128x32xf32>
    %56 = tpu.matmul %54, %55, %cst_24 {dimension_numbers = #tpu.dot_dimension_numbers<[1], [0], [0], [1], [0, 0, 1, 1], [], []>} : vector<128x8xf32>, vector<8x32xf32>, vector<128x32xf32> -> vector<128x32xf32>
    %57 = arith.addf %38, %56 : vector<128x32xf32>
    %58 = vector.extract_strided_slice %16 {offsets = [0, 0, 16], sizes = [2, 64, 8], strides = [1, 1, 1]} : vector<2x64x32xf32> to vector<2x64x8xf32>
    %59 = vector.extract_strided_slice %18 {offsets = [0, 0, 16], sizes = [2, 64, 8], strides = [1, 1, 1]} : vector<2x64x32xf32> to vector<2x64x8xf32>
    %60 = vector.extract_strided_slice %20 {offsets = [0, 0, 16], sizes = [2, 64, 8], strides = [1, 1, 1]} : vector<2x64x32xf32> to vector<2x64x8xf32>
    "tpu.trace_start"() <{level = 10 : i32, message = "bqd,bkd->bqk"}> : () -> ()
    %cst_25 = arith.constant dense<0.000000e+00> : vector<2x64x64xf32>
    %61 = tpu.matmul %58, %59, %cst_25 {dimension_numbers = #tpu.dot_dimension_numbers<[2], [2], [1], [1], [0, 0, 0, 1, 1, 1], [0], [0]>} : vector<2x64x8xf32>, vector<2x64x8xf32>, vector<2x64x64xf32> -> vector<2x64x64xf32>
    "tpu.trace_stop"() : () -> ()
    %cst_26 = arith.constant dense<0xFF800000> : vector<2x64xf32>
    %62 = vector.multi_reduction <maximumf>, %61, %cst_26 [2] : vector<2x64x64xf32> to vector<2x64xf32>
    %63 = vector.shape_cast %62 : vector<2x64xf32> to vector<2x64x1xf32>
    %64 = vector.broadcast %63 : vector<2x64x1xf32> to vector<2x64x64xf32>
    %65 = arith.subf %61, %64 : vector<2x64x64xf32>
    %66 = math.exp %65 : vector<2x64x64xf32>
    %cst_27 = arith.constant dense<0.000000e+00> : vector<2x64xf32>
    %67 = vector.multi_reduction <add>, %66, %cst_27 [2] : vector<2x64x64xf32> to vector<2x64xf32>
    %68 = vector.shape_cast %67 : vector<2x64xf32> to vector<2x64x1xf32>
    %69 = tpu.reciprocal %68 {approx = true} : vector<2x64x1xf32> -> vector<2x64x1xf32>
    %70 = vector.broadcast %69 : vector<2x64x1xf32> to vector<2x64x64xf32>
    %71 = arith.mulf %66, %70 : vector<2x64x64xf32>
    "tpu.trace_start"() <{level = 10 : i32, message = "bqk,bkd->bqd"}> : () -> ()
    %cst_28 = arith.constant dense<0.000000e+00> : vector<2x64x8xf32>
    %72 = tpu.matmul %71, %60, %cst_28 {dimension_numbers = #tpu.dot_dimension_numbers<[2], [1], [1], [2], [0, 0, 0, 1, 1, 2], [0], [0]>} : vector<2x64x64xf32>, vector<2x64x8xf32>, vector<2x64x8xf32> -> vector<2x64x8xf32>
    "tpu.trace_stop"() : () -> ()
    %73 = vector.shape_cast %72 : vector<2x64x8xf32> to vector<128x8xf32>
    %c16 = arith.constant 16 : index
    %c0_29 = arith.constant 0 : index
    %74 = vector.load %arg4[%c16, %c0_29] : memref<32x32xf32, #tpu.memory_space<vmem>>, vector<8x32xf32>
    %cst_30 = arith.constant dense<0.000000e+00> : vector<128x32xf32>
    %75 = tpu.matmul %73, %74, %cst_30 {dimension_numbers = #tpu.dot_dimension_numbers<[1], [0], [0], [1], [0, 0, 1, 1], [], []>} : vector<128x8xf32>, vector<8x32xf32>, vector<128x32xf32> -> vector<128x32xf32>
    %76 = arith.addf %57, %75 : vector<128x32xf32>
    %77 = vector.extract_strided_slice %16 {offsets = [0, 0, 24], sizes = [2, 64, 8], strides = [1, 1, 1]} : vector<2x64x32xf32> to vector<2x64x8xf32>
    %78 = vector.extract_strided_slice %18 {offsets = [0, 0, 24], sizes = [2, 64, 8], strides = [1, 1, 1]} : vector<2x64x32xf32> to vector<2x64x8xf32>
    %79 = vector.extract_strided_slice %20 {offsets = [0, 0, 24], sizes = [2, 64, 8], strides = [1, 1, 1]} : vector<2x64x32xf32> to vector<2x64x8xf32>
    "tpu.trace_start"() <{level = 10 : i32, message = "bqd,bkd->bqk"}> : () -> ()
    %cst_31 = arith.constant dense<0.000000e+00> : vector<2x64x64xf32>
    %80 = tpu.matmul %77, %78, %cst_31 {dimension_numbers = #tpu.dot_dimension_numbers<[2], [2], [1], [1], [0, 0, 0, 1, 1, 1], [0], [0]>} : vector<2x64x8xf32>, vector<2x64x8xf32>, vector<2x64x64xf32> -> vector<2x64x64xf32>
    "tpu.trace_stop"() : () -> ()
    %cst_32 = arith.constant dense<0xFF800000> : vector<2x64xf32>
    %81 = vector.multi_reduction <maximumf>, %80, %cst_32 [2] : vector<2x64x64xf32> to vector<2x64xf32>
    %82 = vector.shape_cast %81 : vector<2x64xf32> to vector<2x64x1xf32>
    %83 = vector.broadcast %82 : vector<2x64x1xf32> to vector<2x64x64xf32>
    %84 = arith.subf %80, %83 : vector<2x64x64xf32>
    %85 = math.exp %84 : vector<2x64x64xf32>
    %cst_33 = arith.constant dense<0.000000e+00> : vector<2x64xf32>
    %86 = vector.multi_reduction <add>, %85, %cst_33 [2] : vector<2x64x64xf32> to vector<2x64xf32>
    %87 = vector.shape_cast %86 : vector<2x64xf32> to vector<2x64x1xf32>
    %88 = tpu.reciprocal %87 {approx = true} : vector<2x64x1xf32> -> vector<2x64x1xf32>
    %89 = vector.broadcast %88 : vector<2x64x1xf32> to vector<2x64x64xf32>
    %90 = arith.mulf %85, %89 : vector<2x64x64xf32>
    "tpu.trace_start"() <{level = 10 : i32, message = "bqk,bkd->bqd"}> : () -> ()
    %cst_34 = arith.constant dense<0.000000e+00> : vector<2x64x8xf32>
    %91 = tpu.matmul %90, %79, %cst_34 {dimension_numbers = #tpu.dot_dimension_numbers<[2], [1], [1], [2], [0, 0, 0, 1, 1, 2], [0], [0]>} : vector<2x64x64xf32>, vector<2x64x8xf32>, vector<2x64x8xf32> -> vector<2x64x8xf32>
    "tpu.trace_stop"() : () -> ()
    %92 = vector.shape_cast %91 : vector<2x64x8xf32> to vector<128x8xf32>
    %c24 = arith.constant 24 : index
    %c0_35 = arith.constant 0 : index
    %93 = vector.load %arg4[%c24, %c0_35] : memref<32x32xf32, #tpu.memory_space<vmem>>, vector<8x32xf32>
    %cst_36 = arith.constant dense<0.000000e+00> : vector<128x32xf32>
    %94 = tpu.matmul %92, %93, %cst_36 {dimension_numbers = #tpu.dot_dimension_numbers<[1], [0], [0], [1], [0, 0, 1, 1], [], []>} : vector<128x8xf32>, vector<8x32xf32>, vector<128x32xf32> -> vector<128x32xf32>
    %95 = arith.addf %76, %94 : vector<128x32xf32>
    %c1 = arith.constant 1 : index
    %c0_37 = arith.constant 0 : index
    %96 = vector.load %arg7[%c1, %c0_37] : memref<9x128xf32, #tpu.memory_space<vmem>>, vector<1x32xf32>
    %97 = vector.broadcast %96 : vector<1x32xf32> to vector<128x32xf32>
    %98 = arith.addf %95, %97 : vector<128x32xf32>
    %99 = arith.addf %7, %98 : vector<128x32xf32>
    %c2 = arith.constant 2 : index
    %c0_38 = arith.constant 0 : index
    %100 = vector.load %arg7[%c2, %c0_38] : memref<9x128xf32, #tpu.memory_space<vmem>>, vector<1x32xf32>
    %c3 = arith.constant 3 : index
    %c0_39 = arith.constant 0 : index
    %101 = vector.load %arg7[%c3, %c0_39] : memref<9x128xf32, #tpu.memory_space<vmem>>, vector<1x32xf32>
    %cst_40 = arith.constant dense<0.000000e+00> : vector<128xf32>
    %102 = vector.multi_reduction <add>, %99, %cst_40 [1] : vector<128x32xf32> to vector<128xf32>
    %103 = vector.shape_cast %102 : vector<128xf32> to vector<128x1xf32>
    %cst_41 = arith.constant 3.200000e+01 : f32
    %104 = vector.broadcast %cst_41 : f32 to vector<128x1xf32>
    %105 = arith.divf %103, %104 : vector<128x1xf32>
    %106 = vector.broadcast %105 : vector<128x1xf32> to vector<128x32xf32>
    %107 = arith.subf %99, %106 : vector<128x32xf32>
    %108 = arith.mulf %107, %107 : vector<128x32xf32>
    %cst_42 = arith.constant dense<0.000000e+00> : vector<128xf32>
    %109 = vector.multi_reduction <add>, %108, %cst_42 [1] : vector<128x32xf32> to vector<128xf32>
    %110 = vector.shape_cast %109 : vector<128xf32> to vector<128x1xf32>
    %cst_43 = arith.constant 3.200000e+01 : f32
    %111 = vector.broadcast %cst_43 : f32 to vector<128x1xf32>
    %112 = arith.divf %110, %111 : vector<128x1xf32>
    %113 = vector.broadcast %105 : vector<128x1xf32> to vector<128x32xf32>
    %114 = arith.subf %99, %113 : vector<128x32xf32>
    %cst_44 = arith.constant 9.99999974E-6 : f32
    %115 = vector.broadcast %cst_44 : f32 to vector<128x1xf32>
    %116 = arith.addf %112, %115 : vector<128x1xf32>
    %117 = math.rsqrt %116 : vector<128x1xf32>
    %118 = vector.broadcast %117 : vector<128x1xf32> to vector<128x32xf32>
    %119 = arith.mulf %114, %118 : vector<128x32xf32>
    %120 = vector.broadcast %100 : vector<1x32xf32> to vector<128x32xf32>
    %121 = arith.mulf %119, %120 : vector<128x32xf32>
    %122 = vector.broadcast %101 : vector<1x32xf32> to vector<128x32xf32>
    %123 = arith.addf %121, %122 : vector<128x32xf32>
    %c0_45 = arith.constant 0 : index
    %c0_46 = arith.constant 0 : index
    %124 = vector.load %arg5[%c0_45, %c0_46] : memref<32x64xf32, #tpu.memory_space<vmem>>, vector<32x64xf32>
    %cst_47 = arith.constant dense<0.000000e+00> : vector<128x64xf32>
    %125 = tpu.matmul %123, %124, %cst_47 {dimension_numbers = #tpu.dot_dimension_numbers<[1], [0], [0], [1], [0, 0, 1, 1], [], []>} : vector<128x32xf32>, vector<32x64xf32>, vector<128x64xf32> -> vector<128x64xf32>
    %c4 = arith.constant 4 : index
    %c0_48 = arith.constant 0 : index
    %126 = vector.load %arg7[%c4, %c0_48] : memref<9x128xf32, #tpu.memory_space<vmem>>, vector<1x64xf32>
    %127 = vector.broadcast %126 : vector<1x64xf32> to vector<128x64xf32>
    %128 = arith.addf %125, %127 : vector<128x64xf32>
    %cst_49 = arith.constant 0.000000e+00 : f32
    %129 = vector.broadcast %cst_49 : f32 to vector<128x64xf32>
    %130 = arith.maximumf %128, %129 : vector<128x64xf32>
    %c0_50 = arith.constant 0 : index
    %c0_51 = arith.constant 0 : index
    %131 = vector.load %arg6[%c0_50, %c0_51] : memref<64x32xf32, #tpu.memory_space<vmem>>, vector<64x32xf32>
    %cst_52 = arith.constant dense<0.000000e+00> : vector<128x32xf32>
    %132 = tpu.matmul %130, %131, %cst_52 {dimension_numbers = #tpu.dot_dimension_numbers<[1], [0], [0], [1], [0, 0, 1, 1], [], []>} : vector<128x64xf32>, vector<64x32xf32>, vector<128x32xf32> -> vector<128x32xf32>
    %c5 = arith.constant 5 : index
    %c0_53 = arith.constant 0 : index
    %133 = vector.load %arg7[%c5, %c0_53] : memref<9x128xf32, #tpu.memory_space<vmem>>, vector<1x32xf32>
    %134 = vector.broadcast %133 : vector<1x32xf32> to vector<128x32xf32>
    %135 = arith.addf %132, %134 : vector<128x32xf32>
    %136 = arith.addf %123, %135 : vector<128x32xf32>
    %c6 = arith.constant 6 : index
    %c0_54 = arith.constant 0 : index
    %137 = vector.load %arg7[%c6, %c0_54] : memref<9x128xf32, #tpu.memory_space<vmem>>, vector<1x32xf32>
    %c7 = arith.constant 7 : index
    %c0_55 = arith.constant 0 : index
    %138 = vector.load %arg7[%c7, %c0_55] : memref<9x128xf32, #tpu.memory_space<vmem>>, vector<1x32xf32>
    %cst_56 = arith.constant dense<0.000000e+00> : vector<128xf32>
    %139 = vector.multi_reduction <add>, %136, %cst_56 [1] : vector<128x32xf32> to vector<128xf32>
    %140 = vector.shape_cast %139 : vector<128xf32> to vector<128x1xf32>
    %cst_57 = arith.constant 3.200000e+01 : f32
    %141 = vector.broadcast %cst_57 : f32 to vector<128x1xf32>
    %142 = arith.divf %140, %141 : vector<128x1xf32>
    %143 = vector.broadcast %142 : vector<128x1xf32> to vector<128x32xf32>
    %144 = arith.subf %136, %143 : vector<128x32xf32>
    %145 = arith.mulf %144, %144 : vector<128x32xf32>
    %cst_58 = arith.constant dense<0.000000e+00> : vector<128xf32>
    %146 = vector.multi_reduction <add>, %145, %cst_58 [1] : vector<128x32xf32> to vector<128xf32>
    %147 = vector.shape_cast %146 : vector<128xf32> to vector<128x1xf32>
    %cst_59 = arith.constant 3.200000e+01 : f32
    %148 = vector.broadcast %cst_59 : f32 to vector<128x1xf32>
    %149 = arith.divf %147, %148 : vector<128x1xf32>
    %150 = vector.broadcast %142 : vector<128x1xf32> to vector<128x32xf32>
    %151 = arith.subf %136, %150 : vector<128x32xf32>
    %cst_60 = arith.constant 9.99999974E-6 : f32
    %152 = vector.broadcast %cst_60 : f32 to vector<128x1xf32>
    %153 = arith.addf %149, %152 : vector<128x1xf32>
    %154 = math.rsqrt %153 : vector<128x1xf32>
    %155 = vector.broadcast %154 : vector<128x1xf32> to vector<128x32xf32>
    %156 = arith.mulf %151, %155 : vector<128x32xf32>
    %157 = vector.broadcast %137 : vector<1x32xf32> to vector<128x32xf32>
    %158 = arith.mulf %156, %157 : vector<128x32xf32>
    %159 = vector.broadcast %138 : vector<1x32xf32> to vector<128x32xf32>
    %160 = arith.addf %158, %159 : vector<128x32xf32>
    %c0_61 = arith.constant 0 : index
    %c0_62 = arith.constant 0 : index
    %161 = vector.load %arg8[%c0_61, %c0_62] : memref<128x32xf32, #tpu.memory_space<vmem>>, vector<128x32xf32>
    tpu.vector_store %arg8[%c0_61, %c0_62], %160 {strides = array<i32>} : memref<128x32xf32, #tpu.memory_space<vmem>>, vector<128x32xf32>,
    return
  }
  func.func @transform_0(%arg0: i32) -> (i32, i32) {
    %c0_i32 = arith.constant 0 : i32
    %c0_i32_0 = arith.constant 0 : i32
    %c0_i32_1 = arith.constant 0 : i32
    return %c0_i32, %c0_i32_0 : i32, i32
  }
  func.func @transform_1(%arg0: i32) -> (i32, i32) {
    %c0_i32 = arith.constant 0 : i32
    %c0_i32_0 = arith.constant 0 : i32
    %c0_i32_1 = arith.constant 0 : i32
    return %c0_i32, %c0_i32_0 : i32, i32
  }
  func.func @transform_2(%arg0: i32) -> (i32, i32) {
    %c0_i32 = arith.constant 0 : i32
    %c0_i32_0 = arith.constant 0 : i32
    %c0_i32_1 = arith.constant 0 : i32
    return %c0_i32, %c0_i32_0 : i32, i32
  }
  func.func @transform_3(%arg0: i32) -> (i32, i32) {
    %c0_i32 = arith.constant 0 : i32
    %c0_i32_0 = arith.constant 0 : i32
    %c0_i32_1 = arith.constant 0 : i32
    return %c0_i32, %c0_i32_0 : i32, i32
  }
  func.func @transform_4(%arg0: i32) -> (i32, i32) {
    %c0_i32 = arith.constant 0 : i32
    %c0_i32_0 = arith.constant 0 : i32
    %c0_i32_1 = arith.constant 0 : i32
    return %c0_i32, %c0_i32_0 : i32, i32
  }
  func.func @transform_5(%arg0: i32) -> (i32, i32) {
    %c0_i32 = arith.constant 0 : i32
    %c0_i32_0 = arith.constant 0 : i32
    %c0_i32_1 = arith.constant 0 : i32
    return %c0_i32, %c0_i32_0 : i32, i32
  }
  func.func @transform_6(%arg0: i32) -> (i32, i32) {
    %c0_i32 = arith.constant 0 : i32
    %c0_i32_0 = arith.constant 0 : i32
    %c0_i32_1 = arith.constant 0 : i32
    return %c0_i32, %c0_i32_0 : i32, i32
  }
  func.func @transform_7(%arg0: i32) -> (i32, i32) {
    %c0_i32 = arith.constant 0 : i32
    %c0_i32_0 = arith.constant 0 : i32
    %c0_i32_1 = arith.constant 0 : i32
    return %c0_i32, %c0_i32_0 : i32, i32
  }
}

</mosaic_0001>

<llo_original>
// kernel: backbone_encoder_only.1
$region0: #{backbone_encoder_only.1}
  #allocation0 [shape = 'u32[]', space=smem, size = 0x4, offset = 0x4, fixed_abs, tag = 'smem constant byte address 0x4 - core index']
  #allocation1 [shape = 'u32[144,128]{1,0:T(1,128)}', space=vmem, size = 0x12000, scoped, tag = 'internal scratch']
  %s0 = inlined_call_operand.vmem [shape: f32[128,36], index: 0, kind: input, shape index: {}]
  %s1 = inlined_call_operand.vmem [shape: f32[36,32], index: 1, kind: input, shape index: {}]
  %s2 = inlined_call_operand.vmem [shape: f32[32,96], index: 2, kind: input, shape index: {}]
  %s3 = inlined_call_operand.vmem [shape: f32[32,32], index: 3, kind: input, shape index: {}]
  %s4 = inlined_call_operand.vmem [shape: f32[32,64], index: 4, kind: input, shape index: {}]
  %s5 = inlined_call_operand.vmem [shape: f32[64,32], index: 5, kind: input, shape index: {}]
  %s6 = inlined_call_operand.vmem [shape: f32[9,128], index: 6, kind: input, shape index: {}]
  %s7 = inlined_call_operand.vmem [shape: f32[128,32], index: 7, kind: output, shape index: {}]
  %s8 = sld [smem:[#allocation0]]
  $region38: #{backbone_encoder_only.1} parent=0
    _
  %s10 = ssub.s32 1, %s8
  %s11 = scalar_select 0, %s10, %s8
  // Predicated region
  $region2: #{backbone_encoder_only.1} parent=0 // pred_check
    _
  $region3: #{backbone_encoder_only.1} parent=0 // pred_check_branch
    %13 = sbr.rel (0) target = $region5
  $region4: #{backbone_encoder_only.1} parent=0 // pred_region
    _
  $region5: #{backbone_encoder_only.1} parent=0 // pred_fallthru
    _
  // Predicated region
  $region6: #{backbone_encoder_only.1} parent=0 // pred_check
    _
  $region7: #{backbone_encoder_only.1} parent=0 // pred_check_branch
    %15 = sbr.rel (0) target = $region9
  $region8: #{backbone_encoder_only.1} parent=0 // pred_region
    _
  $region9: #{backbone_encoder_only.1} parent=0 // pred_fallthru
    _
  // Predicated region
  $region10: #{backbone_encoder_only.1} parent=0 // pred_check
    _
  $region11: #{backbone_encoder_only.1} parent=0 // pred_check_branch
    %17 = sbr.rel (0) target = $region13
  $region12: #{backbone_encoder_only.1} parent=0 // pred_region
    _
  $region13: #{backbone_encoder_only.1} parent=0 // pred_fallthru
    _
  // Predicated region
  $region14: #{backbone_encoder_only.1} parent=0 // pred_check
    _
  $region15: #{backbone_encoder_only.1} parent=0 // pred_check_branch
    %19 = sbr.rel (0) target = $region17
  $region16: #{backbone_encoder_only.1} parent=0 // pred_region
    _
  $region17: #{backbone_encoder_only.1} parent=0 // pred_fallthru
    _
  // Predicated region
  $region18: #{backbone_encoder_only.1} parent=0 // pred_check
    _
  $region19: #{backbone_encoder_only.1} parent=0 // pred_check_branch
    %21 = sbr.rel (0) target = $region21
  $region20: #{backbone_encoder_only.1} parent=0 // pred_region
    _
  $region21: #{backbone_encoder_only.1} parent=0 // pred_fallthru
    _
  // Predicated region
  $region22: #{backbone_encoder_only.1} parent=0 // pred_check
    _
  $region23: #{backbone_encoder_only.1} parent=0 // pred_check_branch
    %23 = sbr.rel (0) target = $region25
  $region24: #{backbone_encoder_only.1} parent=0 // pred_region
    _
  $region25: #{backbone_encoder_only.1} parent=0 // pred_fallthru
    _
  // Predicated region
  $region26: #{backbone_encoder_only.1} parent=0 // pred_check
    _
  $region27: #{backbone_encoder_only.1} parent=0 // pred_check_branch
    %25 = sbr.rel (0) target = $region29
  $region28: #{backbone_encoder_only.1} parent=0 // pred_region
    _
  $region29: #{backbone_encoder_only.1} parent=0 // pred_fallthru
    _
  %v26 = vld [vmem:[%s0] sm:$0xff]
  %v27 = vld [vmem:[%s0 + $0x8] sm:$0xff]
  %v28 = vld [vmem:[%s0 + $0x10] sm:$0xff]
  %v29 = vld [vmem:[%s0 + $0x18] sm:$0xff]
  %v30 = vld [vmem:[%s0 + $0x20] sm:$0xff]
  %v31 = vld [vmem:[%s0 + $0x28] sm:$0xff]
  %v32 = vld [vmem:[%s0 + $0x30] sm:$0xff]
  %v33 = vld [vmem:[%s0 + $0x38] sm:$0xff]
  %v34 = vld [vmem:[%s0 + $0x40] sm:$0xff]
  %v35 = vld [vmem:[%s0 + $0x48] sm:$0xff]
  %v36 = vld [vmem:[%s0 + $0x50] sm:$0xff]
  %v37 = vld [vmem:[%s0 + $0x58] sm:$0xff]
  %v38 = vld [vmem:[%s0 + $0x60] sm:$0xff]
  %v39 = vld [vmem:[%s0 + $0x68] sm:$0xff]
  %v40 = vld [vmem:[%s0 + $0x70] sm:$0xff]
  %v41 = vld [vmem:[%s0 + $0x78] sm:$0xff]
  %v42 = vld [vmem:[%s1] sm:$0xff]
  %v43 = vld [vmem:[%s1 + $0x8] sm:$0xff]
  %v44 = vld [vmem:[%s1 + $0x10] sm:$0xff]
  %v45 = vld [vmem:[%s1 + $0x18] sm:$0xff]
  %v46 = vld [vmem:[%s1 + $0x20] sm:$0xf]
  %v47 = vld [vmem:[%s6 + $0x8] sm:$0x1]
  %v48 = vlaneseq
  %v49 = vshrl.u32 %v48, 7
  %v50 = vsub.s32 0, %v49
  %v51 = vrot.slane %v47, %v50
  %vm52 = vcmask 293888
  %v54 = vsel %vm52, %v26, 0
  %v57 = vsel %vm52, %v27, 0
  %v60 = vsel %vm52, %v28, 0
  %v63 = vsel %vm52, %v29, 0
  %v66 = vsel %vm52, %v30, 0
  %v69 = vsel %vm52, %v31, 0
  %v72 = vsel %vm52, %v32, 0
  %v75 = vsel %vm52, %v33, 0
  %v78 = vsel %vm52, %v34, 0
  %v81 = vsel %vm52, %v35, 0
  %v84 = vsel %vm52, %v36, 0
  %v87 = vsel %vm52, %v37, 0
  %v90 = vsel %vm52, %v38, 0
  %v93 = vsel %vm52, %v39, 0
  %v96 = vsel %vm52, %v40, 0
  %v99 = vsel %vm52, %v41, 0
  %vm101 = vcmask 1043456
  %v103 = vsel %vm101, %v46, 0
  %105 = vmatprep.subr.mxu0 0.0
  %106 = vmatpush1.msra.mxu0 %v42
  %107 = vmatprep.subr.mxu0 0.0
  %108 = vmatpush1.msra.mxu0 %v43
  %109 = vmatprep.subr.mxu0 0.0
  %110 = vmatpush1.msra.mxu0 %v44
  %111 = vmatprep.subr.mxu0 0.0
  %112 = vmatpush1.msra.mxu0 %v45
  %113 = vmatprep.subr.mxu0 0.0
  %114 = vmatpush1.msra.mxu0 %v103
  %115 = vmatprep.subr.mxu0 0.0
  %116 = vmatpush1.msra.mxu0 0.0
  %117 = vmatprep.subr.mxu0 0.0
  %118 = vmatpush1.msra.mxu0 0.0
  %119 = vmatprep.subr.mxu0 0.0
  %120 = vmatpush1.msra.mxu0 0.0
  %121 = vmatprep.subr.mxu0 0.0
  %122 = vmatpush1.msra.mxu0 0.0
  %123 = vmatprep.subr.mxu0 0.0
  %124 = vmatpush1.msra.mxu0 0.0
  %125 = vmatprep.subr.mxu0 0.0
  %126 = vmatpush1.msra.mxu0 0.0
  %127 = vmatprep.subr.mxu0 0.0
  %128 = vmatpush1.msra.mxu0 0.0
  %129 = vmatprep.subr.mxu0 0.0
  %130 = vmatpush1.msra.mxu0 0.0
  %131 = vmatprep.subr.mxu0 0.0
  %132 = vmatpush1.msra.mxu0 0.0
  %133 = vmatprep.subr.mxu0 0.0
  %134 = vmatpush1.msra.mxu0 0.0
  %135 = vmatprep.subr.mxu0 0.0
  %136 = vmatpush1.msra.mxu0 0.0
  %137 = vmatprep.subr.mxu0 0.0
  %138 = vmatpush1.msra.mxu0 0.0
  %139 = vmatprep.subr.mxu0 0.0
  %140 = vmatpush1.msra.mxu0 0.0
  %141 = vmatprep.subr.mxu0 0.0
  %142 = vmatpush1.msra.mxu0 0.0
  %143 = vmatprep.subr.mxu0 0.0
  %144 = vmatpush1.msra.mxu0 0.0
  %145 = vmatprep.subr.mxu0 0.0
  %146 = vmatpush1.msra.mxu0 0.0
  %147 = vmatprep.subr.mxu0 0.0
  %148 = vmatpush1.msra.mxu0 0.0
  %149 = vmatprep.subr.mxu0 0.0
  %150 = vmatpush1.msra.mxu0 0.0
  %151 = vmatprep.subr.mxu0 0.0
  %152 = vmatpush1.msra.mxu0 0.0
  %153 = vmatprep.subr.mxu0 0.0
  %154 = vmatpush1.msra.mxu0 0.0
  %155 = vmatprep.subr.mxu0 0.0
  %156 = vmatpush1.msra.mxu0 0.0
  %157 = vmatprep.subr.mxu0 0.0
  %158 = vmatpush1.msra.mxu0 0.0
  %159 = vmatprep.subr.mxu0 0.0
  %160 = vmatpush1.msra.mxu0 0.0
  %161 = vmatprep.subr.mxu0 0.0
  %162 = vmatpush1.msra.mxu0 0.0
  %163 = vmatprep.subr.mxu0 0.0
  %164 = vmatpush1.msra.mxu0 0.0
  %165 = vmatprep.subr.mxu0 0.0
  %166 = vmatpush1.msra.mxu0 0.0
  %167 = vmatprep.subr.mxu0 0.0
  %168 = vmatpush1.msra.mxu0 0.0
  %169 = vmatprep.mubr.f32.mxu0 0.0
  %170 = vmatmul.mubr.f32.gmra.mrb[0].mxu0 %v54
  %v171 = vpop.f32.mrb[0].mxu0
  %v172 = vadd.f32 %v51, %v171
  %v173 = vpop.f32.mrb[0].mxu0
  %174 = vmatprep.mubr.f32.mxu0 0.0
  %175 = vmatmul.mubr.f32.gmra.mrb[0].mxu0 %v57
  %v176 = vpop.f32.mrb[0].mxu0
  %v177 = vadd.f32 %v51, %v176
  %v178 = vpop.f32.mrb[0].mxu0
  %179 = vmatprep.mubr.f32.mxu0 0.0
  %180 = vmatmul.mubr.f32.gmra.mrb[0].mxu0 %v60
  %v181 = vpop.f32.mrb[0].mxu0
  %v182 = vadd.f32 %v51, %v181
  %v183 = vpop.f32.mrb[0].mxu0
  %184 = vmatprep.mubr.f32.mxu0 0.0
  %185 = vmatmul.mubr.f32.gmra.mrb[0].mxu0 %v63
  %v186 = vpop.f32.mrb[0].mxu0
  %v187 = vadd.f32 %v51, %v186
  %v188 = vpop.f32.mrb[0].mxu0
  %189 = vmatprep.mubr.f32.mxu0 0.0
  %190 = vmatmul.mubr.f32.gmra.mrb[0].mxu0 %v66
  %v191 = vpop.f32.mrb[0].mxu0
  %v192 = vadd.f32 %v51, %v191
  %v193 = vpop.f32.mrb[0].mxu0
  %194 = vmatprep.mubr.f32.mxu0 0.0
  %195 = vmatmul.mubr.f32.gmra.mrb[0].mxu0 %v69
  %v196 = vpop.f32.mrb[0].mxu0
  %v197 = vadd.f32 %v51, %v196
  %v198 = vpop.f32.mrb[0].mxu0
  %199 = vmatprep.mubr.f32.mxu0 0.0
  %200 = vmatmul.mubr.f32.gmra.mrb[0].mxu0 %v72
  %v201 = vpop.f32.mrb[0].mxu0
  %v202 = vadd.f32 %v51, %v201
  %v203 = vpop.f32.mrb[0].mxu0
  %204 = vmatprep.mubr.f32.mxu0 0.0
  %205 = vmatmul.mubr.f32.gmra.mrb[0].mxu0 %v75
  %v206 = vpop.f32.mrb[0].mxu0
  %v207 = vadd.f32 %v51, %v206
  %v208 = vpop.f32.mrb[0].mxu0
  %209 = vmatprep.mubr.f32.mxu0 0.0
  %210 = vmatmul.mubr.f32.gmra.mrb[0].mxu0 %v78
  %v211 = vpop.f32.mrb[0].mxu0
  %v212 = vadd.f32 %v51, %v211
  %v213 = vpop.f32.mrb[0].mxu0
  %214 = vmatprep.mubr.f32.mxu0 0.0
  %215 = vmatmul.mubr.f32.gmra.mrb[0].mxu0 %v81
  %v216 = vpop.f32.mrb[0].mxu0
  %v217 = vadd.f32 %v51, %v216
  %v218 = vpop.f32.mrb[0].mxu0
  %219 = vmatprep.mubr.f32.mxu0 0.0
  %220 = vmatmul.mubr.f32.gmra.mrb[0].mxu0 %v84
  %v221 = vpop.f32.mrb[0].mxu0
  %v222 = vadd.f32 %v51, %v221
  %v223 = vpop.f32.mrb[0].mxu0
  %224 = vmatprep.mubr.f32.mxu0 0.0
  %225 = vmatmul.mubr.f32.gmra.mrb[0].mxu0 %v87
  %v226 = vpop.f32.mrb[0].mxu0
  %v227 = vadd.f32 %v51, %v226
  %v228 = vpop.f32.mrb[0].mxu0
  %229 = vmatprep.mubr.f32.mxu0 0.0
  %230 = vmatmul.mubr.f32.gmra.mrb[0].mxu0 %v90
  %v231 = vpop.f32.mrb[0].mxu0
  %v232 = vadd.f32 %v51, %v231
  %v233 = vpop.f32.mrb[0].mxu0
  %234 = vmatprep.mubr.f32.mxu0 0.0
  %235 = vmatmul.mubr.f32.gmra.mrb[0].mxu0 %v93
  %v236 = vpop.f32.mrb[0].mxu0
  %v237 = vadd.f32 %v51, %v236
  %v238 = vpop.f32.mrb[0].mxu0
  %239 = vmatprep.mubr.f32.mxu0 0.0
  %240 = vmatmul.mubr.f32.gmra.mrb[0].mxu0 %v96
  %v241 = vpop.f32.mrb[0].mxu0
  %v242 = vadd.f32 %v51, %v241
  %v243 = vpop.f32.mrb[0].mxu0
  %244 = vmatprep.mubr.f32.mxu0 0.0
  %245 = vmatmul.mubr.f32.gmra.mrb[0].mxu0 %v99
  %v246 = vpop.f32.mrb[0].mxu0
  %v247 = vadd.f32 %v51, %v246
  %v248 = vpop.f32.mrb[0].mxu0
  %249 = vdwg.mxu0
  %v250 = vmax.f32 %v172, 0.0
  %v251 = vmax.f32 %v177, 0.0
  %v252 = vmax.f32 %v182, 0.0
  %v253 = vmax.f32 %v187, 0.0
  %v254 = vmax.f32 %v192, 0.0
  %v255 = vmax.f32 %v197, 0.0
  %v256 = vmax.f32 %v202, 0.0
  %v257 = vmax.f32 %v207, 0.0
  %v258 = vmax.f32 %v212, 0.0
  %v259 = vmax.f32 %v217, 0.0
  %v260 = vmax.f32 %v222, 0.0
  %v261 = vmax.f32 %v227, 0.0
  %v262 = vmax.f32 %v232, 0.0
  %v263 = vmax.f32 %v237, 0.0
  %v264 = vmax.f32 %v242, 0.0
  %v265 = vmax.f32 %v247, 0.0
  %v266 = vld [vmem:[%s2] sm:$0xff]
  %v267 = vld [vmem:[%s2 + $0x8] sm:$0xff]
  %v268 = vld [vmem:[%s2 + $0x10] sm:$0xff]
  %v269 = vld [vmem:[%s2 + $0x18] sm:$0xff]
  %v270 = vld [vmem:[%s6] sm:$0x1]
  %v271 = vlaneseq
  %v272 = vshrl.u32 %v271, 7
  %v273 = vsub.s32 0, %v272
  %v274 = vrot.slane %v270, %v273
  %vm275 = vcmask 261120
  %v277 = vsel %vm275, %v250, 0
  %v280 = vsel %vm275, %v251, 0
  %v283 = vsel %vm275, %v252, 0
  %v286 = vsel %vm275, %v253, 0
  %v289 = vsel %vm275, %v254, 0
  %v292 = vsel %vm275, %v255, 0
  %v295 = vsel %vm275, %v256, 0
  %v298 = vsel %vm275, %v257, 0
  %v301 = vsel %vm275, %v258, 0
  %v304 = vsel %vm275, %v259, 0
  %v307 = vsel %vm275, %v260, 0
  %v310 = vsel %vm275, %v261, 0
  %v313 = vsel %vm275, %v262, 0
  %v316 = vsel %vm275, %v263, 0
  %v319 = vsel %vm275, %v264, 0
  %v322 = vsel %vm275, %v265, 0
  %324 = vmatprep.subr.mxu0 0.0
  %325 = vmatpush1.msra.mxu0 %v266
  %326 = vmatprep.subr.mxu0 0.0
  %327 = vmatpush1.msra.mxu0 %v267
  %328 = vmatprep.subr.mxu0 0.0
  %329 = vmatpush1.msra.mxu0 %v268
  %330 = vmatprep.subr.mxu0 0.0
  %331 = vmatpush1.msra.mxu0 %v269
  %332 = vmatprep.subr.mxu0 0.0
  %333 = vmatpush1.msra.mxu0 0.0
  %334 = vmatprep.subr.mxu0 0.0
  %335 = vmatpush1.msra.mxu0 0.0
  %336 = vmatprep.subr.mxu0 0.0
  %337 = vmatpush1.msra.mxu0 0.0
  %338 = vmatprep.subr.mxu0 0.0
  %339 = vmatpush1.msra.mxu0 0.0
  %340 = vmatprep.subr.mxu0 0.0
  %341 = vmatpush1.msra.mxu0 0.0
  %342 = vmatprep.subr.mxu0 0.0
  %343 = vmatpush1.msra.mxu0 0.0
  %344 = vmatprep.subr.mxu0 0.0
  %345 = vmatpush1.msra.mxu0 0.0
  %346 = vmatprep.subr.mxu0 0.0
  %347 = vmatpush1.msra.mxu0 0.0
  %348 = vmatprep.subr.mxu0 0.0
  %349 = vmatpush1.msra.mxu0 0.0
  %350 = vmatprep.subr.mxu0 0.0
  %351 = vmatpush1.msra.mxu0 0.0
  %352 = vmatprep.subr.mxu0 0.0
  %353 = vmatpush1.msra.mxu0 0.0
  %354 = vmatprep.subr.mxu0 0.0
  %355 = vmatpush1.msra.mxu0 0.0
  %356 = vmatprep.subr.mxu0 0.0
  %357 = vmatpush1.msra.mxu0 0.0
  %358 = vmatprep.subr.mxu0 0.0
  %359 = vmatpush1.msra.mxu0 0.0
  %360 = vmatprep.subr.mxu0 0.0
  %361 = vmatpush1.msra.mxu0 0.0
  %362 = vmatprep.subr.mxu0 0.0
  %363 = vmatpush1.msra.mxu0 0.0
  %364 = vmatprep.subr.mxu0 0.0
  %365 = vmatpush1.msra.mxu0 0.0
  %366 = vmatprep.subr.mxu0 0.0
  %367 = vmatpush1.msra.mxu0 0.0
  %368 = vmatprep.subr.mxu0 0.0
  %369 = vmatpush1.msra.mxu0 0.0
  %370 = vmatprep.subr.mxu0 0.0
  %371 = vmatpush1.msra.mxu0 0.0
  %372 = vmatprep.subr.mxu0 0.0
  %373 = vmatpush1.msra.mxu0 0.0
  %374 = vmatprep.subr.mxu0 0.0
  %375 = vmatpush1.msra.mxu0 0.0
  %376 = vmatprep.subr.mxu0 0.0
  %377 = vmatpush1.msra.mxu0 0.0
  %378 = vmatprep.subr.mxu0 0.0
  %379 = vmatpush1.msra.mxu0 0.0
  %380 = vmatprep.subr.mxu0 0.0
  %381 = vmatpush1.msra.mxu0 0.0
  %382 = vmatprep.subr.mxu0 0.0
  %383 = vmatpush1.msra.mxu0 0.0
  %384 = vmatprep.subr.mxu0 0.0
  %385 = vmatpush1.msra.mxu0 0.0
  %386 = vmatprep.subr.mxu0 0.0
  %387 = vmatpush1.msra.mxu0 0.0
  %388 = vmatprep.mubr.f32.mxu0 0.0
  %389 = vmatmul.mubr.f32.gmra.mrb[0].mxu0 %v277
  %v390 = vpop.f32.mrb[0].mxu0
  %v391 = vadd.f32 %v274, %v390
  %v392 = vpop.f32.mrb[0].mxu0
  %393 = vmatprep.mubr.f32.mxu0 0.0
  %394 = vmatmul.mubr.f32.gmra.mrb[0].mxu0 %v280
  %v395 = vpop.f32.mrb[0].mxu0
  %v396 = vadd.f32 %v274, %v395
  %v397 = vpop.f32.mrb[0].mxu0
  %398 = vmatprep.mubr.f32.mxu0 0.0
  %399 = vmatmul.mubr.f32.gmra.mrb[0].mxu0 %v283
  %v400 = vpop.f32.mrb[0].mxu0
  %v401 = vadd.f32 %v274, %v400
  %v402 = vpop.f32.mrb[0].mxu0
  %403 = vmatprep.mubr.f32.mxu0 0.0
  %404 = vmatmul.mubr.f32.gmra.mrb[0].mxu0 %v286
  %v405 = vpop.f32.mrb[0].mxu0
  %v406 = vadd.f32 %v274, %v405
  %v407 = vpop.f32.mrb[0].mxu0
  %408 = vmatprep.mubr.f32.mxu0 0.0
  %409 = vmatmul.mubr.f32.gmra.mrb[0].mxu0 %v289
  %v410 = vpop.f32.mrb[0].mxu0
  %v411 = vadd.f32 %v274, %v410
  %v412 = vpop.f32.mrb[0].mxu0
  %413 = vmatprep.mubr.f32.mxu0 0.0
  %414 = vmatmul.mubr.f32.gmra.mrb[0].mxu0 %v292
  %v415 = vpop.f32.mrb[0].mxu0
  %v416 = vadd.f32 %v274, %v415
  %v417 = vpop.f32.mrb[0].mxu0
  %418 = vmatprep.mubr.f32.mxu0 0.0
  %419 = vmatmul.mubr.f32.gmra.mrb[0].mxu0 %v295
  %v420 = vpop.f32.mrb[0].mxu0
  %v421 = vadd.f32 %v274, %v420
  %v422 = vpop.f32.mrb[0].mxu0
  %423 = vmatprep.mubr.f32.mxu0 0.0
  %424 = vmatmul.mubr.f32.gmra.mrb[0].mxu0 %v298
  %v425 = vpop.f32.mrb[0].mxu0
  %v426 = vadd.f32 %v274, %v425
  %v427 = vpop.f32.mrb[0].mxu0
  %428 = vmatprep.mubr.f32.mxu0 0.0
  %429 = vmatmul.mubr.f32.gmra.mrb[0].mxu0 %v301
  %v430 = vpop.f32.mrb[0].mxu0
  %v431 = vadd.f32 %v274, %v430
  %v432 = vpop.f32.mrb[0].mxu0
  %433 = vmatprep.mubr.f32.mxu0 0.0
  %434 = vmatmul.mubr.f32.gmra.mrb[0].mxu0 %v304
  %v435 = vpop.f32.mrb[0].mxu0
  %v436 = vadd.f32 %v274, %v435
  %v437 = vpop.f32.mrb[0].mxu0
  %438 = vmatprep.mubr.f32.mxu0 0.0
  %439 = vmatmul.mubr.f32.gmra.mrb[0].mxu0 %v307
  %v440 = vpop.f32.mrb[0].mxu0
  %v441 = vadd.f32 %v274, %v440
  %v442 = vpop.f32.mrb[0].mxu0
  %443 = vmatprep.mubr.f32.mxu0 0.0
  %444 = vmatmul.mubr.f32.gmra.mrb[0].mxu0 %v310
  %v445 = vpop.f32.mrb[0].mxu0
  %v446 = vadd.f32 %v274, %v445
  %v447 = vpop.f32.mrb[0].mxu0
  %448 = vmatprep.mubr.f32.mxu0 0.0
  %449 = vmatmul.mubr.f32.gmra.mrb[0].mxu0 %v313
  %v450 = vpop.f32.mrb[0].mxu0
  %v451 = vadd.f32 %v274, %v450
  %v452 = vpop.f32.mrb[0].mxu0
  %453 = vmatprep.mubr.f32.mxu0 0.0
  %454 = vmatmul.mubr.f32.gmra.mrb[0].mxu0 %v316
  %v455 = vpop.f32.mrb[0].mxu0
  %v456 = vadd.f32 %v274, %v455
  %v457 = vpop.f32.mrb[0].mxu0
  %458 = vmatprep.mubr.f32.mxu0 0.0
  %459 = vmatmul.mubr.f32.gmra.mrb[0].mxu0 %v319
  %v460 = vpop.f32.mrb[0].mxu0
  %v461 = vadd.f32 %v274, %v460
  %v462 = vpop.f32.mrb[0].mxu0
  %463 = vmatprep.mubr.f32.mxu0 0.0
  %464 = vmatmul.mubr.f32.gmra.mrb[0].mxu0 %v322
  %v465 = vpop.f32.mrb[0].mxu0
  %v466 = vadd.f32 %v274, %v465
  %v467 = vpop.f32.mrb[0].mxu0
  %468 = vdwg.mxu0
  %v469 = vmul.f32 %v391, 0.35355338
  %v470 = vmul.f32 %v396, 0.35355338
  %v471 = vmul.f32 %v401, 0.35355338
  %v472 = vmul.f32 %v406, 0.35355338
  %v473 = vmul.f32 %v411, 0.35355338
  %v474 = vmul.f32 %v416, 0.35355338
  %v475 = vmul.f32 %v421, 0.35355338
  %v476 = vmul.f32 %v426, 0.35355338
  %v477 = vmul.f32 %v431, 0.35355338
  %v478 = vmul.f32 %v436, 0.35355338
  %v479 = vmul.f32 %v441, 0.35355338
  %v480 = vmul.f32 %v446, 0.35355338
  %v481 = vmul.f32 %v451, 0.35355338
  %v482 = vmul.f32 %v456, 0.35355338
  %v483 = vmul.f32 %v461, 0.35355338
  %v484 = vmul.f32 %v466, 0.35355338
  %493 = vrot.lane.b32.xlu0 %v391, 96
  %v494 = vpop.permute.xlu0 %493
  %495 = vrot.lane.b32.xlu0 %v396, 96
  %v496 = vpop.permute.xlu0 %495
  %497 = vrot.lane.b32.xlu0 %v401, 96
  %v498 = vpop.permute.xlu0 %497
  %499 = vrot.lane.b32.xlu0 %v406, 96
  %v500 = vpop.permute.xlu0 %499
  %501 = vrot.lane.b32.xlu0 %v411, 96
  %v502 = vpop.permute.xlu0 %501
  %503 = vrot.lane.b32.xlu0 %v416, 96
  %v504 = vpop.permute.xlu0 %503
  %505 = vrot.lane.b32.xlu0 %v421, 96
  %v506 = vpop.permute.xlu0 %505
  %507 = vrot.lane.b32.xlu0 %v426, 96
  %v508 = vpop.permute.xlu0 %507
  %vm509 = vcmask 64512
  %v511 = vsel %vm509, %v469, 0
  %v514 = vsel %vm509, %v470, 0
  %v517 = vsel %vm509, %v471, 0
  %v520 = vsel %vm509, %v472, 0
  %v523 = vsel %vm509, %v473, 0
  %v526 = vsel %vm509, %v474, 0
  %v529 = vsel %vm509, %v475, 0
  %v532 = vsel %vm509, %v476, 0
  %v534 = vsel %vm509, %v494, 0
  %v536 = vsel %vm509, %v496, 0
  %v538 = vsel %vm509, %v498, 0
  %v540 = vsel %vm509, %v500, 0
  %v542 = vsel %vm509, %v502, 0
  %v544 = vsel %vm509, %v504, 0
  %v546 = vsel %vm509, %v506, 0
  %v548 = vsel %vm509, %v508, 0
  %550 = vmatprep.subr.mxu0 0.0
  %551 = vmatpush1.xpose.msra.mxu0 %v534
  %552 = vmatprep.subr.mxu0 0.0
  %553 = vmatpush1.xpose.msra.mxu0 %v536
  %554 = vmatprep.subr.mxu0 0.0
  %555 = vmatpush1.xpose.msra.mxu0 %v538
  %556 = vmatprep.subr.mxu0 0.0
  %557 = vmatpush1.xpose.msra.mxu0 %v540
  %558 = vmatprep.subr.mxu0 0.0
  %559 = vmatpush1.xpose.msra.mxu0 %v542
  %560 = vmatprep.subr.mxu0 0.0
  %561 = vmatpush1.xpose.msra.mxu0 %v544
  %562 = vmatprep.subr.mxu0 0.0
  %563 = vmatpush1.xpose.msra.mxu0 %v546
  %564 = vmatprep.subr.mxu0 0.0
  %565 = vmatpush1.xpose.msra.mxu0 %v548
  %566 = vmatprep.subr.mxu0 0.0
  %567 = vmatpush1.xpose.msra.mxu0 0.0
  %568 = vmatprep.subr.mxu0 0.0
  %569 = vmatpush1.xpose.msra.mxu0 0.0
  %570 = vmatprep.subr.mxu0 0.0
  %571 = vmatpush1.xpose.msra.mxu0 0.0
  %572 = vmatprep.subr.mxu0 0.0
  %573 = vmatpush1.xpose.msra.mxu0 0.0
  %574 = vmatprep.subr.mxu0 0.0
  %575 = vmatpush1.xpose.msra.mxu0 0.0
  %576 = vmatprep.subr.mxu0 0.0
  %577 = vmatpush1.xpose.msra.mxu0 0.0
  %578 = vmatprep.subr.mxu0 0.0
  %579 = vmatpush1.xpose.msra.mxu0 0.0
  %580 = vmatprep.subr.mxu0 0.0
  %581 = vmatpush1.xpose.msra.mxu0 0.0
  %582 = vmatprep.subr.mxu0 0.0
  %583 = vmatpush1.xpose.msra.mxu0 0.0
  %584 = vmatprep.subr.mxu0 0.0
  %585 = vmatpush1.xpose.msra.mxu0 0.0
  %586 = vmatprep.subr.mxu0 0.0
  %587 = vmatpush1.xpose.msra.mxu0 0.0
  %588 = vmatprep.subr.mxu0 0.0
  %589 = vmatpush1.xpose.msra.mxu0 0.0
  %590 = vmatprep.subr.mxu0 0.0
  %591 = vmatpush1.xpose.msra.mxu0 0.0
  %592 = vmatprep.subr.mxu0 0.0
  %593 = vmatpush1.xpose.msra.mxu0 0.0
  %594 = vmatprep.subr.mxu0 0.0
  %595 = vmatpush1.xpose.msra.mxu0 0.0
  %596 = vmatprep.subr.mxu0 0.0
  %597 = vmatpush1.xpose.msra.mxu0 0.0
  %598 = vmatprep.subr.mxu0 0.0
  %599 = vmatpush1.xpose.msra.mxu0 0.0
  %600 = vmatprep.subr.mxu0 0.0
  %601 = vmatpush1.xpose.msra.mxu0 0.0
  %602 = vmatprep.subr.mxu0 0.0
  %603 = vmatpush1.xpose.msra.mxu0 0.0
  %604 = vmatprep.subr.mxu0 0.0
  %605 = vmatpush1.xpose.msra.mxu0 0.0
  %606 = vmatprep.subr.mxu0 0.0
  %607 = vmatpush1.xpose.msra.mxu0 0.0
  %608 = vmatprep.subr.mxu0 0.0
  %609 = vmatpush1.xpose.msra.mxu0 0.0
  %610 = vmatprep.subr.mxu0 0.0
  %611 = vmatpush1.xpose.msra.mxu0 0.0
  %612 = vmatprep.subr.mxu0 0.0
  %613 = vmatpush1.xpose.msra.mxu0 0.0
  %614 = vmatprep.mubr.f32.mxu0 0.0
  %615 = vmatmul.mubr.f32.gmra.mrb[0].mxu0 %v511
  %v616 = vpop.f32.mrb[0].mxu0
  %v617 = vadd.f32 0.0, %v616
  %v618 = vpop.f32.mrb[0].mxu0
  %619 = vmatprep.mubr.f32.mxu0 0.0
  %620 = vmatmul.mubr.f32.gmra.mrb[0].mxu0 %v514
  %v621 = vpop.f32.mrb[0].mxu0
  %v622 = vadd.f32 0.0, %v621
  %v623 = vpop.f32.mrb[0].mxu0
  %624 = vmatprep.mubr.f32.mxu0 0.0
  %625 = vmatmul.mubr.f32.gmra.mrb[0].mxu0 %v517
  %v626 = vpop.f32.mrb[0].mxu0
  %v627 = vadd.f32 0.0, %v626
  %v628 = vpop.f32.mrb[0].mxu0
  %629 = vmatprep.mubr.f32.mxu0 0.0
  %630 = vmatmul.mubr.f32.gmra.mrb[0].mxu0 %v520
  %v631 = vpop.f32.mrb[0].mxu0
  %v632 = vadd.f32 0.0, %v631
  %v633 = vpop.f32.mrb[0].mxu0
  %634 = vmatprep.mubr.f32.mxu0 0.0
  %635 = vmatmul.mubr.f32.gmra.mrb[0].mxu0 %v523
  %v636 = vpop.f32.mrb[0].mxu0
  %v637 = vadd.f32 0.0, %v636
  %v638 = vpop.f32.mrb[0].mxu0
  %639 = vmatprep.mubr.f32.mxu0 0.0
  %640 = vmatmul.mubr.f32.gmra.mrb[0].mxu0 %v526
  %v641 = vpop.f32.mrb[0].mxu0
  %v642 = vadd.f32 0.0, %v641
  %v643 = vpop.f32.mrb[0].mxu0
  %644 = vmatprep.mubr.f32.mxu0 0.0
  %645 = vmatmul.mubr.f32.gmra.mrb[0].mxu0 %v529
  %v646 = vpop.f32.mrb[0].mxu0
  %v647 = vadd.f32 0.0, %v646
  %v648 = vpop.f32.mrb[0].mxu0
  %649 = vmatprep.mubr.f32.mxu0 0.0
  %650 = vmatmul.mubr.f32.gmra.mrb[0].mxu0 %v532
  %v651 = vpop.f32.mrb[0].mxu0
  %v652 = vadd.f32 0.0, %v651
  %v653 = vpop.f32.mrb[0].mxu0
  %654 = vdwg.mxu0
  %663 = vrot.lane.b32.xlu0 %v431, 96
  %v664 = vpop.permute.xlu0 %663
  %665 = vrot.lane.b32.xlu0 %v436, 96
  %v666 = vpop.permute.xlu0 %665
  %667 = vrot.lane.b32.xlu0 %v441, 96
  %v668 = vpop.permute.xlu0 %667
  %669 = vrot.lane.b32.xlu0 %v446, 96
  %v670 = vpop.permute.xlu0 %669
  %671 = vrot.lane.b32.xlu0 %v451, 96
  %v672 = vpop.permute.xlu0 %671
  %673 = vrot.lane.b32.xlu0 %v456, 96
  %v674 = vpop.permute.xlu0 %673
  %675 = vrot.lane.b32.xlu0 %v461, 96
  %v676 = vpop.permute.xlu0 %675
  %677 = vrot.lane.b32.xlu0 %v466, 96
  %v678 = vpop.permute.xlu0 %677
  %v680 = vsel %vm509, %v477, 0
  %v683 = vsel %vm509, %v478, 0
  %v686 = vsel %vm509, %v479, 0
  %v689 = vsel %vm509, %v480, 0
  %v692 = vsel %vm509, %v481, 0
  %v695 = vsel %vm509, %v482, 0
  %v698 = vsel %vm509, %v483, 0
  %v701 = vsel %vm509, %v484, 0
  %v703 = vsel %vm509, %v664, 0
  %v705 = vsel %vm509, %v666, 0
  %v707 = vsel %vm509, %v668, 0
  %v709 = vsel %vm509, %v670, 0
  %v711 = vsel %vm509, %v672, 0
  %v713 = vsel %vm509, %v674, 0
  %v715 = vsel %vm509, %v676, 0
  %v717 = vsel %vm509, %v678, 0
  %719 = vmatprep.subr.mxu0 0.0
  %720 = vmatpush1.xpose.msra.mxu0 %v703
  %721 = vmatprep.subr.mxu0 0.0
  %722 = vmatpush1.xpose.msra.mxu0 %v705
  %723 = vmatprep.subr.mxu0 0.0
  %724 = vmatpush1.xpose.msra.mxu0 %v707
  %725 = vmatprep.subr.mxu0 0.0
  %726 = vmatpush1.xpose.msra.mxu0 %v709
  %727 = vmatprep.subr.mxu0 0.0
  %728 = vmatpush1.xpose.msra.mxu0 %v711
  %729 = vmatprep.subr.mxu0 0.0
  %730 = vmatpush1.xpose.msra.mxu0 %v713
  %731 = vmatprep.subr.mxu0 0.0
  %732 = vmatpush1.xpose.msra.mxu0 %v715
  %733 = vmatprep.subr.mxu0 0.0
  %734 = vmatpush1.xpose.msra.mxu0 %v717
  %735 = vmatprep.subr.mxu0 0.0
  %736 = vmatpush1.xpose.msra.mxu0 0.0
  %737 = vmatprep.subr.mxu0 0.0
  %738 = vmatpush1.xpose.msra.mxu0 0.0
  %739 = vmatprep.subr.mxu0 0.0
  %740 = vmatpush1.xpose.msra.mxu0 0.0
  %741 = vmatprep.subr.mxu0 0.0
  %742 = vmatpush1.xpose.msra.mxu0 0.0
  %743 = vmatprep.subr.mxu0 0.0
  %744 = vmatpush1.xpose.msra.mxu0 0.0
  %745 = vmatprep.subr.mxu0 0.0
  %746 = vmatpush1.xpose.msra.mxu0 0.0
  %747 = vmatprep.subr.mxu0 0.0
  %748 = vmatpush1.xpose.msra.mxu0 0.0
  %749 = vmatprep.subr.mxu0 0.0
  %750 = vmatpush1.xpose.msra.mxu0 0.0
  %751 = vmatprep.subr.mxu0 0.0
  %752 = vmatpush1.xpose.msra.mxu0 0.0
  %753 = vmatprep.subr.mxu0 0.0
  %754 = vmatpush1.xpose.msra.mxu0 0.0
  %755 = vmatprep.subr.mxu0 0.0
  %756 = vmatpush1.xpose.msra.mxu0 0.0
  %757 = vmatprep.subr.mxu0 0.0
  %758 = vmatpush1.xpose.msra.mxu0 0.0
  %759 = vmatprep.subr.mxu0 0.0
  %760 = vmatpush1.xpose.msra.mxu0 0.0
  %761 = vmatprep.subr.mxu0 0.0
  %762 = vmatpush1.xpose.msra.mxu0 0.0
  %763 = vmatprep.subr.mxu0 0.0
  %764 = vmatpush1.xpose.msra.mxu0 0.0
  %765 = vmatprep.subr.mxu0 0.0
  %766 = vmatpush1.xpose.msra.mxu0 0.0
  %767 = vmatprep.subr.mxu0 0.0
  %768 = vmatpush1.xpose.msra.mxu0 0.0
  %769 = vmatprep.subr.mxu0 0.0
  %770 = vmatpush1.xpose.msra.mxu0 0.0
  %771 = vmatprep.subr.mxu0 0.0
  %772 = vmatpush1.xpose.msra.mxu0 0.0
  %773 = vmatprep.subr.mxu0 0.0
  %774 = vmatpush1.xpose.msra.mxu0 0.0
  %775 = vmatprep.subr.mxu0 0.0
  %776 = vmatpush1.xpose.msra.mxu0 0.0
  %777 = vmatprep.subr.mxu0 0.0
  %778 = vmatpush1.xpose.msra.mxu0 0.0
  %779 = vmatprep.subr.mxu0 0.0
  %780 = vmatpush1.xpose.msra.mxu0 0.0
  %781 = vmatprep.subr.mxu0 0.0
  %782 = vmatpush1.xpose.msra.mxu0 0.0
  %783 = vmatprep.mubr.f32.mxu0 0.0
  %784 = vmatmul.mubr.f32.gmra.mrb[0].mxu0 %v680
  %v785 = vpop.f32.mrb[0].mxu0
  %v786 = vadd.f32 0.0, %v785
  %v787 = vpop.f32.mrb[0].mxu0
  %788 = vmatprep.mubr.f32.mxu0 0.0
  %789 = vmatmul.mubr.f32.gmra.mrb[0].mxu0 %v683
  %v790 = vpop.f32.mrb[0].mxu0
  %v791 = vadd.f32 0.0, %v790
  %v792 = vpop.f32.mrb[0].mxu0
  %793 = vmatprep.mubr.f32.mxu0 0.0
  %794 = vmatmul.mubr.f32.gmra.mrb[0].mxu0 %v686
  %v795 = vpop.f32.mrb[0].mxu0
  %v796 = vadd.f32 0.0, %v795
  %v797 = vpop.f32.mrb[0].mxu0
  %798 = vmatprep.mubr.f32.mxu0 0.0
  %799 = vmatmul.mubr.f32.gmra.mrb[0].mxu0 %v689
  %v800 = vpop.f32.mrb[0].mxu0
  %v801 = vadd.f32 0.0, %v800
  %v802 = vpop.f32.mrb[0].mxu0
  %803 = vmatprep.mubr.f32.mxu0 0.0
  %804 = vmatmul.mubr.f32.gmra.mrb[0].mxu0 %v692
  %v805 = vpop.f32.mrb[0].mxu0
  %v806 = vadd.f32 0.0, %v805
  %v807 = vpop.f32.mrb[0].mxu0
  %808 = vmatprep.mubr.f32.mxu0 0.0
  %809 = vmatmul.mubr.f32.gmra.mrb[0].mxu0 %v695
  %v810 = vpop.f32.mrb[0].mxu0
  %v811 = vadd.f32 0.0, %v810
  %v812 = vpop.f32.mrb[0].mxu0
  %813 = vmatprep.mubr.f32.mxu0 0.0
  %814 = vmatmul.mubr.f32.gmra.mrb[0].mxu0 %v698
  %v815 = vpop.f32.mrb[0].mxu0
  %v816 = vadd.f32 0.0, %v815
  %v817 = vpop.f32.mrb[0].mxu0
  %818 = vmatprep.mubr.f32.mxu0 0.0
  %819 = vmatmul.mubr.f32.gmra.mrb[0].mxu0 %v701
  %v820 = vpop.f32.mrb[0].mxu0
  %v821 = vadd.f32 0.0, %v820
  %v822 = vpop.f32.mrb[0].mxu0
  %823 = vdwg.mxu0
  %vm824 = vcmask 523264
  %v825 = vsel %vm824, %v617, -inf
  %826 = vmax.xlane.f32.xlu0 %v825
  %v827 = vpop.xlane.xlu0 %826
  %v828 = vsel %vm824, %v622, -inf
  %829 = vmax.xlane.f32.xlu0 %v828
  %v830 = vpop.xlane.xlu0 %829
  %v831 = vsel %vm824, %v627, -inf
  %832 = vmax.xlane.f32.xlu0 %v831
  %v833 = vpop.xlane.xlu0 %832
  %v834 = vsel %vm824, %v632, -inf
  %835 = vmax.xlane.f32.xlu0 %v834
  %v836 = vpop.xlane.xlu0 %835
  %v837 = vsel %vm824, %v637, -inf
  %838 = vmax.xlane.f32.xlu0 %v837
  %v839 = vpop.xlane.xlu0 %838
  %v840 = vsel %vm824, %v642, -inf
  %841 = vmax.xlane.f32.xlu0 %v840
  %v842 = vpop.xlane.xlu0 %841
  %v843 = vsel %vm824, %v647, -inf
  %844 = vmax.xlane.f32.xlu0 %v843
  %v845 = vpop.xlane.xlu0 %844
  %v846 = vsel %vm824, %v652, -inf
  %847 = vmax.xlane.f32.xlu0 %v846
  %v848 = vpop.xlane.xlu0 %847
  %v849 = vsel %vm824, %v786, -inf
  %850 = vmax.xlane.f32.xlu0 %v849
  %v851 = vpop.xlane.xlu0 %850
  %v852 = vsel %vm824, %v791, -inf
  %853 = vmax.xlane.f32.xlu0 %v852
  %v854 = vpop.xlane.xlu0 %853
  %v855 = vsel %vm824, %v796, -inf
  %856 = vmax.xlane.f32.xlu0 %v855
  %v857 = vpop.xlane.xlu0 %856
  %v858 = vsel %vm824, %v801, -inf
  %859 = vmax.xlane.f32.xlu0 %v858
  %v860 = vpop.xlane.xlu0 %859
  %v861 = vsel %vm824, %v806, -inf
  %862 = vmax.xlane.f32.xlu0 %v861
  %v863 = vpop.xlane.xlu0 %862
  %v864 = vsel %vm824, %v811, -inf
  %865 = vmax.xlane.f32.xlu0 %v864
  %v866 = vpop.xlane.xlu0 %865
  %v867 = vsel %vm824, %v816, -inf
  %868 = vmax.xlane.f32.xlu0 %v867
  %v869 = vpop.xlane.xlu0 %868
  %v870 = vsel %vm824, %v821, -inf
  %871 = vmax.xlane.f32.xlu0 %v870
  %v872 = vpop.xlane.xlu0 %871
  %v873 = vsub.f32 %v617, %v827
  %v874 = vsub.f32 %v622, %v830
  %v875 = vsub.f32 %v627, %v833
  %v876 = vsub.f32 %v632, %v836
  %v877 = vsub.f32 %v637, %v839
  %v878 = vsub.f32 %v642, %v842
  %v879 = vsub.f32 %v647, %v845
  %v880 = vsub.f32 %v652, %v848
  %v881 = vsub.f32 %v786, %v851
  %v882 = vsub.f32 %v791, %v854
  %v883 = vsub.f32 %v796, %v857
  %v884 = vsub.f32 %v801, %v860
  %v885 = vsub.f32 %v806, %v863
  %v886 = vsub.f32 %v811, %v866
  %v887 = vsub.f32 %v816, %v869
  %v888 = vsub.f32 %v821, %v872
  %v889 = vmul.f32 %v873, 1.442695
  %v890 = vpow.pop %v889
  %v891 = vmul.f32 %v874, 1.442695
  %v892 = vpow.pop %v891
  %v893 = vmul.f32 %v875, 1.442695
  %v894 = vpow.pop %v893
  %v895 = vmul.f32 %v876, 1.442695
  %v896 = vpow.pop %v895
  %v897 = vmul.f32 %v877, 1.442695
  %v898 = vpow.pop %v897
  %v899 = vmul.f32 %v878, 1.442695
  %v900 = vpow.pop %v899
  %v901 = vmul.f32 %v879, 1.442695
  %v902 = vpow.pop %v901
  %v903 = vmul.f32 %v880, 1.442695
  %v904 = vpow.pop %v903
  %v905 = vmul.f32 %v881, 1.442695
  %v906 = vpow.pop %v905
  %v907 = vmul.f32 %v882, 1.442695
  %v908 = vpow.pop %v907
  %v909 = vmul.f32 %v883, 1.442695
  %v910 = vpow.pop %v909
  %v911 = vmul.f32 %v884, 1.442695
  %v912 = vpow.pop %v911
  %v913 = vmul.f32 %v885, 1.442695
  %v914 = vpow.pop %v913
  %v915 = vmul.f32 %v886, 1.442695
  %v916 = vpow.pop %v915
  %v917 = vmul.f32 %v887, 1.442695
  %v918 = vpow.pop %v917
  %v919 = vmul.f32 %v888, 1.442695
  %v920 = vpow.pop %v919
  %v921 = vsel %vm824, %v890, 0.0
  %922 = vadd.xlane.f32.xlu0 %v921
  %v923 = vpop.xlane.xlu0 %922
  %v924 = vsel %vm824, %v892, 0.0
  %925 = vadd.xlane.f32.xlu0 %v924
  %v926 = vpop.xlane.xlu0 %925
  %v927 = vsel %vm824, %v894, 0.0
  %928 = vadd.xlane.f32.xlu0 %v927
  %v929 = vpop.xlane.xlu0 %928
  %v930 = vsel %vm824, %v896, 0.0
  %931 = vadd.xlane.f32.xlu0 %v930
  %v932 = vpop.xlane.xlu0 %931
  %v933 = vsel %vm824, %v898, 0.0
  %934 = vadd.xlane.f32.xlu0 %v933
  %v935 = vpop.xlane.xlu0 %934
  %v936 = vsel %vm824, %v900, 0.0
  %937 = vadd.xlane.f32.xlu0 %v936
  %v938 = vpop.xlane.xlu0 %937
  %v939 = vsel %vm824, %v902, 0.0
  %940 = vadd.xlane.f32.xlu0 %v939
  %v941 = vpop.xlane.xlu0 %940
  %v942 = vsel %vm824, %v904, 0.0
  %943 = vadd.xlane.f32.xlu0 %v942
  %v944 = vpop.xlane.xlu0 %943
  %v945 = vsel %vm824, %v906, 0.0
  %946 = vadd.xlane.f32.xlu0 %v945
  %v947 = vpop.xlane.xlu0 %946
  %v948 = vsel %vm824, %v908, 0.0
  %949 = vadd.xlane.f32.xlu0 %v948
  %v950 = vpop.xlane.xlu0 %949
  %v951 = vsel %vm824, %v910, 0.0
  %952 = vadd.xlane.f32.xlu0 %v951
  %v953 = vpop.xlane.xlu0 %952
  %v954 = vsel %vm824, %v912, 0.0
  %955 = vadd.xlane.f32.xlu0 %v954
  %v956 = vpop.xlane.xlu0 %955
  %v957 = vsel %vm824, %v914, 0.0
  %958 = vadd.xlane.f32.xlu0 %v957
  %v959 = vpop.xlane.xlu0 %958
  %v960 = vsel %vm824, %v916, 0.0
  %961 = vadd.xlane.f32.xlu0 %v960
  %v962 = vpop.xlane.xlu0 %961
  %v963 = vsel %vm824, %v918, 0.0
  %964 = vadd.xlane.f32.xlu0 %v963
  %v965 = vpop.xlane.xlu0 %964
  %v966 = vsel %vm824, %v920, 0.0
  %967 = vadd.xlane.f32.xlu0 %v966
  %v968 = vpop.xlane.xlu0 %967
  %v969 = vrcp.pop %v923
  %v970 = vrcp.pop %v926
  %v971 = vrcp.pop %v929
  %v972 = vrcp.pop %v932
  %v973 = vrcp.pop %v935
  %v974 = vrcp.pop %v938
  %v975 = vrcp.pop %v941
  %v976 = vrcp.pop %v944
  %v977 = vrcp.pop %v947
  %v978 = vrcp.pop %v950
  %v979 = vrcp.pop %v953
  %v980 = vrcp.pop %v956
  %v981 = vrcp.pop %v959
  %v982 = vrcp.pop %v962
  %v983 = vrcp.pop %v965
  %v984 = vrcp.pop %v968
  %v985 = vmul.f32 %v890, %v969
  %v986 = vmul.f32 %v892, %v970
  %v987 = vmul.f32 %v894, %v971
  %v988 = vmul.f32 %v896, %v972
  %v989 = vmul.f32 %v898, %v973
  %v990 = vmul.f32 %v900, %v974
  %v991 = vmul.f32 %v902, %v975
  %v992 = vmul.f32 %v904, %v976
  %v993 = vmul.f32 %v906, %v977
  %v994 = vmul.f32 %v908, %v978
  %v995 = vmul.f32 %v910, %v979
  %v996 = vmul.f32 %v912, %v980
  %v997 = vmul.f32 %v914, %v981
  %v998 = vmul.f32 %v916, %v982
  %v999 = vmul.f32 %v918, %v983
  %v1000 = vmul.f32 %v920, %v984
  %1001 = vrot.lane.b32.xlu0 %v391, 64
  %v1002 = vpop.permute.xlu0 %1001
  %1003 = vrot.lane.b32.xlu0 %v396, 64
  %v1004 = vpop.permute.xlu0 %1003
  %1005 = vrot.lane.b32.xlu0 %v401, 64
  %v1006 = vpop.permute.xlu0 %1005
  %1007 = vrot.lane.b32.xlu0 %v406, 64
  %v1008 = vpop.permute.xlu0 %1007
  %1009 = vrot.lane.b32.xlu0 %v411, 64
  %v1010 = vpop.permute.xlu0 %1009
  %1011 = vrot.lane.b32.xlu0 %v416, 64
  %v1012 = vpop.permute.xlu0 %1011
  %1013 = vrot.lane.b32.xlu0 %v421, 64
  %v1014 = vpop.permute.xlu0 %1013
  %1015 = vrot.lane.b32.xlu0 %v426, 64
  %v1016 = vpop.permute.xlu0 %1015
  %v1026 = vsel %vm824, %v985, 0
  %v1029 = vsel %vm824, %v986, 0
  %v1032 = vsel %vm824, %v987, 0
  %v1035 = vsel %vm824, %v988, 0
  %v1038 = vsel %vm824, %v989, 0
  %v1041 = vsel %vm824, %v990, 0
  %v1044 = vsel %vm824, %v991, 0
  %v1047 = vsel %vm824, %v992, 0
  %1049 = vmatprep.subr.mxu0 0.0
  %1050 = vmatpush1.msra.mxu0 %v1002
  %1051 = vmatprep.subr.mxu0 0.0
  %1052 = vmatpush1.msra.mxu0 %v1004
  %1053 = vmatprep.subr.mxu0 0.0
  %1054 = vmatpush1.msra.mxu0 %v1006
  %1055 = vmatprep.subr.mxu0 0.0
  %1056 = vmatpush1.msra.mxu0 %v1008
  %1057 = vmatprep.subr.mxu0 0.0
  %1058 = vmatpush1.msra.mxu0 %v1010
  %1059 = vmatprep.subr.mxu0 0.0
  %1060 = vmatpush1.msra.mxu0 %v1012
  %1061 = vmatprep.subr.mxu0 0.0
  %1062 = vmatpush1.msra.mxu0 %v1014
  %1063 = vmatprep.subr.mxu0 0.0
  %1064 = vmatpush1.msra.mxu0 %v1016
  %1065 = vmatprep.subr.mxu0 0.0
  %1066 = vmatpush1.msra.mxu0 0.0
  %1067 = vmatprep.subr.mxu0 0.0
  %1068 = vmatpush1.msra.mxu0 0.0
  %1069 = vmatprep.subr.mxu0 0.0
  %1070 = vmatpush1.msra.mxu0 0.0
  %1071 = vmatprep.subr.mxu0 0.0
  %1072 = vmatpush1.msra.mxu0 0.0
  %1073 = vmatprep.subr.mxu0 0.0
  %1074 = vmatpush1.msra.mxu0 0.0
  %1075 = vmatprep.subr.mxu0 0.0
  %1076 = vmatpush1.msra.mxu0 0.0
  %1077 = vmatprep.subr.mxu0 0.0
  %1078 = vmatpush1.msra.mxu0 0.0
  %1079 = vmatprep.subr.mxu0 0.0
  %1080 = vmatpush1.msra.mxu0 0.0
  %1081 = vmatprep.subr.mxu0 0.0
  %1082 = vmatpush1.msra.mxu0 0.0
  %1083 = vmatprep.subr.mxu0 0.0
  %1084 = vmatpush1.msra.mxu0 0.0
  %1085 = vmatprep.subr.mxu0 0.0
  %1086 = vmatpush1.msra.mxu0 0.0
  %1087 = vmatprep.subr.mxu0 0.0
  %1088 = vmatpush1.msra.mxu0 0.0
  %1089 = vmatprep.subr.mxu0 0.0
  %1090 = vmatpush1.msra.mxu0 0.0
  %1091 = vmatprep.subr.mxu0 0.0
  %1092 = vmatpush1.msra.mxu0 0.0
  %1093 = vmatprep.subr.mxu0 0.0
  %1094 = vmatpush1.msra.mxu0 0.0
  %1095 = vmatprep.subr.mxu0 0.0
  %1096 = vmatpush1.msra.mxu0 0.0
  %1097 = vmatprep.subr.mxu0 0.0
  %1098 = vmatpush1.msra.mxu0 0.0
  %1099 = vmatprep.subr.mxu0 0.0
  %1100 = vmatpush1.msra.mxu0 0.0
  %1101 = vmatprep.subr.mxu0 0.0
  %1102 = vmatpush1.msra.mxu0 0.0
  %1103 = vmatprep.subr.mxu0 0.0
  %1104 = vmatpush1.msra.mxu0 0.0
  %1105 = vmatprep.subr.mxu0 0.0
  %1106 = vmatpush1.msra.mxu0 0.0
  %1107 = vmatprep.subr.mxu0 0.0
  %1108 = vmatpush1.msra.mxu0 0.0
  %1109 = vmatprep.subr.mxu0 0.0
  %1110 = vmatpush1.msra.mxu0 0.0
  %1111 = vmatprep.subr.mxu0 0.0
  %1112 = vmatpush1.msra.mxu0 0.0
  %1113 = vmatprep.mubr.f32.mxu0 0.0
  %1114 = vmatmul.mubr.f32.gmra.mrb[0].mxu0 %v1026
  %v1115 = vpop.f32.mrb[0].mxu0
  %v1116 = vadd.f32 0.0, %v1115
  %v1117 = vpop.f32.mrb[0].mxu0
  %1118 = vmatprep.mubr.f32.mxu0 0.0
  %1119 = vmatmul.mubr.f32.gmra.mrb[0].mxu0 %v1029
  %v1120 = vpop.f32.mrb[0].mxu0
  %v1121 = vadd.f32 0.0, %v1120
  %v1122 = vpop.f32.mrb[0].mxu0
  %1123 = vmatprep.mubr.f32.mxu0 0.0
  %1124 = vmatmul.mubr.f32.gmra.mrb[0].mxu0 %v1032
  %v1125 = vpop.f32.mrb[0].mxu0
  %v1126 = vadd.f32 0.0, %v1125
  %v1127 = vpop.f32.mrb[0].mxu0
  %1128 = vmatprep.mubr.f32.mxu0 0.0
  %1129 = vmatmul.mubr.f32.gmra.mrb[0].mxu0 %v1035
  %v1130 = vpop.f32.mrb[0].mxu0
  %v1131 = vadd.f32 0.0, %v1130
  %v1132 = vpop.f32.mrb[0].mxu0
  %1133 = vmatprep.mubr.f32.mxu0 0.0
  %1134 = vmatmul.mubr.f32.gmra.mrb[0].mxu0 %v1038
  %v1135 = vpop.f32.mrb[0].mxu0
  %v1136 = vadd.f32 0.0, %v1135
  %v1137 = vpop.f32.mrb[0].mxu0
  %1138 = vmatprep.mubr.f32.mxu0 0.0
  %1139 = vmatmul.mubr.f32.gmra.mrb[0].mxu0 %v1041
  %v1140 = vpop.f32.mrb[0].mxu0
  %v1141 = vadd.f32 0.0, %v1140
  %v1142 = vpop.f32.mrb[0].mxu0
  %1143 = vmatprep.mubr.f32.mxu0 0.0
  %1144 = vmatmul.mubr.f32.gmra.mrb[0].mxu0 %v1044
  %v1145 = vpop.f32.mrb[0].mxu0
  %v1146 = vadd.f32 0.0, %v1145
  %v1147 = vpop.f32.mrb[0].mxu0
  %1148 = vmatprep.mubr.f32.mxu0 0.0
  %1149 = vmatmul.mubr.f32.gmra.mrb[0].mxu0 %v1047
  %v1150 = vpop.f32.mrb[0].mxu0
  %v1151 = vadd.f32 0.0, %v1150
  %v1152 = vpop.f32.mrb[0].mxu0
  %1153 = vdwg.mxu0
  %1154 = vrot.lane.b32.xlu0 %v431, 64
  %v1155 = vpop.permute.xlu0 %1154
  %1156 = vrot.lane.b32.xlu0 %v436, 64
  %v1157 = vpop.permute.xlu0 %1156
  %1158 = vrot.lane.b32.xlu0 %v441, 64
  %v1159 = vpop.permute.xlu0 %1158
  %1160 = vrot.lane.b32.xlu0 %v446, 64
  %v1161 = vpop.permute.xlu0 %1160
  %1162 = vrot.lane.b32.xlu0 %v451, 64
  %v1163 = vpop.permute.xlu0 %1162
  %1164 = vrot.lane.b32.xlu0 %v456, 64
  %v1165 = vpop.permute.xlu0 %1164
  %1166 = vrot.lane.b32.xlu0 %v461, 64
  %v1167 = vpop.permute.xlu0 %1166
  %1168 = vrot.lane.b32.xlu0 %v466, 64
  %v1169 = vpop.permute.xlu0 %1168
  %v1179 = vsel %vm824, %v993, 0
  %v1182 = vsel %vm824, %v994, 0
  %v1185 = vsel %vm824, %v995, 0
  %v1188 = vsel %vm824, %v996, 0
  %v1191 = vsel %vm824, %v997, 0
  %v1194 = vsel %vm824, %v998, 0
  %v1197 = vsel %vm824, %v999, 0
  %v1200 = vsel %vm824, %v1000, 0
  %1202 = vmatprep.subr.mxu0 0.0
  %1203 = vmatpush1.msra.mxu0 %v1155
  %1204 = vmatprep.subr.mxu0 0.0
  %1205 = vmatpush1.msra.mxu0 %v1157
  %1206 = vmatprep.subr.mxu0 0.0
  %1207 = vmatpush1.msra.mxu0 %v1159
  %1208 = vmatprep.subr.mxu0 0.0
  %1209 = vmatpush1.msra.mxu0 %v1161
  %1210 = vmatprep.subr.mxu0 0.0
  %1211 = vmatpush1.msra.mxu0 %v1163
  %1212 = vmatprep.subr.mxu0 0.0
  %1213 = vmatpush1.msra.mxu0 %v1165
  %1214 = vmatprep.subr.mxu0 0.0
  %1215 = vmatpush1.msra.mxu0 %v1167
  %1216 = vmatprep.subr.mxu0 0.0
  %1217 = vmatpush1.msra.mxu0 %v1169
  %1218 = vmatprep.subr.mxu0 0.0
  %1219 = vmatpush1.msra.mxu0 0.0
  %1220 = vmatprep.subr.mxu0 0.0
  %1221 = vmatpush1.msra.mxu0 0.0
  %1222 = vmatprep.subr.mxu0 0.0
  %1223 = vmatpush1.msra.mxu0 0.0
  %1224 = vmatprep.subr.mxu0 0.0
  %1225 = vmatpush1.msra.mxu0 0.0
  %1226 = vmatprep.subr.mxu0 0.0
  %1227 = vmatpush1.msra.mxu0 0.0
  %1228 = vmatprep.subr.mxu0 0.0
  %1229 = vmatpush1.msra.mxu0 0.0
  %1230 = vmatprep.subr.mxu0 0.0
  %1231 = vmatpush1.msra.mxu0 0.0
  %1232 = vmatprep.subr.mxu0 0.0
  %1233 = vmatpush1.msra.mxu0 0.0
  %1234 = vmatprep.subr.mxu0 0.0
  %1235 = vmatpush1.msra.mxu0 0.0
  %1236 = vmatprep.subr.mxu0 0.0
  %1237 = vmatpush1.msra.mxu0 0.0
  %1238 = vmatprep.subr.mxu0 0.0
  %1239 = vmatpush1.msra.mxu0 0.0
  %1240 = vmatprep.subr.mxu0 0.0
  %1241 = vmatpush1.msra.mxu0 0.0
  %1242 = vmatprep.subr.mxu0 0.0
  %1243 = vmatpush1.msra.mxu0 0.0
  %1244 = vmatprep.subr.mxu0 0.0
  %1245 = vmatpush1.msra.mxu0 0.0
  %1246 = vmatprep.subr.mxu0 0.0
  %1247 = vmatpush1.msra.mxu0 0.0
  %1248 = vmatprep.subr.mxu0 0.0
  %1249 = vmatpush1.msra.mxu0 0.0
  %1250 = vmatprep.subr.mxu0 0.0
  %1251 = vmatpush1.msra.mxu0 0.0
  %1252 = vmatprep.subr.mxu0 0.0
  %1253 = vmatpush1.msra.mxu0 0.0
  %1254 = vmatprep.subr.mxu0 0.0
  %1255 = vmatpush1.msra.mxu0 0.0
  %1256 = vmatprep.subr.mxu0 0.0
  %1257 = vmatpush1.msra.mxu0 0.0
  %1258 = vmatprep.subr.mxu0 0.0
  %1259 = vmatpush1.msra.mxu0 0.0
  %1260 = vmatprep.subr.mxu0 0.0
  %1261 = vmatpush1.msra.mxu0 0.0
  %1262 = vmatprep.subr.mxu0 0.0
  %1263 = vmatpush1.msra.mxu0 0.0
  %1264 = vmatprep.subr.mxu0 0.0
  %1265 = vmatpush1.msra.mxu0 0.0
  %1266 = vmatprep.mubr.f32.mxu0 0.0
  %1267 = vmatmul.mubr.f32.gmra.mrb[0].mxu0 %v1179
  %v1268 = vpop.f32.mrb[0].mxu0
  %v1269 = vadd.f32 0.0, %v1268
  %v1270 = vpop.f32.mrb[0].mxu0
  %1271 = vmatprep.mubr.f32.mxu0 0.0
  %1272 = vmatmul.mubr.f32.gmra.mrb[0].mxu0 %v1182
  %v1273 = vpop.f32.mrb[0].mxu0
  %v1274 = vadd.f32 0.0, %v1273
  %v1275 = vpop.f32.mrb[0].mxu0
  %1276 = vmatprep.mubr.f32.mxu0 0.0
  %1277 = vmatmul.mubr.f32.gmra.mrb[0].mxu0 %v1185
  %v1278 = vpop.f32.mrb[0].mxu0
  %v1279 = vadd.f32 0.0, %v1278
  %v1280 = vpop.f32.mrb[0].mxu0
  %1281 = vmatprep.mubr.f32.mxu0 0.0
  %1282 = vmatmul.mubr.f32.gmra.mrb[0].mxu0 %v1188
  %v1283 = vpop.f32.mrb[0].mxu0
  %v1284 = vadd.f32 0.0, %v1283
  %v1285 = vpop.f32.mrb[0].mxu0
  %1286 = vmatprep.mubr.f32.mxu0 0.0
  %1287 = vmatmul.mubr.f32.gmra.mrb[0].mxu0 %v1191
  %v1288 = vpop.f32.mrb[0].mxu0
  %v1289 = vadd.f32 0.0, %v1288
  %v1290 = vpop.f32.mrb[0].mxu0
  %1291 = vmatprep.mubr.f32.mxu0 0.0
  %1292 = vmatmul.mubr.f32.gmra.mrb[0].mxu0 %v1194
  %v1293 = vpop.f32.mrb[0].mxu0
  %v1294 = vadd.f32 0.0, %v1293
  %v1295 = vpop.f32.mrb[0].mxu0
  %1296 = vmatprep.mubr.f32.mxu0 0.0
  %1297 = vmatmul.mubr.f32.gmra.mrb[0].mxu0 %v1197
  %v1298 = vpop.f32.mrb[0].mxu0
  %v1299 = vadd.f32 0.0, %v1298
  %v1300 = vpop.f32.mrb[0].mxu0
  %1301 = vmatprep.mubr.f32.mxu0 0.0
  %1302 = vmatmul.mubr.f32.gmra.mrb[0].mxu0 %v1200
  %v1303 = vpop.f32.mrb[0].mxu0
  %v1304 = vadd.f32 0.0, %v1303
  %v1305 = vpop.f32.mrb[0].mxu0
  %1306 = vdwg.mxu0
  %v1307 = vld [vmem:[%s3] sm:$0xff]
  %1308 = vrot.lane.b32.xlu0 %v469, 120
  %v1309 = vpop.permute.xlu0 %1308
  %1310 = vrot.lane.b32.xlu0 %v470, 120
  %v1311 = vpop.permute.xlu0 %1310
  %1312 = vrot.lane.b32.xlu0 %v471, 120
  %v1313 = vpop.permute.xlu0 %1312
  %1314 = vrot.lane.b32.xlu0 %v472, 120
  %v1315 = vpop.permute.xlu0 %1314
  %1316 = vrot.lane.b32.xlu0 %v473, 120
  %v1317 = vpop.permute.xlu0 %1316
  %1318 = vrot.lane.b32.xlu0 %v474, 120
  %v1319 = vpop.permute.xlu0 %1318
  %1320 = vrot.lane.b32.xlu0 %v475, 120
  %v1321 = vpop.permute.xlu0 %1320
  %1322 = vrot.lane.b32.xlu0 %v476, 120
  %v1323 = vpop.permute.xlu0 %1322
  %1324 = vrot.lane.b32.xlu0 %v391, 88
  %v1325 = vpop.permute.xlu0 %1324
  %1326 = vrot.lane.b32.xlu0 %v396, 88
  %v1327 = vpop.permute.xlu0 %1326
  %1328 = vrot.lane.b32.xlu0 %v401, 88
  %v1329 = vpop.permute.xlu0 %1328
  %1330 = vrot.lane.b32.xlu0 %v406, 88
  %v1331 = vpop.permute.xlu0 %1330
  %1332 = vrot.lane.b32.xlu0 %v411, 88
  %v1333 = vpop.permute.xlu0 %1332
  %1334 = vrot.lane.b32.xlu0 %v416, 88
  %v1335 = vpop.permute.xlu0 %1334
  %1336 = vrot.lane.b32.xlu0 %v421, 88
  %v1337 = vpop.permute.xlu0 %1336
  %1338 = vrot.lane.b32.xlu0 %v426, 88
  %v1339 = vpop.permute.xlu0 %1338
  %v1340 = vsel %vm509, %v1309, 0
  %v1342 = vsel %vm509, %v1311, 0
  %v1344 = vsel %vm509, %v1313, 0
  %v1346 = vsel %vm509, %v1315, 0
  %v1348 = vsel %vm509, %v1317, 0
  %v1350 = vsel %vm509, %v1319, 0
  %v1352 = vsel %vm509, %v1321, 0
  %v1354 = vsel %vm509, %v1323, 0
  %v1356 = vsel %vm509, %v1325, 0
  %v1358 = vsel %vm509, %v1327, 0
  %v1360 = vsel %vm509, %v1329, 0
  %v1362 = vsel %vm509, %v1331, 0
  %v1364 = vsel %vm509, %v1333, 0
  %v1366 = vsel %vm509, %v1335, 0
  %v1368 = vsel %vm509, %v1337, 0
  %v1370 = vsel %vm509, %v1339, 0
  %1372 = vmatprep.subr.mxu0 0.0
  %1373 = vmatpush1.xpose.msra.mxu0 %v1356
  %1374 = vmatprep.subr.mxu0 0.0
  %1375 = vmatpush1.xpose.msra.mxu0 %v1358
  %1376 = vmatprep.subr.mxu0 0.0
  %1377 = vmatpush1.xpose.msra.mxu0 %v1360
  %1378 = vmatprep.subr.mxu0 0.0
  %1379 = vmatpush1.xpose.msra.mxu0 %v1362
  %1380 = vmatprep.subr.mxu0 0.0
  %1381 = vmatpush1.xpose.msra.mxu0 %v1364
  %1382 = vmatprep.subr.mxu0 0.0
  %1383 = vmatpush1.xpose.msra.mxu0 %v1366
  %1384 = vmatprep.subr.mxu0 0.0
  %1385 = vmatpush1.xpose.msra.mxu0 %v1368
  %1386 = vmatprep.subr.mxu0 0.0
  %1387 = vmatpush1.xpose.msra.mxu0 %v1370
  %1388 = vmatprep.subr.mxu0 0.0
  %1389 = vmatpush1.xpose.msra.mxu0 0.0
  %1390 = vmatprep.subr.mxu0 0.0
  %1391 = vmatpush1.xpose.msra.mxu0 0.0
  %1392 = vmatprep.subr.mxu0 0.0
  %1393 = vmatpush1.xpose.msra.mxu0 0.0
  %1394 = vmatprep.subr.mxu0 0.0
  %1395 = vmatpush1.xpose.msra.mxu0 0.0
  %1396 = vmatprep.subr.mxu0 0.0
  %1397 = vmatpush1.xpose.msra.mxu0 0.0
  %1398 = vmatprep.subr.mxu0 0.0
  %1399 = vmatpush1.xpose.msra.mxu0 0.0
  %1400 = vmatprep.subr.mxu0 0.0
  %1401 = vmatpush1.xpose.msra.mxu0 0.0
  %1402 = vmatprep.subr.mxu0 0.0
  %1403 = vmatpush1.xpose.msra.mxu0 0.0
  %1404 = vmatprep.subr.mxu0 0.0
  %1405 = vmatpush1.xpose.msra.mxu0 0.0
  %1406 = vmatprep.subr.mxu0 0.0
  %1407 = vmatpush1.xpose.msra.mxu0 0.0
  %1408 = vmatprep.subr.mxu0 0.0
  %1409 = vmatpush1.xpose.msra.mxu0 0.0
  %1410 = vmatprep.subr.mxu0 0.0
  %1411 = vmatpush1.xpose.msra.mxu0 0.0
  %1412 = vmatprep.subr.mxu0 0.0
  %1413 = vmatpush1.xpose.msra.mxu0 0.0
  %1414 = vmatprep.subr.mxu0 0.0
  %1415 = vmatpush1.xpose.msra.mxu0 0.0
  %1416 = vmatprep.subr.mxu0 0.0
  %1417 = vmatpush1.xpose.msra.mxu0 0.0
  %1418 = vmatprep.subr.mxu0 0.0
  %1419 = vmatpush1.xpose.msra.mxu0 0.0
  %1420 = vmatprep.subr.mxu0 0.0
  %1421 = vmatpush1.xpose.msra.mxu0 0.0
  %1422 = vmatprep.subr.mxu0 0.0
  %1423 = vmatpush1.xpose.msra.mxu0 0.0
  %1424 = vmatprep.subr.mxu0 0.0
  %1425 = vmatpush1.xpose.msra.mxu0 0.0
  %1426 = vmatprep.subr.mxu0 0.0
  %1427 = vmatpush1.xpose.msra.mxu0 0.0
  %1428 = vmatprep.subr.mxu0 0.0
  %1429 = vmatpush1.xpose.msra.mxu0 0.0
  %1430 = vmatprep.subr.mxu0 0.0
  %1431 = vmatpush1.xpose.msra.mxu0 0.0
  %1432 = vmatprep.subr.mxu0 0.0
  %1433 = vmatpush1.xpose.msra.mxu0 0.0
  %1434 = vmatprep.subr.mxu0 0.0
  %1435 = vmatpush1.xpose.msra.mxu0 0.0
  %1436 = vmatprep.mubr.f32.mxu0 0.0
  %1437 = vmatmul.mubr.f32.gmra.mrb[0].mxu0 %v1340
  %v1438 = vpop.f32.mrb[0].mxu0
  %v1439 = vadd.f32 0.0, %v1438
  %v1440 = vpop.f32.mrb[0].mxu0
  %1441 = vmatprep.mubr.f32.mxu0 0.0
  %1442 = vmatmul.mubr.f32.gmra.mrb[0].mxu0 %v1342
  %v1443 = vpop.f32.mrb[0].mxu0
  %v1444 = vadd.f32 0.0, %v1443
  %v1445 = vpop.f32.mrb[0].mxu0
  %1446 = vmatprep.mubr.f32.mxu0 0.0
  %1447 = vmatmul.mubr.f32.gmra.mrb[0].mxu0 %v1344
  %v1448 = vpop.f32.mrb[0].mxu0
  %v1449 = vadd.f32 0.0, %v1448
  %v1450 = vpop.f32.mrb[0].mxu0
  %1451 = vmatprep.mubr.f32.mxu0 0.0
  %1452 = vmatmul.mubr.f32.gmra.mrb[0].mxu0 %v1346
  %v1453 = vpop.f32.mrb[0].mxu0
  %v1454 = vadd.f32 0.0, %v1453
  %v1455 = vpop.f32.mrb[0].mxu0
  %1456 = vmatprep.mubr.f32.mxu0 0.0
  %1457 = vmatmul.mubr.f32.gmra.mrb[0].mxu0 %v1348
  %v1458 = vpop.f32.mrb[0].mxu0
  %v1459 = vadd.f32 0.0, %v1458
  %v1460 = vpop.f32.mrb[0].mxu0
  %1461 = vmatprep.mubr.f32.mxu0 0.0
  %1462 = vmatmul.mubr.f32.gmra.mrb[0].mxu0 %v1350
  %v1463 = vpop.f32.mrb[0].mxu0
  %v1464 = vadd.f32 0.0, %v1463
  %v1465 = vpop.f32.mrb[0].mxu0
  %1466 = vmatprep.mubr.f32.mxu0 0.0
  %1467 = vmatmul.mubr.f32.gmra.mrb[0].mxu0 %v1352
  %v1468 = vpop.f32.mrb[0].mxu0
  %v1469 = vadd.f32 0.0, %v1468
  %v1470 = vpop.f32.mrb[0].mxu0
  %1471 = vmatprep.mubr.f32.mxu0 0.0
  %1472 = vmatmul.mubr.f32.gmra.mrb[0].mxu0 %v1354
  %v1473 = vpop.f32.mrb[0].mxu0
  %v1474 = vadd.f32 0.0, %v1473
  %v1475 = vpop.f32.mrb[0].mxu0
  %1476 = vdwg.mxu0
  %1477 = vrot.lane.b32.xlu0 %v477, 120
  %v1478 = vpop.permute.xlu0 %1477
  %1479 = vrot.lane.b32.xlu0 %v478, 120
  %v1480 = vpop.permute.xlu0 %1479
  %1481 = vrot.lane.b32.xlu0 %v479, 120
  %v1482 = vpop.permute.xlu0 %1481
  %1483 = vrot.lane.b32.xlu0 %v480, 120
  %v1484 = vpop.permute.xlu0 %1483
  %1485 = vrot.lane.b32.xlu0 %v481, 120
  %v1486 = vpop.permute.xlu0 %1485
  %1487 = vrot.lane.b32.xlu0 %v482, 120
  %v1488 = vpop.permute.xlu0 %1487
  %1489 = vrot.lane.b32.xlu0 %v483, 120
  %v1490 = vpop.permute.xlu0 %1489
  %1491 = vrot.lane.b32.xlu0 %v484, 120
  %v1492 = vpop.permute.xlu0 %1491
  %1493 = vrot.lane.b32.xlu0 %v431, 88
  %v1494 = vpop.permute.xlu0 %1493
  %1495 = vrot.lane.b32.xlu0 %v436, 88
  %v1496 = vpop.permute.xlu0 %1495
  %1497 = vrot.lane.b32.xlu0 %v441, 88
  %v1498 = vpop.permute.xlu0 %1497
  %1499 = vrot.lane.b32.xlu0 %v446, 88
  %v1500 = vpop.permute.xlu0 %1499
  %1501 = vrot.lane.b32.xlu0 %v451, 88
  %v1502 = vpop.permute.xlu0 %1501
  %1503 = vrot.lane.b32.xlu0 %v456, 88
  %v1504 = vpop.permute.xlu0 %1503
  %1505 = vrot.lane.b32.xlu0 %v461, 88
  %v1506 = vpop.permute.xlu0 %1505
  %1507 = vrot.lane.b32.xlu0 %v466, 88
  %v1508 = vpop.permute.xlu0 %1507
  %v1509 = vsel %vm509, %v1478, 0
  %v1511 = vsel %vm509, %v1480, 0
  %v1513 = vsel %vm509, %v1482, 0
  %v1515 = vsel %vm509, %v1484, 0
  %v1517 = vsel %vm509, %v1486, 0
  %v1519 = vsel %vm509, %v1488, 0
  %v1521 = vsel %vm509, %v1490, 0
  %v1523 = vsel %vm509, %v1492, 0
  %v1525 = vsel %vm509, %v1494, 0
  %v1527 = vsel %vm509, %v1496, 0
  %v1529 = vsel %vm509, %v1498, 0
  %v1531 = vsel %vm509, %v1500, 0
  %v1533 = vsel %vm509, %v1502, 0
  %v1535 = vsel %vm509, %v1504, 0
  %v1537 = vsel %vm509, %v1506, 0
  %v1539 = vsel %vm509, %v1508, 0
  %1541 = vmatprep.subr.mxu0 0.0
  %1542 = vmatpush1.xpose.msra.mxu0 %v1525
  %1543 = vmatprep.subr.mxu0 0.0
  %1544 = vmatpush1.xpose.msra.mxu0 %v1527
  %1545 = vmatprep.subr.mxu0 0.0
  %1546 = vmatpush1.xpose.msra.mxu0 %v1529
  %1547 = vmatprep.subr.mxu0 0.0
  %1548 = vmatpush1.xpose.msra.mxu0 %v1531
  %1549 = vmatprep.subr.mxu0 0.0
  %1550 = vmatpush1.xpose.msra.mxu0 %v1533
  %1551 = vmatprep.subr.mxu0 0.0
  %1552 = vmatpush1.xpose.msra.mxu0 %v1535
  %1553 = vmatprep.subr.mxu0 0.0
  %1554 = vmatpush1.xpose.msra.mxu0 %v1537
  %1555 = vmatprep.subr.mxu0 0.0
  %1556 = vmatpush1.xpose.msra.mxu0 %v1539
  %1557 = vmatprep.subr.mxu0 0.0
  %1558 = vmatpush1.xpose.msra.mxu0 0.0
  %1559 = vmatprep.subr.mxu0 0.0
  %1560 = vmatpush1.xpose.msra.mxu0 0.0
  %1561 = vmatprep.subr.mxu0 0.0
  %1562 = vmatpush1.xpose.msra.mxu0 0.0
  %1563 = vmatprep.subr.mxu0 0.0
  %1564 = vmatpush1.xpose.msra.mxu0 0.0
  %1565 = vmatprep.subr.mxu0 0.0
  %1566 = vmatpush1.xpose.msra.mxu0 0.0
  %1567 = vmatprep.subr.mxu0 0.0
  %1568 = vmatpush1.xpose.msra.mxu0 0.0
  %1569 = vmatprep.subr.mxu0 0.0
  %1570 = vmatpush1.xpose.msra.mxu0 0.0
  %1571 = vmatprep.subr.mxu0 0.0
  %1572 = vmatpush1.xpose.msra.mxu0 0.0
  %1573 = vmatprep.subr.mxu0 0.0
  %1574 = vmatpush1.xpose.msra.mxu0 0.0
  %1575 = vmatprep.subr.mxu0 0.0
  %1576 = vmatpush1.xpose.msra.mxu0 0.0
  %1577 = vmatprep.subr.mxu0 0.0
  %1578 = vmatpush1.xpose.msra.mxu0 0.0
  %1579 = vmatprep.subr.mxu0 0.0
  %1580 = vmatpush1.xpose.msra.mxu0 0.0
  %1581 = vmatprep.subr.mxu0 0.0
  %1582 = vmatpush1.xpose.msra.mxu0 0.0
  %1583 = vmatprep.subr.mxu0 0.0
  %1584 = vmatpush1.xpose.msra.mxu0 0.0
  %1585 = vmatprep.subr.mxu0 0.0
  %1586 = vmatpush1.xpose.msra.mxu0 0.0
  %1587 = vmatprep.subr.mxu0 0.0
  %1588 = vmatpush1.xpose.msra.mxu0 0.0
  %1589 = vmatprep.subr.mxu0 0.0
  %1590 = vmatpush1.xpose.msra.mxu0 0.0
  %1591 = vmatprep.subr.mxu0 0.0
  %1592 = vmatpush1.xpose.msra.mxu0 0.0
  %1593 = vmatprep.subr.mxu0 0.0
  %1594 = vmatpush1.xpose.msra.mxu0 0.0
  %1595 = vmatprep.subr.mxu0 0.0
  %1596 = vmatpush1.xpose.msra.mxu0 0.0
  %1597 = vmatprep.subr.mxu0 0.0
  %1598 = vmatpush1.xpose.msra.mxu0 0.0
  %1599 = vmatprep.subr.mxu0 0.0
  %1600 = vmatpush1.xpose.msra.mxu0 0.0
  %1601 = vmatprep.subr.mxu0 0.0
  %1602 = vmatpush1.xpose.msra.mxu0 0.0
  %1603 = vmatprep.subr.mxu0 0.0
  %1604 = vmatpush1.xpose.msra.mxu0 0.0
  %1605 = vmatprep.mubr.f32.mxu0 0.0
  %1606 = vmatmul.mubr.f32.gmra.mrb[0].mxu0 %v1509
  %v1607 = vpop.f32.mrb[0].mxu0
  %v1608 = vadd.f32 0.0, %v1607
  %v1609 = vpop.f32.mrb[0].mxu0
  %1610 = vmatprep.mubr.f32.mxu0 0.0
  %1611 = vmatmul.mubr.f32.gmra.mrb[0].mxu0 %v1511
  %v1612 = vpop.f32.mrb[0].mxu0
  %v1613 = vadd.f32 0.0, %v1612
  %v1614 = vpop.f32.mrb[0].mxu0
  %1615 = vmatprep.mubr.f32.mxu0 0.0
  %1616 = vmatmul.mubr.f32.gmra.mrb[0].mxu0 %v1513
  %v1617 = vpop.f32.mrb[0].mxu0
  %v1618 = vadd.f32 0.0, %v1617
  %v1619 = vpop.f32.mrb[0].mxu0
  %1620 = vmatprep.mubr.f32.mxu0 0.0
  %1621 = vmatmul.mubr.f32.gmra.mrb[0].mxu0 %v1515
  %v1622 = vpop.f32.mrb[0].mxu0
  %v1623 = vadd.f32 0.0, %v1622
  %v1624 = vpop.f32.mrb[0].mxu0
  %1625 = vmatprep.mubr.f32.mxu0 0.0
  %1626 = vmatmul.mubr.f32.gmra.mrb[0].mxu0 %v1517
  %v1627 = vpop.f32.mrb[0].mxu0
  %v1628 = vadd.f32 0.0, %v1627
  %v1629 = vpop.f32.mrb[0].mxu0
  %1630 = vmatprep.mubr.f32.mxu0 0.0
  %1631 = vmatmul.mubr.f32.gmra.mrb[0].mxu0 %v1519
  %v1632 = vpop.f32.mrb[0].mxu0
  %v1633 = vadd.f32 0.0, %v1632
  %v1634 = vpop.f32.mrb[0].mxu0
  %1635 = vmatprep.mubr.f32.mxu0 0.0
  %1636 = vmatmul.mubr.f32.gmra.mrb[0].mxu0 %v1521
  %v1637 = vpop.f32.mrb[0].mxu0
  %v1638 = vadd.f32 0.0, %v1637
  %v1639 = vpop.f32.mrb[0].mxu0
  %1640 = vmatprep.mubr.f32.mxu0 0.0
  %1641 = vmatmul.mubr.f32.gmra.mrb[0].mxu0 %v1523
  %v1642 = vpop.f32.mrb[0].mxu0
  %v1643 = vadd.f32 0.0, %v1642
  %v1644 = vpop.f32.mrb[0].mxu0
  %1645 = vdwg.mxu0
  %v1646 = vsel %vm824, %v1439, -inf
  %1647 = vmax.xlane.f32.xlu0 %v1646
  %v1648 = vpop.xlane.xlu0 %1647
  %v1649 = vsel %vm824, %v1444, -inf
  %1650 = vmax.xlane.f32.xlu0 %v1649
  %v1651 = vpop.xlane.xlu0 %1650
  %v1652 = vsel %vm824, %v1449, -inf
  %1653 = vmax.xlane.f32.xlu0 %v1652
  %v1654 = vpop.xlane.xlu0 %1653
  %v1655 = vsel %vm824, %v1454, -inf
  %1656 = vmax.xlane.f32.xlu0 %v1655
  %v1657 = vpop.xlane.xlu0 %1656
  %v1658 = vsel %vm824, %v1459, -inf
  %1659 = vmax.xlane.f32.xlu0 %v1658
  %v1660 = vpop.xlane.xlu0 %1659
  %v1661 = vsel %vm824, %v1464, -inf
  %1662 = vmax.xlane.f32.xlu0 %v1661
  %v1663 = vpop.xlane.xlu0 %1662
  %v1664 = vsel %vm824, %v1469, -inf
  %1665 = vmax.xlane.f32.xlu0 %v1664
  %v1666 = vpop.xlane.xlu0 %1665
  %v1667 = vsel %vm824, %v1474, -inf
  %1668 = vmax.xlane.f32.xlu0 %v1667
  %v1669 = vpop.xlane.xlu0 %1668
  %v1670 = vsel %vm824, %v1608, -inf
  %1671 = vmax.xlane.f32.xlu0 %v1670
  %v1672 = vpop.xlane.xlu0 %1671
  %v1673 = vsel %vm824, %v1613, -inf
  %1674 = vmax.xlane.f32.xlu0 %v1673
  %v1675 = vpop.xlane.xlu0 %1674
  %v1676 = vsel %vm824, %v1618, -inf
  %1677 = vmax.xlane.f32.xlu0 %v1676
  %v1678 = vpop.xlane.xlu0 %1677
  %v1679 = vsel %vm824, %v1623, -inf
  %1680 = vmax.xlane.f32.xlu0 %v1679
  %v1681 = vpop.xlane.xlu0 %1680
  %v1682 = vsel %vm824, %v1628, -inf
  %1683 = vmax.xlane.f32.xlu0 %v1682
  %v1684 = vpop.xlane.xlu0 %1683
  %v1685 = vsel %vm824, %v1633, -inf
  %1686 = vmax.xlane.f32.xlu0 %v1685
  %v1687 = vpop.xlane.xlu0 %1686
  %v1688 = vsel %vm824, %v1638, -inf
  %1689 = vmax.xlane.f32.xlu0 %v1688
  %v1690 = vpop.xlane.xlu0 %1689
  %v1691 = vsel %vm824, %v1643, -inf
  %1692 = vmax.xlane.f32.xlu0 %v1691
  %v1693 = vpop.xlane.xlu0 %1692
  %v1694 = vsub.f32 %v1439, %v1648
  %v1695 = vsub.f32 %v1444, %v1651
  %v1696 = vsub.f32 %v1449, %v1654
  %v1697 = vsub.f32 %v1454, %v1657
  %v1698 = vsub.f32 %v1459, %v1660
  %v1699 = vsub.f32 %v1464, %v1663
  %v1700 = vsub.f32 %v1469, %v1666
  %v1701 = vsub.f32 %v1474, %v1669
  %v1702 = vsub.f32 %v1608, %v1672
  %v1703 = vsub.f32 %v1613, %v1675
  %v1704 = vsub.f32 %v1618, %v1678
  %v1705 = vsub.f32 %v1623, %v1681
  %v1706 = vsub.f32 %v1628, %v1684
  %v1707 = vsub.f32 %v1633, %v1687
  %v1708 = vsub.f32 %v1638, %v1690
  %v1709 = vsub.f32 %v1643, %v1693
  %v1710 = vmul.f32 %v1694, 1.442695
  %v1711 = vpow.pop %v1710
  %v1712 = vmul.f32 %v1695, 1.442695
  %v1713 = vpow.pop %v1712
  %v1714 = vmul.f32 %v1696, 1.442695
  %v1715 = vpow.pop %v1714
  %v1716 = vmul.f32 %v1697, 1.442695
  %v1717 = vpow.pop %v1716
  %v1718 = vmul.f32 %v1698, 1.442695
  %v1719 = vpow.pop %v1718
  %v1720 = vmul.f32 %v1699, 1.442695
  %v1721 = vpow.pop %v1720
  %v1722 = vmul.f32 %v1700, 1.442695
  %v1723 = vpow.pop %v1722
  %v1724 = vmul.f32 %v1701, 1.442695
  %v1725 = vpow.pop %v1724
  %v1726 = vmul.f32 %v1702, 1.442695
  %v1727 = vpow.pop %v1726
  %v1728 = vmul.f32 %v1703, 1.442695
  %v1729 = vpow.pop %v1728
  %v1730 = vmul.f32 %v1704, 1.442695
  %v1731 = vpow.pop %v1730
  %v1732 = vmul.f32 %v1705, 1.442695
  %v1733 = vpow.pop %v1732
  %v1734 = vmul.f32 %v1706, 1.442695
  %v1735 = vpow.pop %v1734
  %v1736 = vmul.f32 %v1707, 1.442695
  %v1737 = vpow.pop %v1736
  %v1738 = vmul.f32 %v1708, 1.442695
  %v1739 = vpow.pop %v1738
  %v1740 = vmul.f32 %v1709, 1.442695
  %v1741 = vpow.pop %v1740
  %v1742 = vsel %vm824, %v1711, 0.0
  %1743 = vadd.xlane.f32.xlu0 %v1742
  %v1744 = vpop.xlane.xlu0 %1743
  %v1745 = vsel %vm824, %v1713, 0.0
  %1746 = vadd.xlane.f32.xlu0 %v1745
  %v1747 = vpop.xlane.xlu0 %1746
  %v1748 = vsel %vm824, %v1715, 0.0
  %1749 = vadd.xlane.f32.xlu0 %v1748
  %v1750 = vpop.xlane.xlu0 %1749
  %v1751 = vsel %vm824, %v1717, 0.0
  %1752 = vadd.xlane.f32.xlu0 %v1751
  %v1753 = vpop.xlane.xlu0 %1752
  %v1754 = vsel %vm824, %v1719, 0.0
  %1755 = vadd.xlane.f32.xlu0 %v1754
  %v1756 = vpop.xlane.xlu0 %1755
  %v1757 = vsel %vm824, %v1721, 0.0
  %1758 = vadd.xlane.f32.xlu0 %v1757
  %v1759 = vpop.xlane.xlu0 %1758
  %v1760 = vsel %vm824, %v1723, 0.0
  %1761 = vadd.xlane.f32.xlu0 %v1760
  %v1762 = vpop.xlane.xlu0 %1761
  %v1763 = vsel %vm824, %v1725, 0.0
  %1764 = vadd.xlane.f32.xlu0 %v1763
  %v1765 = vpop.xlane.xlu0 %1764
  %v1766 = vsel %vm824, %v1727, 0.0
  %1767 = vadd.xlane.f32.xlu0 %v1766
  %v1768 = vpop.xlane.xlu0 %1767
  %v1769 = vsel %vm824, %v1729, 0.0
  %1770 = vadd.xlane.f32.xlu0 %v1769
  %v1771 = vpop.xlane.xlu0 %1770
  %v1772 = vsel %vm824, %v1731, 0.0
  %1773 = vadd.xlane.f32.xlu0 %v1772
  %v1774 = vpop.xlane.xlu0 %1773
  %v1775 = vsel %vm824, %v1733, 0.0
  %1776 = vadd.xlane.f32.xlu0 %v1775
  %v1777 = vpop.xlane.xlu0 %1776
  %v1778 = vsel %vm824, %v1735, 0.0
  %1779 = vadd.xlane.f32.xlu0 %v1778
  %v1780 = vpop.xlane.xlu0 %1779
  %v1781 = vsel %vm824, %v1737, 0.0
  %1782 = vadd.xlane.f32.xlu0 %v1781
  %v1783 = vpop.xlane.xlu0 %1782
  %v1784 = vsel %vm824, %v1739, 0.0
  %1785 = vadd.xlane.f32.xlu0 %v1784
  %v1786 = vpop.xlane.xlu0 %1785
  %v1787 = vsel %vm824, %v1741, 0.0
  %1788 = vadd.xlane.f32.xlu0 %v1787
  %v1789 = vpop.xlane.xlu0 %1788
  %v1790 = vrcp.pop %v1744
  %v1791 = vrcp.pop %v1747
  %v1792 = vrcp.pop %v1750
  %v1793 = vrcp.pop %v1753
  %v1794 = vrcp.pop %v1756
  %v1795 = vrcp.pop %v1759
  %v1796 = vrcp.pop %v1762
  %v1797 = vrcp.pop %v1765
  %v1798 = vrcp.pop %v1768
  %v1799 = vrcp.pop %v1771
  %v1800 = vrcp.pop %v1774
  %v1801 = vrcp.pop %v1777
  %v1802 = vrcp.pop %v1780
  %v1803 = vrcp.pop %v1783
  %v1804 = vrcp.pop %v1786
  %v1805 = vrcp.pop %v1789
  %v1806 = vmul.f32 %v1711, %v1790
  %v1807 = vmul.f32 %v1713, %v1791
  %v1808 = vmul.f32 %v1715, %v1792
  %v1809 = vmul.f32 %v1717, %v1793
  %v1810 = vmul.f32 %v1719, %v1794
  %v1811 = vmul.f32 %v1721, %v1795
  %v1812 = vmul.f32 %v1723, %v1796
  %v1813 = vmul.f32 %v1725, %v1797
  %v1814 = vmul.f32 %v1727, %v1798
  %v1815 = vmul.f32 %v1729, %v1799
  %v1816 = vmul.f32 %v1731, %v1800
  %v1817 = vmul.f32 %v1733, %v1801
  %v1818 = vmul.f32 %v1735, %v1802
  %v1819 = vmul.f32 %v1737, %v1803
  %v1820 = vmul.f32 %v1739, %v1804
  %v1821 = vmul.f32 %v1741, %v1805
  %1822 = vrot.lane.b32.xlu0 %v391, 56
  %v1823 = vpop.permute.xlu0 %1822
  %1824 = vrot.lane.b32.xlu0 %v396, 56
  %v1825 = vpop.permute.xlu0 %1824
  %1826 = vrot.lane.b32.xlu0 %v401, 56
  %v1827 = vpop.permute.xlu0 %1826
  %1828 = vrot.lane.b32.xlu0 %v406, 56
  %v1829 = vpop.permute.xlu0 %1828
  %1830 = vrot.lane.b32.xlu0 %v411, 56
  %v1831 = vpop.permute.xlu0 %1830
  %1832 = vrot.lane.b32.xlu0 %v416, 56
  %v1833 = vpop.permute.xlu0 %1832
  %1834 = vrot.lane.b32.xlu0 %v421, 56
  %v1835 = vpop.permute.xlu0 %1834
  %1836 = vrot.lane.b32.xlu0 %v426, 56
  %v1837 = vpop.permute.xlu0 %1836
  %v1847 = vsel %vm824, %v1806, 0
  %v1850 = vsel %vm824, %v1807, 0
  %v1853 = vsel %vm824, %v1808, 0
  %v1856 = vsel %vm824, %v1809, 0
  %v1859 = vsel %vm824, %v1810, 0
  %v1862 = vsel %vm824, %v1811, 0
  %v1865 = vsel %vm824, %v1812, 0
  %v1868 = vsel %vm824, %v1813, 0
  %1870 = vmatprep.subr.mxu0 0.0
  %1871 = vmatpush1.msra.mxu0 %v1823
  %1872 = vmatprep.subr.mxu0 0.0
  %1873 = vmatpush1.msra.mxu0 %v1825
  %1874 = vmatprep.subr.mxu0 0.0
  %1875 = vmatpush1.msra.mxu0 %v1827
  %1876 = vmatprep.subr.mxu0 0.0
  %1877 = vmatpush1.msra.mxu0 %v1829
  %1878 = vmatprep.subr.mxu0 0.0
  %1879 = vmatpush1.msra.mxu0 %v1831
  %1880 = vmatprep.subr.mxu0 0.0
  %1881 = vmatpush1.msra.mxu0 %v1833
  %1882 = vmatprep.subr.mxu0 0.0
  %1883 = vmatpush1.msra.mxu0 %v1835
  %1884 = vmatprep.subr.mxu0 0.0
  %1885 = vmatpush1.msra.mxu0 %v1837
  %1886 = vmatprep.subr.mxu0 0.0
  %1887 = vmatpush1.msra.mxu0 0.0
  %1888 = vmatprep.subr.mxu0 0.0
  %1889 = vmatpush1.msra.mxu0 0.0
  %1890 = vmatprep.subr.mxu0 0.0
  %1891 = vmatpush1.msra.mxu0 0.0
  %1892 = vmatprep.subr.mxu0 0.0
  %1893 = vmatpush1.msra.mxu0 0.0
  %1894 = vmatprep.subr.mxu0 0.0
  %1895 = vmatpush1.msra.mxu0 0.0
  %1896 = vmatprep.subr.mxu0 0.0
  %1897 = vmatpush1.msra.mxu0 0.0
  %1898 = vmatprep.subr.mxu0 0.0
  %1899 = vmatpush1.msra.mxu0 0.0
  %1900 = vmatprep.subr.mxu0 0.0
  %1901 = vmatpush1.msra.mxu0 0.0
  %1902 = vmatprep.subr.mxu0 0.0
  %1903 = vmatpush1.msra.mxu0 0.0
  %1904 = vmatprep.subr.mxu0 0.0
  %1905 = vmatpush1.msra.mxu0 0.0
  %1906 = vmatprep.subr.mxu0 0.0
  %1907 = vmatpush1.msra.mxu0 0.0
  %1908 = vmatprep.subr.mxu0 0.0
  %1909 = vmatpush1.msra.mxu0 0.0
  %1910 = vmatprep.subr.mxu0 0.0
  %1911 = vmatpush1.msra.mxu0 0.0
  %1912 = vmatprep.subr.mxu0 0.0
  %1913 = vmatpush1.msra.mxu0 0.0
  %1914 = vmatprep.subr.mxu0 0.0
  %1915 = vmatpush1.msra.mxu0 0.0
  %1916 = vmatprep.subr.mxu0 0.0
  %1917 = vmatpush1.msra.mxu0 0.0
  %1918 = vmatprep.subr.mxu0 0.0
  %1919 = vmatpush1.msra.mxu0 0.0
  %1920 = vmatprep.subr.mxu0 0.0
  %1921 = vmatpush1.msra.mxu0 0.0
  %1922 = vmatprep.subr.mxu0 0.0
  %1923 = vmatpush1.msra.mxu0 0.0
  %1924 = vmatprep.subr.mxu0 0.0
  %1925 = vmatpush1.msra.mxu0 0.0
  %1926 = vmatprep.subr.mxu0 0.0
  %1927 = vmatpush1.msra.mxu0 0.0
  %1928 = vmatprep.subr.mxu0 0.0
  %1929 = vmatpush1.msra.mxu0 0.0
  %1930 = vmatprep.subr.mxu0 0.0
  %1931 = vmatpush1.msra.mxu0 0.0
  %1932 = vmatprep.subr.mxu0 0.0
  %1933 = vmatpush1.msra.mxu0 0.0
  %1934 = vmatprep.mubr.f32.mxu0 0.0
  %1935 = vmatmul.mubr.f32.gmra.mrb[0].mxu0 %v1847
  %v1936 = vpop.f32.mrb[0].mxu0
  %v1937 = vadd.f32 0.0, %v1936
  %v1938 = vpop.f32.mrb[0].mxu0
  %1939 = vmatprep.mubr.f32.mxu0 0.0
  %1940 = vmatmul.mubr.f32.gmra.mrb[0].mxu0 %v1850
  %v1941 = vpop.f32.mrb[0].mxu0
  %v1942 = vadd.f32 0.0, %v1941
  %v1943 = vpop.f32.mrb[0].mxu0
  %1944 = vmatprep.mubr.f32.mxu0 0.0
  %1945 = vmatmul.mubr.f32.gmra.mrb[0].mxu0 %v1853
  %v1946 = vpop.f32.mrb[0].mxu0
  %v1947 = vadd.f32 0.0, %v1946
  %v1948 = vpop.f32.mrb[0].mxu0
  %1949 = vmatprep.mubr.f32.mxu0 0.0
  %1950 = vmatmul.mubr.f32.gmra.mrb[0].mxu0 %v1856
  %v1951 = vpop.f32.mrb[0].mxu0
  %v1952 = vadd.f32 0.0, %v1951
  %v1953 = vpop.f32.mrb[0].mxu0
  %1954 = vmatprep.mubr.f32.mxu0 0.0
  %1955 = vmatmul.mubr.f32.gmra.mrb[0].mxu0 %v1859
  %v1956 = vpop.f32.mrb[0].mxu0
  %v1957 = vadd.f32 0.0, %v1956
  %v1958 = vpop.f32.mrb[0].mxu0
  %1959 = vmatprep.mubr.f32.mxu0 0.0
  %1960 = vmatmul.mubr.f32.gmra.mrb[0].mxu0 %v1862
  %v1961 = vpop.f32.mrb[0].mxu0
  %v1962 = vadd.f32 0.0, %v1961
  %v1963 = vpop.f32.mrb[0].mxu0
  %1964 = vmatprep.mubr.f32.mxu0 0.0
  %1965 = vmatmul.mubr.f32.gmra.mrb[0].mxu0 %v1865
  %v1966 = vpop.f32.mrb[0].mxu0
  %v1967 = vadd.f32 0.0, %v1966
  %v1968 = vpop.f32.mrb[0].mxu0
  %1969 = vmatprep.mubr.f32.mxu0 0.0
  %1970 = vmatmul.mubr.f32.gmra.mrb[0].mxu0 %v1868
  %v1971 = vpop.f32.mrb[0].mxu0
  %v1972 = vadd.f32 0.0, %v1971
  %v1973 = vpop.f32.mrb[0].mxu0
  %1974 = vdwg.mxu0
  %1975 = vrot.lane.b32.xlu0 %v431, 56
  %v1976 = vpop.permute.xlu0 %1975
  %1977 = vrot.lane.b32.xlu0 %v436, 56
  %v1978 = vpop.permute.xlu0 %1977
  %1979 = vrot.lane.b32.xlu0 %v441, 56
  %v1980 = vpop.permute.xlu0 %1979
  %1981 = vrot.lane.b32.xlu0 %v446, 56
  %v1982 = vpop.permute.xlu0 %1981
  %1983 = vrot.lane.b32.xlu0 %v451, 56
  %v1984 = vpop.permute.xlu0 %1983
  %1985 = vrot.lane.b32.xlu0 %v456, 56
  %v1986 = vpop.permute.xlu0 %1985
  %1987 = vrot.lane.b32.xlu0 %v461, 56
  %v1988 = vpop.permute.xlu0 %1987
  %1989 = vrot.lane.b32.xlu0 %v466, 56
  %v1990 = vpop.permute.xlu0 %1989
  %v2000 = vsel %vm824, %v1814, 0
  %v2003 = vsel %vm824, %v1815, 0
  %v2006 = vsel %vm824, %v1816, 0
  %v2009 = vsel %vm824, %v1817, 0
  %v2012 = vsel %vm824, %v1818, 0
  %v2015 = vsel %vm824, %v1819, 0
  %v2018 = vsel %vm824, %v1820, 0
  %v2021 = vsel %vm824, %v1821, 0
  %2023 = vmatprep.subr.mxu0 0.0
  %2024 = vmatpush1.msra.mxu0 %v1976
  %2025 = vmatprep.subr.mxu0 0.0
  %2026 = vmatpush1.msra.mxu0 %v1978
  %2027 = vmatprep.subr.mxu0 0.0
  %2028 = vmatpush1.msra.mxu0 %v1980
  %2029 = vmatprep.subr.mxu0 0.0
  %2030 = vmatpush1.msra.mxu0 %v1982
  %2031 = vmatprep.subr.mxu0 0.0
  %2032 = vmatpush1.msra.mxu0 %v1984
  %2033 = vmatprep.subr.mxu0 0.0
  %2034 = vmatpush1.msra.mxu0 %v1986
  %2035 = vmatprep.subr.mxu0 0.0
  %2036 = vmatpush1.msra.mxu0 %v1988
  %2037 = vmatprep.subr.mxu0 0.0
  %2038 = vmatpush1.msra.mxu0 %v1990
  %2039 = vmatprep.subr.mxu0 0.0
  %2040 = vmatpush1.msra.mxu0 0.0
  %2041 = vmatprep.subr.mxu0 0.0
  %2042 = vmatpush1.msra.mxu0 0.0
  %2043 = vmatprep.subr.mxu0 0.0
  %2044 = vmatpush1.msra.mxu0 0.0
  %2045 = vmatprep.subr.mxu0 0.0
  %2046 = vmatpush1.msra.mxu0 0.0
  %2047 = vmatprep.subr.mxu0 0.0
  %2048 = vmatpush1.msra.mxu0 0.0
  %2049 = vmatprep.subr.mxu0 0.0
  %2050 = vmatpush1.msra.mxu0 0.0
  %2051 = vmatprep.subr.mxu0 0.0
  %2052 = vmatpush1.msra.mxu0 0.0
  %2053 = vmatprep.subr.mxu0 0.0
  %2054 = vmatpush1.msra.mxu0 0.0
  %2055 = vmatprep.subr.mxu0 0.0
  %2056 = vmatpush1.msra.mxu0 0.0
  %2057 = vmatprep.subr.mxu0 0.0
  %2058 = vmatpush1.msra.mxu0 0.0
  %2059 = vmatprep.subr.mxu0 0.0
  %2060 = vmatpush1.msra.mxu0 0.0
  %2061 = vmatprep.subr.mxu0 0.0
  %2062 = vmatpush1.msra.mxu0 0.0
  %2063 = vmatprep.subr.mxu0 0.0
  %2064 = vmatpush1.msra.mxu0 0.0
  %2065 = vmatprep.subr.mxu0 0.0
  %2066 = vmatpush1.msra.mxu0 0.0
  %2067 = vmatprep.subr.mxu0 0.0
  %2068 = vmatpush1.msra.mxu0 0.0
  %2069 = vmatprep.subr.mxu0 0.0
  %2070 = vmatpush1.msra.mxu0 0.0
  %2071 = vmatprep.subr.mxu0 0.0
  %2072 = vmatpush1.msra.mxu0 0.0
  %2073 = vmatprep.subr.mxu0 0.0
  %2074 = vmatpush1.msra.mxu0 0.0
  %2075 = vmatprep.subr.mxu0 0.0
  %2076 = vmatpush1.msra.mxu0 0.0
  %2077 = vmatprep.subr.mxu0 0.0
  %2078 = vmatpush1.msra.mxu0 0.0
  %2079 = vmatprep.subr.mxu0 0.0
  %2080 = vmatpush1.msra.mxu0 0.0
  %2081 = vmatprep.subr.mxu0 0.0
  %2082 = vmatpush1.msra.mxu0 0.0
  %2083 = vmatprep.subr.mxu0 0.0
  %2084 = vmatpush1.msra.mxu0 0.0
  %2085 = vmatprep.subr.mxu0 0.0
  %2086 = vmatpush1.msra.mxu0 0.0
  %2087 = vmatprep.mubr.f32.mxu0 0.0
  %2088 = vmatmul.mubr.f32.gmra.mrb[0].mxu0 %v2000
  %v2089 = vpop.f32.mrb[0].mxu0
  %v2090 = vadd.f32 0.0, %v2089
  %v2091 = vpop.f32.mrb[0].mxu0
  %2092 = vmatprep.mubr.f32.mxu0 0.0
  %2093 = vmatmul.mubr.f32.gmra.mrb[0].mxu0 %v2003
  %v2094 = vpop.f32.mrb[0].mxu0
  %v2095 = vadd.f32 0.0, %v2094
  %v2096 = vpop.f32.mrb[0].mxu0
  %2097 = vmatprep.mubr.f32.mxu0 0.0
  %2098 = vmatmul.mubr.f32.gmra.mrb[0].mxu0 %v2006
  %v2099 = vpop.f32.mrb[0].mxu0
  %v2100 = vadd.f32 0.0, %v2099
  %v2101 = vpop.f32.mrb[0].mxu0
  %2102 = vmatprep.mubr.f32.mxu0 0.0
  %2103 = vmatmul.mubr.f32.gmra.mrb[0].mxu0 %v2009
  %v2104 = vpop.f32.mrb[0].mxu0
  %v2105 = vadd.f32 0.0, %v2104
  %v2106 = vpop.f32.mrb[0].mxu0
  %2107 = vmatprep.mubr.f32.mxu0 0.0
  %2108 = vmatmul.mubr.f32.gmra.mrb[0].mxu0 %v2012
  %v2109 = vpop.f32.mrb[0].mxu0
  %v2110 = vadd.f32 0.0, %v2109
  %v2111 = vpop.f32.mrb[0].mxu0
  %2112 = vmatprep.mubr.f32.mxu0 0.0
  %2113 = vmatmul.mubr.f32.gmra.mrb[0].mxu0 %v2015
  %v2114 = vpop.f32.mrb[0].mxu0
  %v2115 = vadd.f32 0.0, %v2114
  %v2116 = vpop.f32.mrb[0].mxu0
  %2117 = vmatprep.mubr.f32.mxu0 0.0
  %2118 = vmatmul.mubr.f32.gmra.mrb[0].mxu0 %v2018
  %v2119 = vpop.f32.mrb[0].mxu0
  %v2120 = vadd.f32 0.0, %v2119
  %v2121 = vpop.f32.mrb[0].mxu0
  %2122 = vmatprep.mubr.f32.mxu0 0.0
  %2123 = vmatmul.mubr.f32.gmra.mrb[0].mxu0 %v2021
  %v2124 = vpop.f32.mrb[0].mxu0
  %v2125 = vadd.f32 0.0, %v2124
  %v2126 = vpop.f32.mrb[0].mxu0
  %2127 = vdwg.mxu0
  %v2128 = vld [vmem:[%s3 + $0x8] sm:$0xff]
  %v2130 = vsel %vm509, %v1937, 0
  %v2133 = vsel %vm509, %v1942, 0
  %v2136 = vsel %vm509, %v1947, 0
  %v2139 = vsel %vm509, %v1952, 0
  %v2142 = vsel %vm509, %v1957, 0
  %v2145 = vsel %vm509, %v1962, 0
  %v2148 = vsel %vm509, %v1967, 0
  %v2151 = vsel %vm509, %v1972, 0
  %v2154 = vsel %vm509, %v2090, 0
  %v2157 = vsel %vm509, %v2095, 0
  %v2160 = vsel %vm509, %v2100, 0
  %v2163 = vsel %vm509, %v2105, 0
  %v2166 = vsel %vm509, %v2110, 0
  %v2169 = vsel %vm509, %v2115, 0
  %v2172 = vsel %vm509, %v2120, 0
  %v2175 = vsel %vm509, %v2125, 0
  %2177 = vmatprep.subr.mxu0 0.0
  %2178 = vmatpush1.msra.mxu0 %v2128
  %2179 = vmatprep.subr.mxu0 0.0
  %2180 = vmatpush1.msra.mxu0 0.0
  %2181 = vmatprep.subr.mxu0 0.0
  %2182 = vmatpush1.msra.mxu0 0.0
  %2183 = vmatprep.subr.mxu0 0.0
  %2184 = vmatpush1.msra.mxu0 0.0
  %2185 = vmatprep.subr.mxu0 0.0
  %2186 = vmatpush1.msra.mxu0 0.0
  %2187 = vmatprep.subr.mxu0 0.0
  %2188 = vmatpush1.msra.mxu0 0.0
  %2189 = vmatprep.subr.mxu0 0.0
  %2190 = vmatpush1.msra.mxu0 0.0
  %2191 = vmatprep.subr.mxu0 0.0
  %2192 = vmatpush1.msra.mxu0 0.0
  %2193 = vmatprep.subr.mxu0 0.0
  %2194 = vmatpush1.msra.mxu0 0.0
  %2195 = vmatprep.subr.mxu0 0.0
  %2196 = vmatpush1.msra.mxu0 0.0
  %2197 = vmatprep.subr.mxu0 0.0
  %2198 = vmatpush1.msra.mxu0 0.0
  %2199 = vmatprep.subr.mxu0 0.0
  %2200 = vmatpush1.msra.mxu0 0.0
  %2201 = vmatprep.subr.mxu0 0.0
  %2202 = vmatpush1.msra.mxu0 0.0
  %2203 = vmatprep.subr.mxu0 0.0
  %2204 = vmatpush1.msra.mxu0 0.0
  %2205 = vmatprep.subr.mxu0 0.0
  %2206 = vmatpush1.msra.mxu0 0.0
  %2207 = vmatprep.subr.mxu0 0.0
  %2208 = vmatpush1.msra.mxu0 0.0
  %2209 = vmatprep.subr.mxu0 0.0
  %2210 = vmatpush1.msra.mxu0 0.0
  %2211 = vmatprep.subr.mxu0 0.0
  %2212 = vmatpush1.msra.mxu0 0.0
  %2213 = vmatprep.subr.mxu0 0.0
  %2214 = vmatpush1.msra.mxu0 0.0
  %2215 = vmatprep.subr.mxu0 0.0
  %2216 = vmatpush1.msra.mxu0 0.0
  %2217 = vmatprep.subr.mxu0 0.0
  %2218 = vmatpush1.msra.mxu0 0.0
  %2219 = vmatprep.subr.mxu0 0.0
  %2220 = vmatpush1.msra.mxu0 0.0
  %2221 = vmatprep.subr.mxu0 0.0
  %2222 = vmatpush1.msra.mxu0 0.0
  %2223 = vmatprep.subr.mxu0 0.0
  %2224 = vmatpush1.msra.mxu0 0.0
  %2225 = vmatprep.subr.mxu0 0.0
  %2226 = vmatpush1.msra.mxu0 0.0
  %2227 = vmatprep.subr.mxu0 0.0
  %2228 = vmatpush1.msra.mxu0 0.0
  %2229 = vmatprep.subr.mxu0 0.0
  %2230 = vmatpush1.msra.mxu0 0.0
  %2231 = vmatprep.subr.mxu0 0.0
  %2232 = vmatpush1.msra.mxu0 0.0
  %2233 = vmatprep.subr.mxu0 0.0
  %2234 = vmatpush1.msra.mxu0 0.0
  %2235 = vmatprep.subr.mxu0 0.0
  %2236 = vmatpush1.msra.mxu0 0.0
  %2237 = vmatprep.subr.mxu0 0.0
  %2238 = vmatpush1.msra.mxu0 0.0
  %2239 = vmatprep.subr.mxu0 0.0
  %2240 = vmatpush1.msra.mxu0 0.0
  %2241 = vmatprep.mubr.f32.mxu0 0.0
  %2242 = vmatmul.mubr.f32.gmra.mrb[0].mxu0 %v2130
  %v2243 = vpop.f32.mrb[0].mxu0
  %v2244 = vadd.f32 0.0, %v2243
  %v2245 = vpop.f32.mrb[0].mxu0
  %2246 = vmatprep.mubr.f32.mxu0 0.0
  %2247 = vmatmul.mubr.f32.gmra.mrb[0].mxu0 %v2133
  %v2248 = vpop.f32.mrb[0].mxu0
  %v2249 = vadd.f32 0.0, %v2248
  %v2250 = vpop.f32.mrb[0].mxu0
  %2251 = vmatprep.mubr.f32.mxu0 0.0
  %2252 = vmatmul.mubr.f32.gmra.mrb[0].mxu0 %v2136
  %v2253 = vpop.f32.mrb[0].mxu0
  %v2254 = vadd.f32 0.0, %v2253
  %v2255 = vpop.f32.mrb[0].mxu0
  %2256 = vmatprep.mubr.f32.mxu0 0.0
  %2257 = vmatmul.mubr.f32.gmra.mrb[0].mxu0 %v2139
  %v2258 = vpop.f32.mrb[0].mxu0
  %v2259 = vadd.f32 0.0, %v2258
  %v2260 = vpop.f32.mrb[0].mxu0
  %2261 = vmatprep.mubr.f32.mxu0 0.0
  %2262 = vmatmul.mubr.f32.gmra.mrb[0].mxu0 %v2142
  %v2263 = vpop.f32.mrb[0].mxu0
  %v2264 = vadd.f32 0.0, %v2263
  %v2265 = vpop.f32.mrb[0].mxu0
  %2266 = vmatprep.mubr.f32.mxu0 0.0
  %2267 = vmatmul.mubr.f32.gmra.mrb[0].mxu0 %v2145
  %v2268 = vpop.f32.mrb[0].mxu0
  %v2269 = vadd.f32 0.0, %v2268
  %v2270 = vpop.f32.mrb[0].mxu0
  %2271 = vmatprep.mubr.f32.mxu0 0.0
  %2272 = vmatmul.mubr.f32.gmra.mrb[0].mxu0 %v2148
  %v2273 = vpop.f32.mrb[0].mxu0
  %v2274 = vadd.f32 0.0, %v2273
  %v2275 = vpop.f32.mrb[0].mxu0
  %2276 = vmatprep.mubr.f32.mxu0 0.0
  %2277 = vmatmul.mubr.f32.gmra.mrb[0].mxu0 %v2151
  %v2278 = vpop.f32.mrb[0].mxu0
  %v2279 = vadd.f32 0.0, %v2278
  %v2280 = vpop.f32.mrb[0].mxu0
  %2281 = vmatprep.mubr.f32.mxu0 0.0
  %2282 = vmatmul.mubr.f32.gmra.mrb[0].mxu0 %v2154
  %v2283 = vpop.f32.mrb[0].mxu0
  %v2284 = vadd.f32 0.0, %v2283
  %v2285 = vpop.f32.mrb[0].mxu0
  %2286 = vmatprep.mubr.f32.mxu0 0.0
  %2287 = vmatmul.mubr.f32.gmra.mrb[0].mxu0 %v2157
  %v2288 = vpop.f32.mrb[0].mxu0
  %v2289 = vadd.f32 0.0, %v2288
  %v2290 = vpop.f32.mrb[0].mxu0
  %2291 = vmatprep.mubr.f32.mxu0 0.0
  %2292 = vmatmul.mubr.f32.gmra.mrb[0].mxu0 %v2160
  %v2293 = vpop.f32.mrb[0].mxu0
  %v2294 = vadd.f32 0.0, %v2293
  %v2295 = vpop.f32.mrb[0].mxu0
  %2296 = vmatprep.mubr.f32.mxu0 0.0
  %2297 = vmatmul.mubr.f32.gmra.mrb[0].mxu0 %v2163
  %v2298 = vpop.f32.mrb[0].mxu0
  %v2299 = vadd.f32 0.0, %v2298
  %v2300 = vpop.f32.mrb[0].mxu0
  %2301 = vmatprep.mubr.f32.mxu0 0.0
  %2302 = vmatmul.mubr.f32.gmra.mrb[0].mxu0 %v2166
  %v2303 = vpop.f32.mrb[0].mxu0
  %v2304 = vadd.f32 0.0, %v2303
  %v2305 = vpop.f32.mrb[0].mxu0
  %2306 = vmatprep.mubr.f32.mxu0 0.0
  %2307 = vmatmul.mubr.f32.gmra.mrb[0].mxu0 %v2169
  %v2308 = vpop.f32.mrb[0].mxu0
  %v2309 = vadd.f32 0.0, %v2308
  %v2310 = vpop.f32.mrb[0].mxu0
  %2311 = vmatprep.mubr.f32.mxu0 0.0
  %2312 = vmatmul.mubr.f32.gmra.mrb[0].mxu0 %v2172
  %v2313 = vpop.f32.mrb[0].mxu0
  %v2314 = vadd.f32 0.0, %v2313
  %v2315 = vpop.f32.mrb[0].mxu0
  %2316 = vmatprep.mubr.f32.mxu0 0.0
  %2317 = vmatmul.mubr.f32.gmra.mrb[0].mxu0 %v2175
  %v2318 = vpop.f32.mrb[0].mxu0
  %v2319 = vadd.f32 0.0, %v2318
  %v2320 = vpop.f32.mrb[0].mxu0
  %2321 = vdwg.mxu0
  %v2323 = vsel %vm509, %v1116, 0
  %v2326 = vsel %vm509, %v1121, 0
  %v2329 = vsel %vm509, %v1126, 0
  %v2332 = vsel %vm509, %v1131, 0
  %v2335 = vsel %vm509, %v1136, 0
  %v2338 = vsel %vm509, %v1141, 0
  %v2341 = vsel %vm509, %v1146, 0
  %v2344 = vsel %vm509, %v1151, 0
  %v2347 = vsel %vm509, %v1269, 0
  %v2350 = vsel %vm509, %v1274, 0
  %v2353 = vsel %vm509, %v1279, 0
  %v2356 = vsel %vm509, %v1284, 0
  %v2359 = vsel %vm509, %v1289, 0
  %v2362 = vsel %vm509, %v1294, 0
  %v2365 = vsel %vm509, %v1299, 0
  %v2368 = vsel %vm509, %v1304, 0
  %2370 = vmatprep.subr.mxu0 0.0
  %2371 = vmatpush1.msra.mxu0 %v1307
  %2372 = vmatprep.subr.mxu0 0.0
  %2373 = vmatpush1.msra.mxu0 0.0
  %2374 = vmatprep.subr.mxu0 0.0
  %2375 = vmatpush1.msra.mxu0 0.0
  %2376 = vmatprep.subr.mxu0 0.0
  %2377 = vmatpush1.msra.mxu0 0.0
  %2378 = vmatprep.subr.mxu0 0.0
  %2379 = vmatpush1.msra.mxu0 0.0
  %2380 = vmatprep.subr.mxu0 0.0
  %2381 = vmatpush1.msra.mxu0 0.0
  %2382 = vmatprep.subr.mxu0 0.0
  %2383 = vmatpush1.msra.mxu0 0.0
  %2384 = vmatprep.subr.mxu0 0.0
  %2385 = vmatpush1.msra.mxu0 0.0
  %2386 = vmatprep.subr.mxu0 0.0
  %2387 = vmatpush1.msra.mxu0 0.0
  %2388 = vmatprep.subr.mxu0 0.0
  %2389 = vmatpush1.msra.mxu0 0.0
  %2390 = vmatprep.subr.mxu0 0.0
  %2391 = vmatpush1.msra.mxu0 0.0
  %2392 = vmatprep.subr.mxu0 0.0
  %2393 = vmatpush1.msra.mxu0 0.0
  %2394 = vmatprep.subr.mxu0 0.0
  %2395 = vmatpush1.msra.mxu0 0.0
  %2396 = vmatprep.subr.mxu0 0.0
  %2397 = vmatpush1.msra.mxu0 0.0
  %2398 = vmatprep.subr.mxu0 0.0
  %2399 = vmatpush1.msra.mxu0 0.0
  %2400 = vmatprep.subr.mxu0 0.0
  %2401 = vmatpush1.msra.mxu0 0.0
  %2402 = vmatprep.subr.mxu0 0.0
  %2403 = vmatpush1.msra.mxu0 0.0
  %2404 = vmatprep.subr.mxu0 0.0
  %2405 = vmatpush1.msra.mxu0 0.0
  %2406 = vmatprep.subr.mxu0 0.0
  %2407 = vmatpush1.msra.mxu0 0.0
  %2408 = vmatprep.subr.mxu0 0.0
  %2409 = vmatpush1.msra.mxu0 0.0
  %2410 = vmatprep.subr.mxu0 0.0
  %2411 = vmatpush1.msra.mxu0 0.0
  %2412 = vmatprep.subr.mxu0 0.0
  %2413 = vmatpush1.msra.mxu0 0.0
  %2414 = vmatprep.subr.mxu0 0.0
  %2415 = vmatpush1.msra.mxu0 0.0
  %2416 = vmatprep.subr.mxu0 0.0
  %2417 = vmatpush1.msra.mxu0 0.0
  %2418 = vmatprep.subr.mxu0 0.0
  %2419 = vmatpush1.msra.mxu0 0.0
  %2420 = vmatprep.subr.mxu0 0.0
  %2421 = vmatpush1.msra.mxu0 0.0
  %2422 = vmatprep.subr.mxu0 0.0
  %2423 = vmatpush1.msra.mxu0 0.0
  %2424 = vmatprep.subr.mxu0 0.0
  %2425 = vmatpush1.msra.mxu0 0.0
  %2426 = vmatprep.subr.mxu0 0.0
  %2427 = vmatpush1.msra.mxu0 0.0
  %2428 = vmatprep.subr.mxu0 0.0
  %2429 = vmatpush1.msra.mxu0 0.0
  %2430 = vmatprep.subr.mxu0 0.0
  %2431 = vmatpush1.msra.mxu0 0.0
  %2432 = vmatprep.subr.mxu0 0.0
  %2433 = vmatpush1.msra.mxu0 0.0
  %2434 = vmatprep.mubr.f32.mxu0 0.0
  %2435 = vmatmul.mubr.f32.gmra.mrb[0].mxu0 %v2323
  %v2436 = vpop.f32.mrb[0].mxu0
  %v2437 = vadd.f32 %v2244, %v2436
  %v2438 = vpop.f32.mrb[0].mxu0
  %2439 = vmatprep.mubr.f32.mxu0 0.0
  %2440 = vmatmul.mubr.f32.gmra.mrb[0].mxu0 %v2326
  %v2441 = vpop.f32.mrb[0].mxu0
  %v2442 = vadd.f32 %v2249, %v2441
  %v2443 = vpop.f32.mrb[0].mxu0
  %2444 = vmatprep.mubr.f32.mxu0 0.0
  %2445 = vmatmul.mubr.f32.gmra.mrb[0].mxu0 %v2329
  %v2446 = vpop.f32.mrb[0].mxu0
  %v2447 = vadd.f32 %v2254, %v2446
  %v2448 = vpop.f32.mrb[0].mxu0
  %2449 = vmatprep.mubr.f32.mxu0 0.0
  %2450 = vmatmul.mubr.f32.gmra.mrb[0].mxu0 %v2332
  %v2451 = vpop.f32.mrb[0].mxu0
  %v2452 = vadd.f32 %v2259, %v2451
  %v2453 = vpop.f32.mrb[0].mxu0
  %2454 = vmatprep.mubr.f32.mxu0 0.0
  %2455 = vmatmul.mubr.f32.gmra.mrb[0].mxu0 %v2335
  %v2456 = vpop.f32.mrb[0].mxu0
  %v2457 = vadd.f32 %v2264, %v2456
  %v2458 = vpop.f32.mrb[0].mxu0
  %2459 = vmatprep.mubr.f32.mxu0 0.0
  %2460 = vmatmul.mubr.f32.gmra.mrb[0].mxu0 %v2338
  %v2461 = vpop.f32.mrb[0].mxu0
  %v2462 = vadd.f32 %v2269, %v2461
  %v2463 = vpop.f32.mrb[0].mxu0
  %2464 = vmatprep.mubr.f32.mxu0 0.0
  %2465 = vmatmul.mubr.f32.gmra.mrb[0].mxu0 %v2341
  %v2466 = vpop.f32.mrb[0].mxu0
  %v2467 = vadd.f32 %v2274, %v2466
  %v2468 = vpop.f32.mrb[0].mxu0
  %2469 = vmatprep.mubr.f32.mxu0 0.0
  %2470 = vmatmul.mubr.f32.gmra.mrb[0].mxu0 %v2344
  %v2471 = vpop.f32.mrb[0].mxu0
  %v2472 = vadd.f32 %v2279, %v2471
  %v2473 = vpop.f32.mrb[0].mxu0
  %2474 = vmatprep.mubr.f32.mxu0 0.0
  %2475 = vmatmul.mubr.f32.gmra.mrb[0].mxu0 %v2347
  %v2476 = vpop.f32.mrb[0].mxu0
  %v2477 = vadd.f32 %v2284, %v2476
  %v2478 = vpop.f32.mrb[0].mxu0
  %2479 = vmatprep.mubr.f32.mxu0 0.0
  %2480 = vmatmul.mubr.f32.gmra.mrb[0].mxu0 %v2350
  %v2481 = vpop.f32.mrb[0].mxu0
  %v2482 = vadd.f32 %v2289, %v2481
  %v2483 = vpop.f32.mrb[0].mxu0
  %2484 = vmatprep.mubr.f32.mxu0 0.0
  %2485 = vmatmul.mubr.f32.gmra.mrb[0].mxu0 %v2353
  %v2486 = vpop.f32.mrb[0].mxu0
  %v2487 = vadd.f32 %v2294, %v2486
  %v2488 = vpop.f32.mrb[0].mxu0
  %2489 = vmatprep.mubr.f32.mxu0 0.0
  %2490 = vmatmul.mubr.f32.gmra.mrb[0].mxu0 %v2356
  %v2491 = vpop.f32.mrb[0].mxu0
  %v2492 = vadd.f32 %v2299, %v2491
  %v2493 = vpop.f32.mrb[0].mxu0
  %2494 = vmatprep.mubr.f32.mxu0 0.0
  %2495 = vmatmul.mubr.f32.gmra.mrb[0].mxu0 %v2359
  %v2496 = vpop.f32.mrb[0].mxu0
  %v2497 = vadd.f32 %v2304, %v2496
  %v2498 = vpop.f32.mrb[0].mxu0
  %2499 = vmatprep.mubr.f32.mxu0 0.0
  %2500 = vmatmul.mubr.f32.gmra.mrb[0].mxu0 %v2362
  %v2501 = vpop.f32.mrb[0].mxu0
  %v2502 = vadd.f32 %v2309, %v2501
  %v2503 = vpop.f32.mrb[0].mxu0
  %2504 = vmatprep.mubr.f32.mxu0 0.0
  %2505 = vmatmul.mubr.f32.gmra.mrb[0].mxu0 %v2365
  %v2506 = vpop.f32.mrb[0].mxu0
  %v2507 = vadd.f32 %v2314, %v2506
  %v2508 = vpop.f32.mrb[0].mxu0
  %2509 = vmatprep.mubr.f32.mxu0 0.0
  %2510 = vmatmul.mubr.f32.gmra.mrb[0].mxu0 %v2368
  %v2511 = vpop.f32.mrb[0].mxu0
  %v2512 = vadd.f32 %v2319, %v2511
  %v2513 = vpop.f32.mrb[0].mxu0
  %2514 = vdwg.mxu0
  %2515 = vrot.lane.b32.xlu0 %v469, 112
  %v2516 = vpop.permute.xlu0 %2515
  %2517 = vrot.lane.b32.xlu0 %v470, 112
  %v2518 = vpop.permute.xlu0 %2517
  %2519 = vrot.lane.b32.xlu0 %v471, 112
  %v2520 = vpop.permute.xlu0 %2519
  %2521 = vrot.lane.b32.xlu0 %v472, 112
  %v2522 = vpop.permute.xlu0 %2521
  %2523 = vrot.lane.b32.xlu0 %v473, 112
  %v2524 = vpop.permute.xlu0 %2523
  %2525 = vrot.lane.b32.xlu0 %v474, 112
  %v2526 = vpop.permute.xlu0 %2525
  %2527 = vrot.lane.b32.xlu0 %v475, 112
  %v2528 = vpop.permute.xlu0 %2527
  %2529 = vrot.lane.b32.xlu0 %v476, 112
  %v2530 = vpop.permute.xlu0 %2529
  %2531 = vrot.lane.b32.xlu0 %v391, 80
  %v2532 = vpop.permute.xlu0 %2531
  %2533 = vrot.lane.b32.xlu0 %v396, 80
  %v2534 = vpop.permute.xlu0 %2533
  %2535 = vrot.lane.b32.xlu0 %v401, 80
  %v2536 = vpop.permute.xlu0 %2535
  %2537 = vrot.lane.b32.xlu0 %v406, 80
  %v2538 = vpop.permute.xlu0 %2537
  %2539 = vrot.lane.b32.xlu0 %v411, 80
  %v2540 = vpop.permute.xlu0 %2539
  %2541 = vrot.lane.b32.xlu0 %v416, 80
  %v2542 = vpop.permute.xlu0 %2541
  %2543 = vrot.lane.b32.xlu0 %v421, 80
  %v2544 = vpop.permute.xlu0 %2543
  %2545 = vrot.lane.b32.xlu0 %v426, 80
  %v2546 = vpop.permute.xlu0 %2545
  %v2547 = vsel %vm509, %v2516, 0
  %v2549 = vsel %vm509, %v2518, 0
  %v2551 = vsel %vm509, %v2520, 0
  %v2553 = vsel %vm509, %v2522, 0
  %v2555 = vsel %vm509, %v2524, 0
  %v2557 = vsel %vm509, %v2526, 0
  %v2559 = vsel %vm509, %v2528, 0
  %v2561 = vsel %vm509, %v2530, 0
  %v2563 = vsel %vm509, %v2532, 0
  %v2565 = vsel %vm509, %v2534, 0
  %v2567 = vsel %vm509, %v2536, 0
  %v2569 = vsel %vm509, %v2538, 0
  %v2571 = vsel %vm509, %v2540, 0
  %v2573 = vsel %vm509, %v2542, 0
  %v2575 = vsel %vm509, %v2544, 0
  %v2577 = vsel %vm509, %v2546, 0
  %2579 = vmatprep.subr.mxu0 0.0
  %2580 = vmatpush1.xpose.msra.mxu0 %v2563
  %2581 = vmatprep.subr.mxu0 0.0
  %2582 = vmatpush1.xpose.msra.mxu0 %v2565
  %2583 = vmatprep.subr.mxu0 0.0
  %2584 = vmatpush1.xpose.msra.mxu0 %v2567
  %2585 = vmatprep.subr.mxu0 0.0
  %2586 = vmatpush1.xpose.msra.mxu0 %v2569
  %2587 = vmatprep.subr.mxu0 0.0
  %2588 = vmatpush1.xpose.msra.mxu0 %v2571
  %2589 = vmatprep.subr.mxu0 0.0
  %2590 = vmatpush1.xpose.msra.mxu0 %v2573
  %2591 = vmatprep.subr.mxu0 0.0
  %2592 = vmatpush1.xpose.msra.mxu0 %v2575
  %2593 = vmatprep.subr.mxu0 0.0
  %2594 = vmatpush1.xpose.msra.mxu0 %v2577
  %2595 = vmatprep.subr.mxu0 0.0
  %2596 = vmatpush1.xpose.msra.mxu0 0.0
  %2597 = vmatprep.subr.mxu0 0.0
  %2598 = vmatpush1.xpose.msra.mxu0 0.0
  %2599 = vmatprep.subr.mxu0 0.0
  %2600 = vmatpush1.xpose.msra.mxu0 0.0
  %2601 = vmatprep.subr.mxu0 0.0
  %2602 = vmatpush1.xpose.msra.mxu0 0.0
  %2603 = vmatprep.subr.mxu0 0.0
  %2604 = vmatpush1.xpose.msra.mxu0 0.0
  %2605 = vmatprep.subr.mxu0 0.0
  %2606 = vmatpush1.xpose.msra.mxu0 0.0
  %2607 = vmatprep.subr.mxu0 0.0
  %2608 = vmatpush1.xpose.msra.mxu0 0.0
  %2609 = vmatprep.subr.mxu0 0.0
  %2610 = vmatpush1.xpose.msra.mxu0 0.0
  %2611 = vmatprep.subr.mxu0 0.0
  %2612 = vmatpush1.xpose.msra.mxu0 0.0
  %2613 = vmatprep.subr.mxu0 0.0
  %2614 = vmatpush1.xpose.msra.mxu0 0.0
  %2615 = vmatprep.subr.mxu0 0.0
  %2616 = vmatpush1.xpose.msra.mxu0 0.0
  %2617 = vmatprep.subr.mxu0 0.0
  %2618 = vmatpush1.xpose.msra.mxu0 0.0
  %2619 = vmatprep.subr.mxu0 0.0
  %2620 = vmatpush1.xpose.msra.mxu0 0.0
  %2621 = vmatprep.subr.mxu0 0.0
  %2622 = vmatpush1.xpose.msra.mxu0 0.0
  %2623 = vmatprep.subr.mxu0 0.0
  %2624 = vmatpush1.xpose.msra.mxu0 0.0
  %2625 = vmatprep.subr.mxu0 0.0
  %2626 = vmatpush1.xpose.msra.mxu0 0.0
  %2627 = vmatprep.subr.mxu0 0.0
  %2628 = vmatpush1.xpose.msra.mxu0 0.0
  %2629 = vmatprep.subr.mxu0 0.0
  %2630 = vmatpush1.xpose.msra.mxu0 0.0
  %2631 = vmatprep.subr.mxu0 0.0
  %2632 = vmatpush1.xpose.msra.mxu0 0.0
  %2633 = vmatprep.subr.mxu0 0.0
  %2634 = vmatpush1.xpose.msra.mxu0 0.0
  %2635 = vmatprep.subr.mxu0 0.0
  %2636 = vmatpush1.xpose.msra.mxu0 0.0
  %2637 = vmatprep.subr.mxu0 0.0
  %2638 = vmatpush1.xpose.msra.mxu0 0.0
  %2639 = vmatprep.subr.mxu0 0.0
  %2640 = vmatpush1.xpose.msra.mxu0 0.0
  %2641 = vmatprep.subr.mxu0 0.0
  %2642 = vmatpush1.xpose.msra.mxu0 0.0
  %2643 = vmatprep.mubr.f32.mxu0 0.0
  %2644 = vmatmul.mubr.f32.gmra.mrb[0].mxu0 %v2547
  %v2645 = vpop.f32.mrb[0].mxu0
  %v2646 = vadd.f32 0.0, %v2645
  %v2647 = vpop.f32.mrb[0].mxu0
  %2648 = vmatprep.mubr.f32.mxu0 0.0
  %2649 = vmatmul.mubr.f32.gmra.mrb[0].mxu0 %v2549
  %v2650 = vpop.f32.mrb[0].mxu0
  %v2651 = vadd.f32 0.0, %v2650
  %v2652 = vpop.f32.mrb[0].mxu0
  %2653 = vmatprep.mubr.f32.mxu0 0.0
  %2654 = vmatmul.mubr.f32.gmra.mrb[0].mxu0 %v2551
  %v2655 = vpop.f32.mrb[0].mxu0
  %v2656 = vadd.f32 0.0, %v2655
  %v2657 = vpop.f32.mrb[0].mxu0
  %2658 = vmatprep.mubr.f32.mxu0 0.0
  %2659 = vmatmul.mubr.f32.gmra.mrb[0].mxu0 %v2553
  %v2660 = vpop.f32.mrb[0].mxu0
  %v2661 = vadd.f32 0.0, %v2660
  %v2662 = vpop.f32.mrb[0].mxu0
  %2663 = vmatprep.mubr.f32.mxu0 0.0
  %2664 = vmatmul.mubr.f32.gmra.mrb[0].mxu0 %v2555
  %v2665 = vpop.f32.mrb[0].mxu0
  %v2666 = vadd.f32 0.0, %v2665
  %v2667 = vpop.f32.mrb[0].mxu0
  %2668 = vmatprep.mubr.f32.mxu0 0.0
  %2669 = vmatmul.mubr.f32.gmra.mrb[0].mxu0 %v2557
  %v2670 = vpop.f32.mrb[0].mxu0
  %v2671 = vadd.f32 0.0, %v2670
  %v2672 = vpop.f32.mrb[0].mxu0
  %2673 = vmatprep.mubr.f32.mxu0 0.0
  %2674 = vmatmul.mubr.f32.gmra.mrb[0].mxu0 %v2559
  %v2675 = vpop.f32.mrb[0].mxu0
  %v2676 = vadd.f32 0.0, %v2675
  %v2677 = vpop.f32.mrb[0].mxu0
  %2678 = vmatprep.mubr.f32.mxu0 0.0
  %2679 = vmatmul.mubr.f32.gmra.mrb[0].mxu0 %v2561
  %v2680 = vpop.f32.mrb[0].mxu0
  %v2681 = vadd.f32 0.0, %v2680
  %v2682 = vpop.f32.mrb[0].mxu0
  %2683 = vdwg.mxu0
  %2684 = vrot.lane.b32.xlu0 %v477, 112
  %v2685 = vpop.permute.xlu0 %2684
  %2686 = vrot.lane.b32.xlu0 %v478, 112
  %v2687 = vpop.permute.xlu0 %2686
  %2688 = vrot.lane.b32.xlu0 %v479, 112
  %v2689 = vpop.permute.xlu0 %2688
  %2690 = vrot.lane.b32.xlu0 %v480, 112
  %v2691 = vpop.permute.xlu0 %2690
  %2692 = vrot.lane.b32.xlu0 %v481, 112
  %v2693 = vpop.permute.xlu0 %2692
  %2694 = vrot.lane.b32.xlu0 %v482, 112
  %v2695 = vpop.permute.xlu0 %2694
  %2696 = vrot.lane.b32.xlu0 %v483, 112
  %v2697 = vpop.permute.xlu0 %2696
  %2698 = vrot.lane.b32.xlu0 %v484, 112
  %v2699 = vpop.permute.xlu0 %2698
  %2700 = vrot.lane.b32.xlu0 %v431, 80
  %v2701 = vpop.permute.xlu0 %2700
  %2702 = vrot.lane.b32.xlu0 %v436, 80
  %v2703 = vpop.permute.xlu0 %2702
  %2704 = vrot.lane.b32.xlu0 %v441, 80
  %v2705 = vpop.permute.xlu0 %2704
  %2706 = vrot.lane.b32.xlu0 %v446, 80
  %v2707 = vpop.permute.xlu0 %2706
  %2708 = vrot.lane.b32.xlu0 %v451, 80
  %v2709 = vpop.permute.xlu0 %2708
  %2710 = vrot.lane.b32.xlu0 %v456, 80
  %v2711 = vpop.permute.xlu0 %2710
  %2712 = vrot.lane.b32.xlu0 %v461, 80
  %v2713 = vpop.permute.xlu0 %2712
  %2714 = vrot.lane.b32.xlu0 %v466, 80
  %v2715 = vpop.permute.xlu0 %2714
  %v2716 = vsel %vm509, %v2685, 0
  %v2718 = vsel %vm509, %v2687, 0
  %v2720 = vsel %vm509, %v2689, 0
  %v2722 = vsel %vm509, %v2691, 0
  %v2724 = vsel %vm509, %v2693, 0
  %v2726 = vsel %vm509, %v2695, 0
  %v2728 = vsel %vm509, %v2697, 0
  %v2730 = vsel %vm509, %v2699, 0
  %v2732 = vsel %vm509, %v2701, 0
  %v2734 = vsel %vm509, %v2703, 0
  %v2736 = vsel %vm509, %v2705, 0
  %v2738 = vsel %vm509, %v2707, 0
  %v2740 = vsel %vm509, %v2709, 0
  %v2742 = vsel %vm509, %v2711, 0
  %v2744 = vsel %vm509, %v2713, 0
  %v2746 = vsel %vm509, %v2715, 0
  %2748 = vmatprep.subr.mxu0 0.0
  %2749 = vmatpush1.xpose.msra.mxu0 %v2732
  %2750 = vmatprep.subr.mxu0 0.0
  %2751 = vmatpush1.xpose.msra.mxu0 %v2734
  %2752 = vmatprep.subr.mxu0 0.0
  %2753 = vmatpush1.xpose.msra.mxu0 %v2736
  %2754 = vmatprep.subr.mxu0 0.0
  %2755 = vmatpush1.xpose.msra.mxu0 %v2738
  %2756 = vmatprep.subr.mxu0 0.0
  %2757 = vmatpush1.xpose.msra.mxu0 %v2740
  %2758 = vmatprep.subr.mxu0 0.0
  %2759 = vmatpush1.xpose.msra.mxu0 %v2742
  %2760 = vmatprep.subr.mxu0 0.0
  %2761 = vmatpush1.xpose.msra.mxu0 %v2744
  %2762 = vmatprep.subr.mxu0 0.0
  %2763 = vmatpush1.xpose.msra.mxu0 %v2746
  %2764 = vmatprep.subr.mxu0 0.0
  %2765 = vmatpush1.xpose.msra.mxu0 0.0
  %2766 = vmatprep.subr.mxu0 0.0
  %2767 = vmatpush1.xpose.msra.mxu0 0.0
  %2768 = vmatprep.subr.mxu0 0.0
  %2769 = vmatpush1.xpose.msra.mxu0 0.0
  %2770 = vmatprep.subr.mxu0 0.0
  %2771 = vmatpush1.xpose.msra.mxu0 0.0
  %2772 = vmatprep.subr.mxu0 0.0
  %2773 = vmatpush1.xpose.msra.mxu0 0.0
  %2774 = vmatprep.subr.mxu0 0.0
  %2775 = vmatpush1.xpose.msra.mxu0 0.0
  %2776 = vmatprep.subr.mxu0 0.0
  %2777 = vmatpush1.xpose.msra.mxu0 0.0
  %2778 = vmatprep.subr.mxu0 0.0
  %2779 = vmatpush1.xpose.msra.mxu0 0.0
  %2780 = vmatprep.subr.mxu0 0.0
  %2781 = vmatpush1.xpose.msra.mxu0 0.0
  %2782 = vmatprep.subr.mxu0 0.0
  %2783 = vmatpush1.xpose.msra.mxu0 0.0
  %2784 = vmatprep.subr.mxu0 0.0
  %2785 = vmatpush1.xpose.msra.mxu0 0.0
  %2786 = vmatprep.subr.mxu0 0.0
  %2787 = vmatpush1.xpose.msra.mxu0 0.0
  %2788 = vmatprep.subr.mxu0 0.0
  %2789 = vmatpush1.xpose.msra.mxu0 0.0
  %2790 = vmatprep.subr.mxu0 0.0
  %2791 = vmatpush1.xpose.msra.mxu0 0.0
  %2792 = vmatprep.subr.mxu0 0.0
  %2793 = vmatpush1.xpose.msra.mxu0 0.0
  %2794 = vmatprep.subr.mxu0 0.0
  %2795 = vmatpush1.xpose.msra.mxu0 0.0
  %2796 = vmatprep.subr.mxu0 0.0
  %2797 = vmatpush1.xpose.msra.mxu0 0.0
  %2798 = vmatprep.subr.mxu0 0.0
  %2799 = vmatpush1.xpose.msra.mxu0 0.0
  %2800 = vmatprep.subr.mxu0 0.0
  %2801 = vmatpush1.xpose.msra.mxu0 0.0
  %2802 = vmatprep.subr.mxu0 0.0
  %2803 = vmatpush1.xpose.msra.mxu0 0.0
  %2804 = vmatprep.subr.mxu0 0.0
  %2805 = vmatpush1.xpose.msra.mxu0 0.0
  %2806 = vmatprep.subr.mxu0 0.0
  %2807 = vmatpush1.xpose.msra.mxu0 0.0
  %2808 = vmatprep.subr.mxu0 0.0
  %2809 = vmatpush1.xpose.msra.mxu0 0.0
  %2810 = vmatprep.subr.mxu0 0.0
  %2811 = vmatpush1.xpose.msra.mxu0 0.0
  %2812 = vmatprep.mubr.f32.mxu0 0.0
  %2813 = vmatmul.mubr.f32.gmra.mrb[0].mxu0 %v2716
  %v2814 = vpop.f32.mrb[0].mxu0
  %v2815 = vadd.f32 0.0, %v2814
  %v2816 = vpop.f32.mrb[0].mxu0
  %2817 = vmatprep.mubr.f32.mxu0 0.0
  %2818 = vmatmul.mubr.f32.gmra.mrb[0].mxu0 %v2718
  %v2819 = vpop.f32.mrb[0].mxu0
  %v2820 = vadd.f32 0.0, %v2819
  %v2821 = vpop.f32.mrb[0].mxu0
  %2822 = vmatprep.mubr.f32.mxu0 0.0
  %2823 = vmatmul.mubr.f32.gmra.mrb[0].mxu0 %v2720
  %v2824 = vpop.f32.mrb[0].mxu0
  %v2825 = vadd.f32 0.0, %v2824
  %v2826 = vpop.f32.mrb[0].mxu0
  %2827 = vmatprep.mubr.f32.mxu0 0.0
  %2828 = vmatmul.mubr.f32.gmra.mrb[0].mxu0 %v2722
  %v2829 = vpop.f32.mrb[0].mxu0
  %v2830 = vadd.f32 0.0, %v2829
  %v2831 = vpop.f32.mrb[0].mxu0
  %2832 = vmatprep.mubr.f32.mxu0 0.0
  %2833 = vmatmul.mubr.f32.gmra.mrb[0].mxu0 %v2724
  %v2834 = vpop.f32.mrb[0].mxu0
  %v2835 = vadd.f32 0.0, %v2834
  %v2836 = vpop.f32.mrb[0].mxu0
  %2837 = vmatprep.mubr.f32.mxu0 0.0
  %2838 = vmatmul.mubr.f32.gmra.mrb[0].mxu0 %v2726
  %v2839 = vpop.f32.mrb[0].mxu0
  %v2840 = vadd.f32 0.0, %v2839
  %v2841 = vpop.f32.mrb[0].mxu0
  %2842 = vmatprep.mubr.f32.mxu0 0.0
  %2843 = vmatmul.mubr.f32.gmra.mrb[0].mxu0 %v2728
  %v2844 = vpop.f32.mrb[0].mxu0
  %v2845 = vadd.f32 0.0, %v2844
  %v2846 = vpop.f32.mrb[0].mxu0
  %2847 = vmatprep.mubr.f32.mxu0 0.0
  %2848 = vmatmul.mubr.f32.gmra.mrb[0].mxu0 %v2730
  %v2849 = vpop.f32.mrb[0].mxu0
  %v2850 = vadd.f32 0.0, %v2849
  %v2851 = vpop.f32.mrb[0].mxu0
  %2852 = vdwg.mxu0
  %v2853 = vsel %vm824, %v2646, -inf
  %2854 = vmax.xlane.f32.xlu0 %v2853
  %v2855 = vpop.xlane.xlu0 %2854
  %v2856 = vsel %vm824, %v2651, -inf
  %2857 = vmax.xlane.f32.xlu0 %v2856
  %v2858 = vpop.xlane.xlu0 %2857
  %v2859 = vsel %vm824, %v2656, -inf
  %2860 = vmax.xlane.f32.xlu0 %v2859
  %v2861 = vpop.xlane.xlu0 %2860
  %v2862 = vsel %vm824, %v2661, -inf
  %2863 = vmax.xlane.f32.xlu0 %v2862
  %v2864 = vpop.xlane.xlu0 %2863
  %v2865 = vsel %vm824, %v2666, -inf
  %2866 = vmax.xlane.f32.xlu0 %v2865
  %v2867 = vpop.xlane.xlu0 %2866
  %v2868 = vsel %vm824, %v2671, -inf
  %2869 = vmax.xlane.f32.xlu0 %v2868
  %v2870 = vpop.xlane.xlu0 %2869
  %v2871 = vsel %vm824, %v2676, -inf
  %2872 = vmax.xlane.f32.xlu0 %v2871
  %v2873 = vpop.xlane.xlu0 %2872
  %v2874 = vsel %vm824, %v2681, -inf
  %2875 = vmax.xlane.f32.xlu0 %v2874
  %v2876 = vpop.xlane.xlu0 %2875
  %v2877 = vsel %vm824, %v2815, -inf
  %2878 = vmax.xlane.f32.xlu0 %v2877
  %v2879 = vpop.xlane.xlu0 %2878
  %v2880 = vsel %vm824, %v2820, -inf
  %2881 = vmax.xlane.f32.xlu0 %v2880
  %v2882 = vpop.xlane.xlu0 %2881
  %v2883 = vsel %vm824, %v2825, -inf
  %2884 = vmax.xlane.f32.xlu0 %v2883
  %v2885 = vpop.xlane.xlu0 %2884
  %v2886 = vsel %vm824, %v2830, -inf
  %2887 = vmax.xlane.f32.xlu0 %v2886
  %v2888 = vpop.xlane.xlu0 %2887
  %v2889 = vsel %vm824, %v2835, -inf
  %2890 = vmax.xlane.f32.xlu0 %v2889
  %v2891 = vpop.xlane.xlu0 %2890
  %v2892 = vsel %vm824, %v2840, -inf
  %2893 = vmax.xlane.f32.xlu0 %v2892
  %v2894 = vpop.xlane.xlu0 %2893
  %v2895 = vsel %vm824, %v2845, -inf
  %2896 = vmax.xlane.f32.xlu0 %v2895
  %v2897 = vpop.xlane.xlu0 %2896
  %v2898 = vsel %vm824, %v2850, -inf
  %2899 = vmax.xlane.f32.xlu0 %v2898
  %v2900 = vpop.xlane.xlu0 %2899
  %v2901 = vsub.f32 %v2646, %v2855
  %v2902 = vsub.f32 %v2651, %v2858
  %v2903 = vsub.f32 %v2656, %v2861
  %v2904 = vsub.f32 %v2661, %v2864
  %v2905 = vsub.f32 %v2666, %v2867
  %v2906 = vsub.f32 %v2671, %v2870
  %v2907 = vsub.f32 %v2676, %v2873
  %v2908 = vsub.f32 %v2681, %v2876
  %v2909 = vsub.f32 %v2815, %v2879
  %v2910 = vsub.f32 %v2820, %v2882
  %v2911 = vsub.f32 %v2825, %v2885
  %v2912 = vsub.f32 %v2830, %v2888
  %v2913 = vsub.f32 %v2835, %v2891
  %v2914 = vsub.f32 %v2840, %v2894
  %v2915 = vsub.f32 %v2845, %v2897
  %v2916 = vsub.f32 %v2850, %v2900
  %v2917 = vmul.f32 %v2901, 1.442695
  %v2918 = vpow.pop %v2917
  %v2919 = vmul.f32 %v2902, 1.442695
  %v2920 = vpow.pop %v2919
  %v2921 = vmul.f32 %v2903, 1.442695
  %v2922 = vpow.pop %v2921
  %v2923 = vmul.f32 %v2904, 1.442695
  %v2924 = vpow.pop %v2923
  %v2925 = vmul.f32 %v2905, 1.442695
  %v2926 = vpow.pop %v2925
  %v2927 = vmul.f32 %v2906, 1.442695
  %v2928 = vpow.pop %v2927
  %v2929 = vmul.f32 %v2907, 1.442695
  %v2930 = vpow.pop %v2929
  %v2931 = vmul.f32 %v2908, 1.442695
  %v2932 = vpow.pop %v2931
  %v2933 = vmul.f32 %v2909, 1.442695
  %v2934 = vpow.pop %v2933
  %v2935 = vmul.f32 %v2910, 1.442695
  %v2936 = vpow.pop %v2935
  %v2937 = vmul.f32 %v2911, 1.442695
  %v2938 = vpow.pop %v2937
  %v2939 = vmul.f32 %v2912, 1.442695
  %v2940 = vpow.pop %v2939
  %v2941 = vmul.f32 %v2913, 1.442695
  %v2942 = vpow.pop %v2941
  %v2943 = vmul.f32 %v2914, 1.442695
  %v2944 = vpow.pop %v2943
  %v2945 = vmul.f32 %v2915, 1.442695
  %v2946 = vpow.pop %v2945
  %v2947 = vmul.f32 %v2916, 1.442695
  %v2948 = vpow.pop %v2947
  %v2949 = vsel %vm824, %v2918, 0.0
  %2950 = vadd.xlane.f32.xlu0 %v2949
  %v2951 = vpop.xlane.xlu0 %2950
  %v2952 = vsel %vm824, %v2920, 0.0
  %2953 = vadd.xlane.f32.xlu0 %v2952
  %v2954 = vpop.xlane.xlu0 %2953
  %v2955 = vsel %vm824, %v2922, 0.0
  %2956 = vadd.xlane.f32.xlu0 %v2955
  %v2957 = vpop.xlane.xlu0 %2956
  %v2958 = vsel %vm824, %v2924, 0.0
  %2959 = vadd.xlane.f32.xlu0 %v2958
  %v2960 = vpop.xlane.xlu0 %2959
  %v2961 = vsel %vm824, %v2926, 0.0
  %2962 = vadd.xlane.f32.xlu0 %v2961
  %v2963 = vpop.xlane.xlu0 %2962
  %v2964 = vsel %vm824, %v2928, 0.0
  %2965 = vadd.xlane.f32.xlu0 %v2964
  %v2966 = vpop.xlane.xlu0 %2965
  %v2967 = vsel %vm824, %v2930, 0.0
  %2968 = vadd.xlane.f32.xlu0 %v2967
  %v2969 = vpop.xlane.xlu0 %2968
  %v2970 = vsel %vm824, %v2932, 0.0
  %2971 = vadd.xlane.f32.xlu0 %v2970
  %v2972 = vpop.xlane.xlu0 %2971
  %v2973 = vsel %vm824, %v2934, 0.0
  %2974 = vadd.xlane.f32.xlu0 %v2973
  %v2975 = vpop.xlane.xlu0 %2974
  %v2976 = vsel %vm824, %v2936, 0.0
  %2977 = vadd.xlane.f32.xlu0 %v2976
  %v2978 = vpop.xlane.xlu0 %2977
  %v2979 = vsel %vm824, %v2938, 0.0
  %2980 = vadd.xlane.f32.xlu0 %v2979
  %v2981 = vpop.xlane.xlu0 %2980
  %v2982 = vsel %vm824, %v2940, 0.0
  %2983 = vadd.xlane.f32.xlu0 %v2982
  %v2984 = vpop.xlane.xlu0 %2983
  %v2985 = vsel %vm824, %v2942, 0.0
  %2986 = vadd.xlane.f32.xlu0 %v2985
  %v2987 = vpop.xlane.xlu0 %2986
  %v2988 = vsel %vm824, %v2944, 0.0
  %2989 = vadd.xlane.f32.xlu0 %v2988
  %v2990 = vpop.xlane.xlu0 %2989
  %v2991 = vsel %vm824, %v2946, 0.0
  %2992 = vadd.xlane.f32.xlu0 %v2991
  %v2993 = vpop.xlane.xlu0 %2992
  %v2994 = vsel %vm824, %v2948, 0.0
  %2995 = vadd.xlane.f32.xlu0 %v2994
  %v2996 = vpop.xlane.xlu0 %2995
  %v2997 = vrcp.pop %v2951
  %v2998 = vrcp.pop %v2954
  %v2999 = vrcp.pop %v2957
  %v3000 = vrcp.pop %v2960
  %v3001 = vrcp.pop %v2963
  %v3002 = vrcp.pop %v2966
  %v3003 = vrcp.pop %v2969
  %v3004 = vrcp.pop %v2972
  %v3005 = vrcp.pop %v2975
  %v3006 = vrcp.pop %v2978
  %v3007 = vrcp.pop %v2981
  %v3008 = vrcp.pop %v2984
  %v3009 = vrcp.pop %v2987
  %v3010 = vrcp.pop %v2990
  %v3011 = vrcp.pop %v2993
  %v3012 = vrcp.pop %v2996
  %v3013 = vmul.f32 %v2918, %v2997
  %v3014 = vmul.f32 %v2920, %v2998
  %v3015 = vmul.f32 %v2922, %v2999
  %v3016 = vmul.f32 %v2924, %v3000
  %v3017 = vmul.f32 %v2926, %v3001
  %v3018 = vmul.f32 %v2928, %v3002
  %v3019 = vmul.f32 %v2930, %v3003
  %v3020 = vmul.f32 %v2932, %v3004
  %v3021 = vmul.f32 %v2934, %v3005
  %v3022 = vmul.f32 %v2936, %v3006
  %v3023 = vmul.f32 %v2938, %v3007
  %v3024 = vmul.f32 %v2940, %v3008
  %v3025 = vmul.f32 %v2942, %v3009
  %v3026 = vmul.f32 %v2944, %v3010
  %v3027 = vmul.f32 %v2946, %v3011
  %v3028 = vmul.f32 %v2948, %v3012
  %3029 = vrot.lane.b32.xlu0 %v391, 48
  %v3030 = vpop.permute.xlu0 %3029
  %3031 = vrot.lane.b32.xlu0 %v396, 48
  %v3032 = vpop.permute.xlu0 %3031
  %3033 = vrot.lane.b32.xlu0 %v401, 48
  %v3034 = vpop.permute.xlu0 %3033
  %3035 = vrot.lane.b32.xlu0 %v406, 48
  %v3036 = vpop.permute.xlu0 %3035
  %3037 = vrot.lane.b32.xlu0 %v411, 48
  %v3038 = vpop.permute.xlu0 %3037
  %3039 = vrot.lane.b32.xlu0 %v416, 48
  %v3040 = vpop.permute.xlu0 %3039
  %3041 = vrot.lane.b32.xlu0 %v421, 48
  %v3042 = vpop.permute.xlu0 %3041
  %3043 = vrot.lane.b32.xlu0 %v426, 48
  %v3044 = vpop.permute.xlu0 %3043
  %v3054 = vsel %vm824, %v3013, 0
  %v3057 = vsel %vm824, %v3014, 0
  %v3060 = vsel %vm824, %v3015, 0
  %v3063 = vsel %vm824, %v3016, 0
  %v3066 = vsel %vm824, %v3017, 0
  %v3069 = vsel %vm824, %v3018, 0
  %v3072 = vsel %vm824, %v3019, 0
  %v3075 = vsel %vm824, %v3020, 0
  %3077 = vmatprep.subr.mxu0 0.0
  %3078 = vmatpush1.msra.mxu0 %v3030
  %3079 = vmatprep.subr.mxu0 0.0
  %3080 = vmatpush1.msra.mxu0 %v3032
  %3081 = vmatprep.subr.mxu0 0.0
  %3082 = vmatpush1.msra.mxu0 %v3034
  %3083 = vmatprep.subr.mxu0 0.0
  %3084 = vmatpush1.msra.mxu0 %v3036
  %3085 = vmatprep.subr.mxu0 0.0
  %3086 = vmatpush1.msra.mxu0 %v3038
  %3087 = vmatprep.subr.mxu0 0.0
  %3088 = vmatpush1.msra.mxu0 %v3040
  %3089 = vmatprep.subr.mxu0 0.0
  %3090 = vmatpush1.msra.mxu0 %v3042
  %3091 = vmatprep.subr.mxu0 0.0
  %3092 = vmatpush1.msra.mxu0 %v3044
  %3093 = vmatprep.subr.mxu0 0.0
  %3094 = vmatpush1.msra.mxu0 0.0
  %3095 = vmatprep.subr.mxu0 0.0
  %3096 = vmatpush1.msra.mxu0 0.0
  %3097 = vmatprep.subr.mxu0 0.0
  %3098 = vmatpush1.msra.mxu0 0.0
  %3099 = vmatprep.subr.mxu0 0.0
  %3100 = vmatpush1.msra.mxu0 0.0
  %3101 = vmatprep.subr.mxu0 0.0
  %3102 = vmatpush1.msra.mxu0 0.0
  %3103 = vmatprep.subr.mxu0 0.0
  %3104 = vmatpush1.msra.mxu0 0.0
  %3105 = vmatprep.subr.mxu0 0.0
  %3106 = vmatpush1.msra.mxu0 0.0
  %3107 = vmatprep.subr.mxu0 0.0
  %3108 = vmatpush1.msra.mxu0 0.0
  %3109 = vmatprep.subr.mxu0 0.0
  %3110 = vmatpush1.msra.mxu0 0.0
  %3111 = vmatprep.subr.mxu0 0.0
  %3112 = vmatpush1.msra.mxu0 0.0
  %3113 = vmatprep.subr.mxu0 0.0
  %3114 = vmatpush1.msra.mxu0 0.0
  %3115 = vmatprep.subr.mxu0 0.0
  %3116 = vmatpush1.msra.mxu0 0.0
  %3117 = vmatprep.subr.mxu0 0.0
  %3118 = vmatpush1.msra.mxu0 0.0
  %3119 = vmatprep.subr.mxu0 0.0
  %3120 = vmatpush1.msra.mxu0 0.0
  %3121 = vmatprep.subr.mxu0 0.0
  %3122 = vmatpush1.msra.mxu0 0.0
  %3123 = vmatprep.subr.mxu0 0.0
  %3124 = vmatpush1.msra.mxu0 0.0
  %3125 = vmatprep.subr.mxu0 0.0
  %3126 = vmatpush1.msra.mxu0 0.0
  %3127 = vmatprep.subr.mxu0 0.0
  %3128 = vmatpush1.msra.mxu0 0.0
  %3129 = vmatprep.subr.mxu0 0.0
  %3130 = vmatpush1.msra.mxu0 0.0
  %3131 = vmatprep.subr.mxu0 0.0
  %3132 = vmatpush1.msra.mxu0 0.0
  %3133 = vmatprep.subr.mxu0 0.0
  %3134 = vmatpush1.msra.mxu0 0.0
  %3135 = vmatprep.subr.mxu0 0.0
  %3136 = vmatpush1.msra.mxu0 0.0
  %3137 = vmatprep.subr.mxu0 0.0
  %3138 = vmatpush1.msra.mxu0 0.0
  %3139 = vmatprep.subr.mxu0 0.0
  %3140 = vmatpush1.msra.mxu0 0.0
  %3141 = vmatprep.mubr.f32.mxu0 0.0
  %3142 = vmatmul.mubr.f32.gmra.mrb[0].mxu0 %v3054
  %v3143 = vpop.f32.mrb[0].mxu0
  %v3144 = vadd.f32 0.0, %v3143
  %v3145 = vpop.f32.mrb[0].mxu0
  %3146 = vmatprep.mubr.f32.mxu0 0.0
  %3147 = vmatmul.mubr.f32.gmra.mrb[0].mxu0 %v3057
  %v3148 = vpop.f32.mrb[0].mxu0
  %v3149 = vadd.f32 0.0, %v3148
  %v3150 = vpop.f32.mrb[0].mxu0
  %3151 = vmatprep.mubr.f32.mxu0 0.0
  %3152 = vmatmul.mubr.f32.gmra.mrb[0].mxu0 %v3060
  %v3153 = vpop.f32.mrb[0].mxu0
  %v3154 = vadd.f32 0.0, %v3153
  %v3155 = vpop.f32.mrb[0].mxu0
  %3156 = vmatprep.mubr.f32.mxu0 0.0
  %3157 = vmatmul.mubr.f32.gmra.mrb[0].mxu0 %v3063
  %v3158 = vpop.f32.mrb[0].mxu0
  %v3159 = vadd.f32 0.0, %v3158
  %v3160 = vpop.f32.mrb[0].mxu0
  %3161 = vmatprep.mubr.f32.mxu0 0.0
  %3162 = vmatmul.mubr.f32.gmra.mrb[0].mxu0 %v3066
  %v3163 = vpop.f32.mrb[0].mxu0
  %v3164 = vadd.f32 0.0, %v3163
  %v3165 = vpop.f32.mrb[0].mxu0
  %3166 = vmatprep.mubr.f32.mxu0 0.0
  %3167 = vmatmul.mubr.f32.gmra.mrb[0].mxu0 %v3069
  %v3168 = vpop.f32.mrb[0].mxu0
  %v3169 = vadd.f32 0.0, %v3168
  %v3170 = vpop.f32.mrb[0].mxu0
  %3171 = vmatprep.mubr.f32.mxu0 0.0
  %3172 = vmatmul.mubr.f32.gmra.mrb[0].mxu0 %v3072
  %v3173 = vpop.f32.mrb[0].mxu0
  %v3174 = vadd.f32 0.0, %v3173
  %v3175 = vpop.f32.mrb[0].mxu0
  %3176 = vmatprep.mubr.f32.mxu0 0.0
  %3177 = vmatmul.mubr.f32.gmra.mrb[0].mxu0 %v3075
  %v3178 = vpop.f32.mrb[0].mxu0
  %v3179 = vadd.f32 0.0, %v3178
  %v3180 = vpop.f32.mrb[0].mxu0
  %3181 = vdwg.mxu0
  %3182 = vrot.lane.b32.xlu0 %v431, 48
  %v3183 = vpop.permute.xlu0 %3182
  %3184 = vrot.lane.b32.xlu0 %v436, 48
  %v3185 = vpop.permute.xlu0 %3184
  %3186 = vrot.lane.b32.xlu0 %v441, 48
  %v3187 = vpop.permute.xlu0 %3186
  %3188 = vrot.lane.b32.xlu0 %v446, 48
  %v3189 = vpop.permute.xlu0 %3188
  %3190 = vrot.lane.b32.xlu0 %v451, 48
  %v3191 = vpop.permute.xlu0 %3190
  %3192 = vrot.lane.b32.xlu0 %v456, 48
  %v3193 = vpop.permute.xlu0 %3192
  %3194 = vrot.lane.b32.xlu0 %v461, 48
  %v3195 = vpop.permute.xlu0 %3194
  %3196 = vrot.lane.b32.xlu0 %v466, 48
  %v3197 = vpop.permute.xlu0 %3196
  %v3207 = vsel %vm824, %v3021, 0
  %v3210 = vsel %vm824, %v3022, 0
  %v3213 = vsel %vm824, %v3023, 0
  %v3216 = vsel %vm824, %v3024, 0
  %v3219 = vsel %vm824, %v3025, 0
  %v3222 = vsel %vm824, %v3026, 0
  %v3225 = vsel %vm824, %v3027, 0
  %v3228 = vsel %vm824, %v3028, 0
  %3230 = vmatprep.subr.mxu0 0.0
  %3231 = vmatpush1.msra.mxu0 %v3183
  %3232 = vmatprep.subr.mxu0 0.0
  %3233 = vmatpush1.msra.mxu0 %v3185
  %3234 = vmatprep.subr.mxu0 0.0
  %3235 = vmatpush1.msra.mxu0 %v3187
  %3236 = vmatprep.subr.mxu0 0.0
  %3237 = vmatpush1.msra.mxu0 %v3189
  %3238 = vmatprep.subr.mxu0 0.0
  %3239 = vmatpush1.msra.mxu0 %v3191
  %3240 = vmatprep.subr.mxu0 0.0
  %3241 = vmatpush1.msra.mxu0 %v3193
  %3242 = vmatprep.subr.mxu0 0.0
  %3243 = vmatpush1.msra.mxu0 %v3195
  %3244 = vmatprep.subr.mxu0 0.0
  %3245 = vmatpush1.msra.mxu0 %v3197
  %3246 = vmatprep.subr.mxu0 0.0
  %3247 = vmatpush1.msra.mxu0 0.0
  %3248 = vmatprep.subr.mxu0 0.0
  %3249 = vmatpush1.msra.mxu0 0.0
  %3250 = vmatprep.subr.mxu0 0.0
  %3251 = vmatpush1.msra.mxu0 0.0
  %3252 = vmatprep.subr.mxu0 0.0
  %3253 = vmatpush1.msra.mxu0 0.0
  %3254 = vmatprep.subr.mxu0 0.0
  %3255 = vmatpush1.msra.mxu0 0.0
  %3256 = vmatprep.subr.mxu0 0.0
  %3257 = vmatpush1.msra.mxu0 0.0
  %3258 = vmatprep.subr.mxu0 0.0
  %3259 = vmatpush1.msra.mxu0 0.0
  %3260 = vmatprep.subr.mxu0 0.0
  %3261 = vmatpush1.msra.mxu0 0.0
  %3262 = vmatprep.subr.mxu0 0.0
  %3263 = vmatpush1.msra.mxu0 0.0
  %3264 = vmatprep.subr.mxu0 0.0
  %3265 = vmatpush1.msra.mxu0 0.0
  %3266 = vmatprep.subr.mxu0 0.0
  %3267 = vmatpush1.msra.mxu0 0.0
  %3268 = vmatprep.subr.mxu0 0.0
  %3269 = vmatpush1.msra.mxu0 0.0
  %3270 = vmatprep.subr.mxu0 0.0
  %3271 = vmatpush1.msra.mxu0 0.0
  %3272 = vmatprep.subr.mxu0 0.0
  %3273 = vmatpush1.msra.mxu0 0.0
  %3274 = vmatprep.subr.mxu0 0.0
  %3275 = vmatpush1.msra.mxu0 0.0
  %3276 = vmatprep.subr.mxu0 0.0
  %3277 = vmatpush1.msra.mxu0 0.0
  %3278 = vmatprep.subr.mxu0 0.0
  %3279 = vmatpush1.msra.mxu0 0.0
  %3280 = vmatprep.subr.mxu0 0.0
  %3281 = vmatpush1.msra.mxu0 0.0
  %3282 = vmatprep.subr.mxu0 0.0
  %3283 = vmatpush1.msra.mxu0 0.0
  %3284 = vmatprep.subr.mxu0 0.0
  %3285 = vmatpush1.msra.mxu0 0.0
  %3286 = vmatprep.subr.mxu0 0.0
  %3287 = vmatpush1.msra.mxu0 0.0
  %3288 = vmatprep.subr.mxu0 0.0
  %3289 = vmatpush1.msra.mxu0 0.0
  %3290 = vmatprep.subr.mxu0 0.0
  %3291 = vmatpush1.msra.mxu0 0.0
  %3292 = vmatprep.subr.mxu0 0.0
  %3293 = vmatpush1.msra.mxu0 0.0
  %3294 = vmatprep.mubr.f32.mxu0 0.0
  %3295 = vmatmul.mubr.f32.gmra.mrb[0].mxu0 %v3207
  %v3296 = vpop.f32.mrb[0].mxu0
  %v3297 = vadd.f32 0.0, %v3296
  %v3298 = vpop.f32.mrb[0].mxu0
  %3299 = vmatprep.mubr.f32.mxu0 0.0
  %3300 = vmatmul.mubr.f32.gmra.mrb[0].mxu0 %v3210
  %v3301 = vpop.f32.mrb[0].mxu0
  %v3302 = vadd.f32 0.0, %v3301
  %v3303 = vpop.f32.mrb[0].mxu0
  %3304 = vmatprep.mubr.f32.mxu0 0.0
  %3305 = vmatmul.mubr.f32.gmra.mrb[0].mxu0 %v3213
  %v3306 = vpop.f32.mrb[0].mxu0
  %v3307 = vadd.f32 0.0, %v3306
  %v3308 = vpop.f32.mrb[0].mxu0
  %3309 = vmatprep.mubr.f32.mxu0 0.0
  %3310 = vmatmul.mubr.f32.gmra.mrb[0].mxu0 %v3216
  %v3311 = vpop.f32.mrb[0].mxu0
  %v3312 = vadd.f32 0.0, %v3311
  %v3313 = vpop.f32.mrb[0].mxu0
  %3314 = vmatprep.mubr.f32.mxu0 0.0
  %3315 = vmatmul.mubr.f32.gmra.mrb[0].mxu0 %v3219
  %v3316 = vpop.f32.mrb[0].mxu0
  %v3317 = vadd.f32 0.0, %v3316
  %v3318 = vpop.f32.mrb[0].mxu0
  %3319 = vmatprep.mubr.f32.mxu0 0.0
  %3320 = vmatmul.mubr.f32.gmra.mrb[0].mxu0 %v3222
  %v3321 = vpop.f32.mrb[0].mxu0
  %v3322 = vadd.f32 0.0, %v3321
  %v3323 = vpop.f32.mrb[0].mxu0
  %3324 = vmatprep.mubr.f32.mxu0 0.0
  %3325 = vmatmul.mubr.f32.gmra.mrb[0].mxu0 %v3225
  %v3326 = vpop.f32.mrb[0].mxu0
  %v3327 = vadd.f32 0.0, %v3326
  %v3328 = vpop.f32.mrb[0].mxu0
  %3329 = vmatprep.mubr.f32.mxu0 0.0
  %3330 = vmatmul.mubr.f32.gmra.mrb[0].mxu0 %v3228
  %v3331 = vpop.f32.mrb[0].mxu0
  %v3332 = vadd.f32 0.0, %v3331
  %v3333 = vpop.f32.mrb[0].mxu0
  %3334 = vdwg.mxu0
  %v3335 = vld [vmem:[%s3 + $0x10] sm:$0xff]
  %v3337 = vsel %vm509, %v3144, 0
  %v3340 = vsel %vm509, %v3149, 0
  %v3343 = vsel %vm509, %v3154, 0
  %v3346 = vsel %vm509, %v3159, 0
  %v3349 = vsel %vm509, %v3164, 0
  %v3352 = vsel %vm509, %v3169, 0
  %v3355 = vsel %vm509, %v3174, 0
  %v3358 = vsel %vm509, %v3179, 0
  %v3361 = vsel %vm509, %v3297, 0
  %v3364 = vsel %vm509, %v3302, 0
  %v3367 = vsel %vm509, %v3307, 0
  %v3370 = vsel %vm509, %v3312, 0
  %v3373 = vsel %vm509, %v3317, 0
  %v3376 = vsel %vm509, %v3322, 0
  %v3379 = vsel %vm509, %v3327, 0
  %v3382 = vsel %vm509, %v3332, 0
  %3384 = vmatprep.subr.mxu0 0.0
  %3385 = vmatpush1.msra.mxu0 %v3335
  %3386 = vmatprep.subr.mxu0 0.0
  %3387 = vmatpush1.msra.mxu0 0.0
  %3388 = vmatprep.subr.mxu0 0.0
  %3389 = vmatpush1.msra.mxu0 0.0
  %3390 = vmatprep.subr.mxu0 0.0
  %3391 = vmatpush1.msra.mxu0 0.0
  %3392 = vmatprep.subr.mxu0 0.0
  %3393 = vmatpush1.msra.mxu0 0.0
  %3394 = vmatprep.subr.mxu0 0.0
  %3395 = vmatpush1.msra.mxu0 0.0
  %3396 = vmatprep.subr.mxu0 0.0
  %3397 = vmatpush1.msra.mxu0 0.0
  %3398 = vmatprep.subr.mxu0 0.0
  %3399 = vmatpush1.msra.mxu0 0.0
  %3400 = vmatprep.subr.mxu0 0.0
  %3401 = vmatpush1.msra.mxu0 0.0
  %3402 = vmatprep.subr.mxu0 0.0
  %3403 = vmatpush1.msra.mxu0 0.0
  %3404 = vmatprep.subr.mxu0 0.0
  %3405 = vmatpush1.msra.mxu0 0.0
  %3406 = vmatprep.subr.mxu0 0.0
  %3407 = vmatpush1.msra.mxu0 0.0
  %3408 = vmatprep.subr.mxu0 0.0
  %3409 = vmatpush1.msra.mxu0 0.0
  %3410 = vmatprep.subr.mxu0 0.0
  %3411 = vmatpush1.msra.mxu0 0.0
  %3412 = vmatprep.subr.mxu0 0.0
  %3413 = vmatpush1.msra.mxu0 0.0
  %3414 = vmatprep.subr.mxu0 0.0
  %3415 = vmatpush1.msra.mxu0 0.0
  %3416 = vmatprep.subr.mxu0 0.0
  %3417 = vmatpush1.msra.mxu0 0.0
  %3418 = vmatprep.subr.mxu0 0.0
  %3419 = vmatpush1.msra.mxu0 0.0
  %3420 = vmatprep.subr.mxu0 0.0
  %3421 = vmatpush1.msra.mxu0 0.0
  %3422 = vmatprep.subr.mxu0 0.0
  %3423 = vmatpush1.msra.mxu0 0.0
  %3424 = vmatprep.subr.mxu0 0.0
  %3425 = vmatpush1.msra.mxu0 0.0
  %3426 = vmatprep.subr.mxu0 0.0
  %3427 = vmatpush1.msra.mxu0 0.0
  %3428 = vmatprep.subr.mxu0 0.0
  %3429 = vmatpush1.msra.mxu0 0.0
  %3430 = vmatprep.subr.mxu0 0.0
  %3431 = vmatpush1.msra.mxu0 0.0
  %3432 = vmatprep.subr.mxu0 0.0
  %3433 = vmatpush1.msra.mxu0 0.0
  %3434 = vmatprep.subr.mxu0 0.0
  %3435 = vmatpush1.msra.mxu0 0.0
  %3436 = vmatprep.subr.mxu0 0.0
  %3437 = vmatpush1.msra.mxu0 0.0
  %3438 = vmatprep.subr.mxu0 0.0
  %3439 = vmatpush1.msra.mxu0 0.0
  %3440 = vmatprep.subr.mxu0 0.0
  %3441 = vmatpush1.msra.mxu0 0.0
  %3442 = vmatprep.subr.mxu0 0.0
  %3443 = vmatpush1.msra.mxu0 0.0
  %3444 = vmatprep.subr.mxu0 0.0
  %3445 = vmatpush1.msra.mxu0 0.0
  %3446 = vmatprep.subr.mxu0 0.0
  %3447 = vmatpush1.msra.mxu0 0.0
  %3448 = vmatprep.mubr.f32.mxu0 0.0
  %3449 = vmatmul.mubr.f32.gmra.mrb[0].mxu0 %v3337
  %v3450 = vpop.f32.mrb[0].mxu0
  %v3451 = vadd.f32 0.0, %v3450
  %v3452 = vpop.f32.mrb[0].mxu0
  %3453 = vmatprep.mubr.f32.mxu0 0.0
  %3454 = vmatmul.mubr.f32.gmra.mrb[0].mxu0 %v3340
  %v3455 = vpop.f32.mrb[0].mxu0
  %v3456 = vadd.f32 0.0, %v3455
  %v3457 = vpop.f32.mrb[0].mxu0
  %3458 = vmatprep.mubr.f32.mxu0 0.0
  %3459 = vmatmul.mubr.f32.gmra.mrb[0].mxu0 %v3343
  %v3460 = vpop.f32.mrb[0].mxu0
  %v3461 = vadd.f32 0.0, %v3460
  %v3462 = vpop.f32.mrb[0].mxu0
  %3463 = vmatprep.mubr.f32.mxu0 0.0
  %3464 = vmatmul.mubr.f32.gmra.mrb[0].mxu0 %v3346
  %v3465 = vpop.f32.mrb[0].mxu0
  %v3466 = vadd.f32 0.0, %v3465
  %v3467 = vpop.f32.mrb[0].mxu0
  %3468 = vmatprep.mubr.f32.mxu0 0.0
  %3469 = vmatmul.mubr.f32.gmra.mrb[0].mxu0 %v3349
  %v3470 = vpop.f32.mrb[0].mxu0
  %v3471 = vadd.f32 0.0, %v3470
  %v3472 = vpop.f32.mrb[0].mxu0
  %3473 = vmatprep.mubr.f32.mxu0 0.0
  %3474 = vmatmul.mubr.f32.gmra.mrb[0].mxu0 %v3352
  %v3475 = vpop.f32.mrb[0].mxu0
  %v3476 = vadd.f32 0.0, %v3475
  %v3477 = vpop.f32.mrb[0].mxu0
  %3478 = vmatprep.mubr.f32.mxu0 0.0
  %3479 = vmatmul.mubr.f32.gmra.mrb[0].mxu0 %v3355
  %v3480 = vpop.f32.mrb[0].mxu0
  %v3481 = vadd.f32 0.0, %v3480
  %v3482 = vpop.f32.mrb[0].mxu0
  %3483 = vmatprep.mubr.f32.mxu0 0.0
  %3484 = vmatmul.mubr.f32.gmra.mrb[0].mxu0 %v3358
  %v3485 = vpop.f32.mrb[0].mxu0
  %v3486 = vadd.f32 0.0, %v3485
  %v3487 = vpop.f32.mrb[0].mxu0
  %3488 = vmatprep.mubr.f32.mxu0 0.0
  %3489 = vmatmul.mubr.f32.gmra.mrb[0].mxu0 %v3361
  %v3490 = vpop.f32.mrb[0].mxu0
  %v3491 = vadd.f32 0.0, %v3490
  %v3492 = vpop.f32.mrb[0].mxu0
  %3493 = vmatprep.mubr.f32.mxu0 0.0
  %3494 = vmatmul.mubr.f32.gmra.mrb[0].mxu0 %v3364
  %v3495 = vpop.f32.mrb[0].mxu0
  %v3496 = vadd.f32 0.0, %v3495
  %v3497 = vpop.f32.mrb[0].mxu0
  %3498 = vmatprep.mubr.f32.mxu0 0.0
  %3499 = vmatmul.mubr.f32.gmra.mrb[0].mxu0 %v3367
  %v3500 = vpop.f32.mrb[0].mxu0
  %v3501 = vadd.f32 0.0, %v3500
  %v3502 = vpop.f32.mrb[0].mxu0
  %3503 = vmatprep.mubr.f32.mxu0 0.0
  %3504 = vmatmul.mubr.f32.gmra.mrb[0].mxu0 %v3370
  %v3505 = vpop.f32.mrb[0].mxu0
  %v3506 = vadd.f32 0.0, %v3505
  %v3507 = vpop.f32.mrb[0].mxu0
  %3508 = vmatprep.mubr.f32.mxu0 0.0
  %3509 = vmatmul.mubr.f32.gmra.mrb[0].mxu0 %v3373
  %v3510 = vpop.f32.mrb[0].mxu0
  %v3511 = vadd.f32 0.0, %v3510
  %v3512 = vpop.f32.mrb[0].mxu0
  %3513 = vmatprep.mubr.f32.mxu0 0.0
  %3514 = vmatmul.mubr.f32.gmra.mrb[0].mxu0 %v3376
  %v3515 = vpop.f32.mrb[0].mxu0
  %v3516 = vadd.f32 0.0, %v3515
  %v3517 = vpop.f32.mrb[0].mxu0
  %3518 = vmatprep.mubr.f32.mxu0 0.0
  %3519 = vmatmul.mubr.f32.gmra.mrb[0].mxu0 %v3379
  %v3520 = vpop.f32.mrb[0].mxu0
  %v3521 = vadd.f32 0.0, %v3520
  %v3522 = vpop.f32.mrb[0].mxu0
  %3523 = vmatprep.mubr.f32.mxu0 0.0
  %3524 = vmatmul.mubr.f32.gmra.mrb[0].mxu0 %v3382
  %v3525 = vpop.f32.mrb[0].mxu0
  %v3526 = vadd.f32 0.0, %v3525
  %v3527 = vpop.f32.mrb[0].mxu0
  %3528 = vdwg.mxu0
  %v3529 = vadd.f32 %v2437, %v3451
  %v3530 = vadd.f32 %v2442, %v3456
  %v3531 = vadd.f32 %v2447, %v3461
  %v3532 = vadd.f32 %v2452, %v3466
  %v3533 = vadd.f32 %v2457, %v3471
  %v3534 = vadd.f32 %v2462, %v3476
  %v3535 = vadd.f32 %v2467, %v3481
  %v3536 = vadd.f32 %v2472, %v3486
  %v3537 = vadd.f32 %v2477, %v3491
  %v3538 = vadd.f32 %v2482, %v3496
  %v3539 = vadd.f32 %v2487, %v3501
  %v3540 = vadd.f32 %v2492, %v3506
  %v3541 = vadd.f32 %v2497, %v3511
  %v3542 = vadd.f32 %v2502, %v3516
  %v3543 = vadd.f32 %v2507, %v3521
  %v3544 = vadd.f32 %v2512, %v3526
  %3545 = vrot.lane.b32.xlu0 %v469, 104
  %v3546 = vpop.permute.xlu0 %3545
  %3547 = vrot.lane.b32.xlu0 %v470, 104
  %v3548 = vpop.permute.xlu0 %3547
  %3549 = vrot.lane.b32.xlu0 %v471, 104
  %v3550 = vpop.permute.xlu0 %3549
  %3551 = vrot.lane.b32.xlu0 %v472, 104
  %v3552 = vpop.permute.xlu0 %3551
  %3553 = vrot.lane.b32.xlu0 %v473, 104
  %v3554 = vpop.permute.xlu0 %3553
  %3555 = vrot.lane.b32.xlu0 %v474, 104
  %v3556 = vpop.permute.xlu0 %3555
  %3557 = vrot.lane.b32.xlu0 %v475, 104
  %v3558 = vpop.permute.xlu0 %3557
  %3559 = vrot.lane.b32.xlu0 %v476, 104
  %v3560 = vpop.permute.xlu0 %3559
  %3561 = vrot.lane.b32.xlu0 %v391, 72
  %v3562 = vpop.permute.xlu0 %3561
  %3563 = vrot.lane.b32.xlu0 %v396, 72
  %v3564 = vpop.permute.xlu0 %3563
  %3565 = vrot.lane.b32.xlu0 %v401, 72
  %v3566 = vpop.permute.xlu0 %3565
  %3567 = vrot.lane.b32.xlu0 %v406, 72
  %v3568 = vpop.permute.xlu0 %3567
  %3569 = vrot.lane.b32.xlu0 %v411, 72
  %v3570 = vpop.permute.xlu0 %3569
  %3571 = vrot.lane.b32.xlu0 %v416, 72
  %v3572 = vpop.permute.xlu0 %3571
  %3573 = vrot.lane.b32.xlu0 %v421, 72
  %v3574 = vpop.permute.xlu0 %3573
  %3575 = vrot.lane.b32.xlu0 %v426, 72
  %v3576 = vpop.permute.xlu0 %3575
  %v3577 = vsel %vm509, %v3546, 0
  %v3579 = vsel %vm509, %v3548, 0
  %v3581 = vsel %vm509, %v3550, 0
  %v3583 = vsel %vm509, %v3552, 0
  %v3585 = vsel %vm509, %v3554, 0
  %v3587 = vsel %vm509, %v3556, 0
  %v3589 = vsel %vm509, %v3558, 0
  %v3591 = vsel %vm509, %v3560, 0
  %v3593 = vsel %vm509, %v3562, 0
  %v3595 = vsel %vm509, %v3564, 0
  %v3597 = vsel %vm509, %v3566, 0
  %v3599 = vsel %vm509, %v3568, 0
  %v3601 = vsel %vm509, %v3570, 0
  %v3603 = vsel %vm509, %v3572, 0
  %v3605 = vsel %vm509, %v3574, 0
  %v3607 = vsel %vm509, %v3576, 0
  %3609 = vmatprep.subr.mxu0 0.0
  %3610 = vmatpush1.xpose.msra.mxu0 %v3593
  %3611 = vmatprep.subr.mxu0 0.0
  %3612 = vmatpush1.xpose.msra.mxu0 %v3595
  %3613 = vmatprep.subr.mxu0 0.0
  %3614 = vmatpush1.xpose.msra.mxu0 %v3597
  %3615 = vmatprep.subr.mxu0 0.0
  %3616 = vmatpush1.xpose.msra.mxu0 %v3599
  %3617 = vmatprep.subr.mxu0 0.0
  %3618 = vmatpush1.xpose.msra.mxu0 %v3601
  %3619 = vmatprep.subr.mxu0 0.0
  %3620 = vmatpush1.xpose.msra.mxu0 %v3603
  %3621 = vmatprep.subr.mxu0 0.0
  %3622 = vmatpush1.xpose.msra.mxu0 %v3605
  %3623 = vmatprep.subr.mxu0 0.0
  %3624 = vmatpush1.xpose.msra.mxu0 %v3607
  %3625 = vmatprep.subr.mxu0 0.0
  %3626 = vmatpush1.xpose.msra.mxu0 0.0
  %3627 = vmatprep.subr.mxu0 0.0
  %3628 = vmatpush1.xpose.msra.mxu0 0.0
  %3629 = vmatprep.subr.mxu0 0.0
  %3630 = vmatpush1.xpose.msra.mxu0 0.0
  %3631 = vmatprep.subr.mxu0 0.0
  %3632 = vmatpush1.xpose.msra.mxu0 0.0
  %3633 = vmatprep.subr.mxu0 0.0
  %3634 = vmatpush1.xpose.msra.mxu0 0.0
  %3635 = vmatprep.subr.mxu0 0.0
  %3636 = vmatpush1.xpose.msra.mxu0 0.0
  %3637 = vmatprep.subr.mxu0 0.0
  %3638 = vmatpush1.xpose.msra.mxu0 0.0
  %3639 = vmatprep.subr.mxu0 0.0
  %3640 = vmatpush1.xpose.msra.mxu0 0.0
  %3641 = vmatprep.subr.mxu0 0.0
  %3642 = vmatpush1.xpose.msra.mxu0 0.0
  %3643 = vmatprep.subr.mxu0 0.0
  %3644 = vmatpush1.xpose.msra.mxu0 0.0
  %3645 = vmatprep.subr.mxu0 0.0
  %3646 = vmatpush1.xpose.msra.mxu0 0.0
  %3647 = vmatprep.subr.mxu0 0.0
  %3648 = vmatpush1.xpose.msra.mxu0 0.0
  %3649 = vmatprep.subr.mxu0 0.0
  %3650 = vmatpush1.xpose.msra.mxu0 0.0
  %3651 = vmatprep.subr.mxu0 0.0
  %3652 = vmatpush1.xpose.msra.mxu0 0.0
  %3653 = vmatprep.subr.mxu0 0.0
  %3654 = vmatpush1.xpose.msra.mxu0 0.0
  %3655 = vmatprep.subr.mxu0 0.0
  %3656 = vmatpush1.xpose.msra.mxu0 0.0
  %3657 = vmatprep.subr.mxu0 0.0
  %3658 = vmatpush1.xpose.msra.mxu0 0.0
  %3659 = vmatprep.subr.mxu0 0.0
  %3660 = vmatpush1.xpose.msra.mxu0 0.0
  %3661 = vmatprep.subr.mxu0 0.0
  %3662 = vmatpush1.xpose.msra.mxu0 0.0
  %3663 = vmatprep.subr.mxu0 0.0
  %3664 = vmatpush1.xpose.msra.mxu0 0.0
  %3665 = vmatprep.subr.mxu0 0.0
  %3666 = vmatpush1.xpose.msra.mxu0 0.0
  %3667 = vmatprep.subr.mxu0 0.0
  %3668 = vmatpush1.xpose.msra.mxu0 0.0
  %3669 = vmatprep.subr.mxu0 0.0
  %3670 = vmatpush1.xpose.msra.mxu0 0.0
  %3671 = vmatprep.subr.mxu0 0.0
  %3672 = vmatpush1.xpose.msra.mxu0 0.0
  %3673 = vmatprep.mubr.f32.mxu0 0.0
  %3674 = vmatmul.mubr.f32.gmra.mrb[0].mxu0 %v3577
  %v3675 = vpop.f32.mrb[0].mxu0
  %v3676 = vadd.f32 0.0, %v3675
  %v3677 = vpop.f32.mrb[0].mxu0
  %3678 = vmatprep.mubr.f32.mxu0 0.0
  %3679 = vmatmul.mubr.f32.gmra.mrb[0].mxu0 %v3579
  %v3680 = vpop.f32.mrb[0].mxu0
  %v3681 = vadd.f32 0.0, %v3680
  %v3682 = vpop.f32.mrb[0].mxu0
  %3683 = vmatprep.mubr.f32.mxu0 0.0
  %3684 = vmatmul.mubr.f32.gmra.mrb[0].mxu0 %v3581
  %v3685 = vpop.f32.mrb[0].mxu0
  %v3686 = vadd.f32 0.0, %v3685
  %v3687 = vpop.f32.mrb[0].mxu0
  %3688 = vmatprep.mubr.f32.mxu0 0.0
  %3689 = vmatmul.mubr.f32.gmra.mrb[0].mxu0 %v3583
  %v3690 = vpop.f32.mrb[0].mxu0
  %v3691 = vadd.f32 0.0, %v3690
  %v3692 = vpop.f32.mrb[0].mxu0
  %3693 = vmatprep.mubr.f32.mxu0 0.0
  %3694 = vmatmul.mubr.f32.gmra.mrb[0].mxu0 %v3585
  %v3695 = vpop.f32.mrb[0].mxu0
  %v3696 = vadd.f32 0.0, %v3695
  %v3697 = vpop.f32.mrb[0].mxu0
  %3698 = vmatprep.mubr.f32.mxu0 0.0
  %3699 = vmatmul.mubr.f32.gmra.mrb[0].mxu0 %v3587
  %v3700 = vpop.f32.mrb[0].mxu0
  %v3701 = vadd.f32 0.0, %v3700
  %v3702 = vpop.f32.mrb[0].mxu0
  %3703 = vmatprep.mubr.f32.mxu0 0.0
  %3704 = vmatmul.mubr.f32.gmra.mrb[0].mxu0 %v3589
  %v3705 = vpop.f32.mrb[0].mxu0
  %v3706 = vadd.f32 0.0, %v3705
  %v3707 = vpop.f32.mrb[0].mxu0
  %3708 = vmatprep.mubr.f32.mxu0 0.0
  %3709 = vmatmul.mubr.f32.gmra.mrb[0].mxu0 %v3591
  %v3710 = vpop.f32.mrb[0].mxu0
  %v3711 = vadd.f32 0.0, %v3710
  %v3712 = vpop.f32.mrb[0].mxu0
  %3713 = vdwg.mxu0
  %3714 = vrot.lane.b32.xlu0 %v477, 104
  %v3715 = vpop.permute.xlu0 %3714
  %3716 = vrot.lane.b32.xlu0 %v478, 104
  %v3717 = vpop.permute.xlu0 %3716
  %3718 = vrot.lane.b32.xlu0 %v479, 104
  %v3719 = vpop.permute.xlu0 %3718
  %3720 = vrot.lane.b32.xlu0 %v480, 104
  %v3721 = vpop.permute.xlu0 %3720
  %3722 = vrot.lane.b32.xlu0 %v481, 104
  %v3723 = vpop.permute.xlu0 %3722
  %3724 = vrot.lane.b32.xlu0 %v482, 104
  %v3725 = vpop.permute.xlu0 %3724
  %3726 = vrot.lane.b32.xlu0 %v483, 104
  %v3727 = vpop.permute.xlu0 %3726
  %3728 = vrot.lane.b32.xlu0 %v484, 104
  %v3729 = vpop.permute.xlu0 %3728
  %3730 = vrot.lane.b32.xlu0 %v431, 72
  %v3731 = vpop.permute.xlu0 %3730
  %3732 = vrot.lane.b32.xlu0 %v436, 72
  %v3733 = vpop.permute.xlu0 %3732
  %3734 = vrot.lane.b32.xlu0 %v441, 72
  %v3735 = vpop.permute.xlu0 %3734
  %3736 = vrot.lane.b32.xlu0 %v446, 72
  %v3737 = vpop.permute.xlu0 %3736
  %3738 = vrot.lane.b32.xlu0 %v451, 72
  %v3739 = vpop.permute.xlu0 %3738
  %3740 = vrot.lane.b32.xlu0 %v456, 72
  %v3741 = vpop.permute.xlu0 %3740
  %3742 = vrot.lane.b32.xlu0 %v461, 72
  %v3743 = vpop.permute.xlu0 %3742
  %3744 = vrot.lane.b32.xlu0 %v466, 72
  %v3745 = vpop.permute.xlu0 %3744
  %v3746 = vsel %vm509, %v3715, 0
  %v3748 = vsel %vm509, %v3717, 0
  %v3750 = vsel %vm509, %v3719, 0
  %v3752 = vsel %vm509, %v3721, 0
  %v3754 = vsel %vm509, %v3723, 0
  %v3756 = vsel %vm509, %v3725, 0
  %v3758 = vsel %vm509, %v3727, 0
  %v3760 = vsel %vm509, %v3729, 0
  %v3762 = vsel %vm509, %v3731, 0
  %v3764 = vsel %vm509, %v3733, 0
  %v3766 = vsel %vm509, %v3735, 0
  %v3768 = vsel %vm509, %v3737, 0
  %v3770 = vsel %vm509, %v3739, 0
  %v3772 = vsel %vm509, %v3741, 0
  %v3774 = vsel %vm509, %v3743, 0
  %v3776 = vsel %vm509, %v3745, 0
  %3778 = vmatprep.subr.mxu0 0.0
  %3779 = vmatpush1.xpose.msra.mxu0 %v3762
  %3780 = vmatprep.subr.mxu0 0.0
  %3781 = vmatpush1.xpose.msra.mxu0 %v3764
  %3782 = vmatprep.subr.mxu0 0.0
  %3783 = vmatpush1.xpose.msra.mxu0 %v3766
  %3784 = vmatprep.subr.mxu0 0.0
  %3785 = vmatpush1.xpose.msra.mxu0 %v3768
  %3786 = vmatprep.subr.mxu0 0.0
  %3787 = vmatpush1.xpose.msra.mxu0 %v3770
  %3788 = vmatprep.subr.mxu0 0.0
  %3789 = vmatpush1.xpose.msra.mxu0 %v3772
  %3790 = vmatprep.subr.mxu0 0.0
  %3791 = vmatpush1.xpose.msra.mxu0 %v3774
  %3792 = vmatprep.subr.mxu0 0.0
  %3793 = vmatpush1.xpose.msra.mxu0 %v3776
  %3794 = vmatprep.subr.mxu0 0.0
  %3795 = vmatpush1.xpose.msra.mxu0 0.0
  %3796 = vmatprep.subr.mxu0 0.0
  %3797 = vmatpush1.xpose.msra.mxu0 0.0
  %3798 = vmatprep.subr.mxu0 0.0
  %3799 = vmatpush1.xpose.msra.mxu0 0.0
  %3800 = vmatprep.subr.mxu0 0.0
  %3801 = vmatpush1.xpose.msra.mxu0 0.0
  %3802 = vmatprep.subr.mxu0 0.0
  %3803 = vmatpush1.xpose.msra.mxu0 0.0
  %3804 = vmatprep.subr.mxu0 0.0
  %3805 = vmatpush1.xpose.msra.mxu0 0.0
  %3806 = vmatprep.subr.mxu0 0.0
  %3807 = vmatpush1.xpose.msra.mxu0 0.0
  %3808 = vmatprep.subr.mxu0 0.0
  %3809 = vmatpush1.xpose.msra.mxu0 0.0
  %3810 = vmatprep.subr.mxu0 0.0
  %3811 = vmatpush1.xpose.msra.mxu0 0.0
  %3812 = vmatprep.subr.mxu0 0.0
  %3813 = vmatpush1.xpose.msra.mxu0 0.0
  %3814 = vmatprep.subr.mxu0 0.0
  %3815 = vmatpush1.xpose.msra.mxu0 0.0
  %3816 = vmatprep.subr.mxu0 0.0
  %3817 = vmatpush1.xpose.msra.mxu0 0.0
  %3818 = vmatprep.subr.mxu0 0.0
  %3819 = vmatpush1.xpose.msra.mxu0 0.0
  %3820 = vmatprep.subr.mxu0 0.0
  %3821 = vmatpush1.xpose.msra.mxu0 0.0
  %3822 = vmatprep.subr.mxu0 0.0
  %3823 = vmatpush1.xpose.msra.mxu0 0.0
  %3824 = vmatprep.subr.mxu0 0.0
  %3825 = vmatpush1.xpose.msra.mxu0 0.0
  %3826 = vmatprep.subr.mxu0 0.0
  %3827 = vmatpush1.xpose.msra.mxu0 0.0
  %3828 = vmatprep.subr.mxu0 0.0
  %3829 = vmatpush1.xpose.msra.mxu0 0.0
  %3830 = vmatprep.subr.mxu0 0.0
  %3831 = vmatpush1.xpose.msra.mxu0 0.0
  %3832 = vmatprep.subr.mxu0 0.0
  %3833 = vmatpush1.xpose.msra.mxu0 0.0
  %3834 = vmatprep.subr.mxu0 0.0
  %3835 = vmatpush1.xpose.msra.mxu0 0.0
  %3836 = vmatprep.subr.mxu0 0.0
  %3837 = vmatpush1.xpose.msra.mxu0 0.0
  %3838 = vmatprep.subr.mxu0 0.0
  %3839 = vmatpush1.xpose.msra.mxu0 0.0
  %3840 = vmatprep.subr.mxu0 0.0
  %3841 = vmatpush1.xpose.msra.mxu0 0.0
  %3842 = vmatprep.mubr.f32.mxu0 0.0
  %3843 = vmatmul.mubr.f32.gmra.mrb[0].mxu0 %v3746
  %v3844 = vpop.f32.mrb[0].mxu0
  %v3845 = vadd.f32 0.0, %v3844
  %v3846 = vpop.f32.mrb[0].mxu0
  %3847 = vmatprep.mubr.f32.mxu0 0.0
  %3848 = vmatmul.mubr.f32.gmra.mrb[0].mxu0 %v3748
  %v3849 = vpop.f32.mrb[0].mxu0
  %v3850 = vadd.f32 0.0, %v3849
  %v3851 = vpop.f32.mrb[0].mxu0
  %3852 = vmatprep.mubr.f32.mxu0 0.0
  %3853 = vmatmul.mubr.f32.gmra.mrb[0].mxu0 %v3750
  %v3854 = vpop.f32.mrb[0].mxu0
  %v3855 = vadd.f32 0.0, %v3854
  %v3856 = vpop.f32.mrb[0].mxu0
  %3857 = vmatprep.mubr.f32.mxu0 0.0
  %3858 = vmatmul.mubr.f32.gmra.mrb[0].mxu0 %v3752
  %v3859 = vpop.f32.mrb[0].mxu0
  %v3860 = vadd.f32 0.0, %v3859
  %v3861 = vpop.f32.mrb[0].mxu0
  %3862 = vmatprep.mubr.f32.mxu0 0.0
  %3863 = vmatmul.mubr.f32.gmra.mrb[0].mxu0 %v3754
  %v3864 = vpop.f32.mrb[0].mxu0
  %v3865 = vadd.f32 0.0, %v3864
  %v3866 = vpop.f32.mrb[0].mxu0
  %3867 = vmatprep.mubr.f32.mxu0 0.0
  %3868 = vmatmul.mubr.f32.gmra.mrb[0].mxu0 %v3756
  %v3869 = vpop.f32.mrb[0].mxu0
  %v3870 = vadd.f32 0.0, %v3869
  %v3871 = vpop.f32.mrb[0].mxu0
  %3872 = vmatprep.mubr.f32.mxu0 0.0
  %3873 = vmatmul.mubr.f32.gmra.mrb[0].mxu0 %v3758
  %v3874 = vpop.f32.mrb[0].mxu0
  %v3875 = vadd.f32 0.0, %v3874
  %v3876 = vpop.f32.mrb[0].mxu0
  %3877 = vmatprep.mubr.f32.mxu0 0.0
  %3878 = vmatmul.mubr.f32.gmra.mrb[0].mxu0 %v3760
  %v3879 = vpop.f32.mrb[0].mxu0
  %v3880 = vadd.f32 0.0, %v3879
  %v3881 = vpop.f32.mrb[0].mxu0
  %3882 = vdwg.mxu0
  %v3883 = vsel %vm824, %v3676, -inf
  %3884 = vmax.xlane.f32.xlu0 %v3883
  %v3885 = vpop.xlane.xlu0 %3884
  %v3886 = vsel %vm824, %v3681, -inf
  %3887 = vmax.xlane.f32.xlu0 %v3886
  %v3888 = vpop.xlane.xlu0 %3887
  %v3889 = vsel %vm824, %v3686, -inf
  %3890 = vmax.xlane.f32.xlu0 %v3889
  %v3891 = vpop.xlane.xlu0 %3890
  %v3892 = vsel %vm824, %v3691, -inf
  %3893 = vmax.xlane.f32.xlu0 %v3892
  %v3894 = vpop.xlane.xlu0 %3893
  %v3895 = vsel %vm824, %v3696, -inf
  %3896 = vmax.xlane.f32.xlu0 %v3895
  %v3897 = vpop.xlane.xlu0 %3896
  %v3898 = vsel %vm824, %v3701, -inf
  %3899 = vmax.xlane.f32.xlu0 %v3898
  %v3900 = vpop.xlane.xlu0 %3899
  %v3901 = vsel %vm824, %v3706, -inf
  %3902 = vmax.xlane.f32.xlu0 %v3901
  %v3903 = vpop.xlane.xlu0 %3902
  %v3904 = vsel %vm824, %v3711, -inf
  %3905 = vmax.xlane.f32.xlu0 %v3904
  %v3906 = vpop.xlane.xlu0 %3905
  %v3907 = vsel %vm824, %v3845, -inf
  %3908 = vmax.xlane.f32.xlu0 %v3907
  %v3909 = vpop.xlane.xlu0 %3908
  %v3910 = vsel %vm824, %v3850, -inf
  %3911 = vmax.xlane.f32.xlu0 %v3910
  %v3912 = vpop.xlane.xlu0 %3911
  %v3913 = vsel %vm824, %v3855, -inf
  %3914 = vmax.xlane.f32.xlu0 %v3913
  %v3915 = vpop.xlane.xlu0 %3914
  %v3916 = vsel %vm824, %v3860, -inf
  %3917 = vmax.xlane.f32.xlu0 %v3916
  %v3918 = vpop.xlane.xlu0 %3917
  %v3919 = vsel %vm824, %v3865, -inf
  %3920 = vmax.xlane.f32.xlu0 %v3919
  %v3921 = vpop.xlane.xlu0 %3920
  %v3922 = vsel %vm824, %v3870, -inf
  %3923 = vmax.xlane.f32.xlu0 %v3922
  %v3924 = vpop.xlane.xlu0 %3923
  %v3925 = vsel %vm824, %v3875, -inf
  %3926 = vmax.xlane.f32.xlu0 %v3925
  %v3927 = vpop.xlane.xlu0 %3926
  %v3928 = vsel %vm824, %v3880, -inf
  %3929 = vmax.xlane.f32.xlu0 %v3928
  %v3930 = vpop.xlane.xlu0 %3929
  %v3931 = vsub.f32 %v3676, %v3885
  %v3932 = vsub.f32 %v3681, %v3888
  %v3933 = vsub.f32 %v3686, %v3891
  %v3934 = vsub.f32 %v3691, %v3894
  %v3935 = vsub.f32 %v3696, %v3897
  %v3936 = vsub.f32 %v3701, %v3900
  %v3937 = vsub.f32 %v3706, %v3903
  %v3938 = vsub.f32 %v3711, %v3906
  %v3939 = vsub.f32 %v3845, %v3909
  %v3940 = vsub.f32 %v3850, %v3912
  %v3941 = vsub.f32 %v3855, %v3915
  %v3942 = vsub.f32 %v3860, %v3918
  %v3943 = vsub.f32 %v3865, %v3921
  %v3944 = vsub.f32 %v3870, %v3924
  %v3945 = vsub.f32 %v3875, %v3927
  %v3946 = vsub.f32 %v3880, %v3930
  %v3947 = vmul.f32 %v3931, 1.442695
  %v3948 = vpow.pop %v3947
  %v3949 = vmul.f32 %v3932, 1.442695
  %v3950 = vpow.pop %v3949
  %v3951 = vmul.f32 %v3933, 1.442695
  %v3952 = vpow.pop %v3951
  %v3953 = vmul.f32 %v3934, 1.442695
  %v3954 = vpow.pop %v3953
  %v3955 = vmul.f32 %v3935, 1.442695
  %v3956 = vpow.pop %v3955
  %v3957 = vmul.f32 %v3936, 1.442695
  %v3958 = vpow.pop %v3957
  %v3959 = vmul.f32 %v3937, 1.442695
  %v3960 = vpow.pop %v3959
  %v3961 = vmul.f32 %v3938, 1.442695
  %v3962 = vpow.pop %v3961
  %v3963 = vmul.f32 %v3939, 1.442695
  %v3964 = vpow.pop %v3963
  %v3965 = vmul.f32 %v3940, 1.442695
  %v3966 = vpow.pop %v3965
  %v3967 = vmul.f32 %v3941, 1.442695
  %v3968 = vpow.pop %v3967
  %v3969 = vmul.f32 %v3942, 1.442695
  %v3970 = vpow.pop %v3969
  %v3971 = vmul.f32 %v3943, 1.442695
  %v3972 = vpow.pop %v3971
  %v3973 = vmul.f32 %v3944, 1.442695
  %v3974 = vpow.pop %v3973
  %v3975 = vmul.f32 %v3945, 1.442695
  %v3976 = vpow.pop %v3975
  %v3977 = vmul.f32 %v3946, 1.442695
  %v3978 = vpow.pop %v3977
  %v3979 = vsel %vm824, %v3948, 0.0
  %3980 = vadd.xlane.f32.xlu0 %v3979
  %v3981 = vpop.xlane.xlu0 %3980
  %v3982 = vsel %vm824, %v3950, 0.0
  %3983 = vadd.xlane.f32.xlu0 %v3982
  %v3984 = vpop.xlane.xlu0 %3983
  %v3985 = vsel %vm824, %v3952, 0.0
  %3986 = vadd.xlane.f32.xlu0 %v3985
  %v3987 = vpop.xlane.xlu0 %3986
  %v3988 = vsel %vm824, %v3954, 0.0
  %3989 = vadd.xlane.f32.xlu0 %v3988
  %v3990 = vpop.xlane.xlu0 %3989
  %v3991 = vsel %vm824, %v3956, 0.0
  %3992 = vadd.xlane.f32.xlu0 %v3991
  %v3993 = vpop.xlane.xlu0 %3992
  %v3994 = vsel %vm824, %v3958, 0.0
  %3995 = vadd.xlane.f32.xlu0 %v3994
  %v3996 = vpop.xlane.xlu0 %3995
  %v3997 = vsel %vm824, %v3960, 0.0
  %3998 = vadd.xlane.f32.xlu0 %v3997
  %v3999 = vpop.xlane.xlu0 %3998
  %v4000 = vsel %vm824, %v3962, 0.0
  %4001 = vadd.xlane.f32.xlu0 %v4000
  %v4002 = vpop.xlane.xlu0 %4001
  %v4003 = vsel %vm824, %v3964, 0.0
  %4004 = vadd.xlane.f32.xlu0 %v4003
  %v4005 = vpop.xlane.xlu0 %4004
  %v4006 = vsel %vm824, %v3966, 0.0
  %4007 = vadd.xlane.f32.xlu0 %v4006
  %v4008 = vpop.xlane.xlu0 %4007
  %v4009 = vsel %vm824, %v3968, 0.0
  %4010 = vadd.xlane.f32.xlu0 %v4009
  %v4011 = vpop.xlane.xlu0 %4010
  %v4012 = vsel %vm824, %v3970, 0.0
  %4013 = vadd.xlane.f32.xlu0 %v4012
  %v4014 = vpop.xlane.xlu0 %4013
  %v4015 = vsel %vm824, %v3972, 0.0
  %4016 = vadd.xlane.f32.xlu0 %v4015
  %v4017 = vpop.xlane.xlu0 %4016
  %v4018 = vsel %vm824, %v3974, 0.0
  %4019 = vadd.xlane.f32.xlu0 %v4018
  %v4020 = vpop.xlane.xlu0 %4019
  %v4021 = vsel %vm824, %v3976, 0.0
  %4022 = vadd.xlane.f32.xlu0 %v4021
  %v4023 = vpop.xlane.xlu0 %4022
  %v4024 = vsel %vm824, %v3978, 0.0
  %4025 = vadd.xlane.f32.xlu0 %v4024
  %v4026 = vpop.xlane.xlu0 %4025
  %v4027 = vrcp.pop %v3981
  %v4028 = vrcp.pop %v3984
  %v4029 = vrcp.pop %v3987
  %v4030 = vrcp.pop %v3990
  %v4031 = vrcp.pop %v3993
  %v4032 = vrcp.pop %v3996
  %v4033 = vrcp.pop %v3999
  %v4034 = vrcp.pop %v4002
  %v4035 = vrcp.pop %v4005
  %v4036 = vrcp.pop %v4008
  %v4037 = vrcp.pop %v4011
  %v4038 = vrcp.pop %v4014
  %v4039 = vrcp.pop %v4017
  %v4040 = vrcp.pop %v4020
  %v4041 = vrcp.pop %v4023
  %v4042 = vrcp.pop %v4026
  %v4043 = vmul.f32 %v3948, %v4027
  %v4044 = vmul.f32 %v3950, %v4028
  %v4045 = vmul.f32 %v3952, %v4029
  %v4046 = vmul.f32 %v3954, %v4030
  %v4047 = vmul.f32 %v3956, %v4031
  %v4048 = vmul.f32 %v3958, %v4032
  %v4049 = vmul.f32 %v3960, %v4033
  %v4050 = vmul.f32 %v3962, %v4034
  %v4051 = vmul.f32 %v3964, %v4035
  %v4052 = vmul.f32 %v3966, %v4036
  %v4053 = vmul.f32 %v3968, %v4037
  %v4054 = vmul.f32 %v3970, %v4038
  %v4055 = vmul.f32 %v3972, %v4039
  %v4056 = vmul.f32 %v3974, %v4040
  %v4057 = vmul.f32 %v3976, %v4041
  %v4058 = vmul.f32 %v3978, %v4042
  %4059 = vrot.lane.b32.xlu0 %v391, 40
  %v4060 = vpop.permute.xlu0 %4059
  %4061 = vrot.lane.b32.xlu0 %v396, 40
  %v4062 = vpop.permute.xlu0 %4061
  %4063 = vrot.lane.b32.xlu0 %v401, 40
  %v4064 = vpop.permute.xlu0 %4063
  %4065 = vrot.lane.b32.xlu0 %v406, 40
  %v4066 = vpop.permute.xlu0 %4065
  %4067 = vrot.lane.b32.xlu0 %v411, 40
  %v4068 = vpop.permute.xlu0 %4067
  %4069 = vrot.lane.b32.xlu0 %v416, 40
  %v4070 = vpop.permute.xlu0 %4069
  %4071 = vrot.lane.b32.xlu0 %v421, 40
  %v4072 = vpop.permute.xlu0 %4071
  %4073 = vrot.lane.b32.xlu0 %v426, 40
  %v4074 = vpop.permute.xlu0 %4073
  %v4084 = vsel %vm824, %v4043, 0
  %v4087 = vsel %vm824, %v4044, 0
  %v4090 = vsel %vm824, %v4045, 0
  %v4093 = vsel %vm824, %v4046, 0
  %v4096 = vsel %vm824, %v4047, 0
  %v4099 = vsel %vm824, %v4048, 0
  %v4102 = vsel %vm824, %v4049, 0
  %v4105 = vsel %vm824, %v4050, 0
  %4107 = vmatprep.subr.mxu0 0.0
  %4108 = vmatpush1.msra.mxu0 %v4060
  %4109 = vmatprep.subr.mxu0 0.0
  %4110 = vmatpush1.msra.mxu0 %v4062
  %4111 = vmatprep.subr.mxu0 0.0
  %4112 = vmatpush1.msra.mxu0 %v4064
  %4113 = vmatprep.subr.mxu0 0.0
  %4114 = vmatpush1.msra.mxu0 %v4066
  %4115 = vmatprep.subr.mxu0 0.0
  %4116 = vmatpush1.msra.mxu0 %v4068
  %4117 = vmatprep.subr.mxu0 0.0
  %4118 = vmatpush1.msra.mxu0 %v4070
  %4119 = vmatprep.subr.mxu0 0.0
  %4120 = vmatpush1.msra.mxu0 %v4072
  %4121 = vmatprep.subr.mxu0 0.0
  %4122 = vmatpush1.msra.mxu0 %v4074
  %4123 = vmatprep.subr.mxu0 0.0
  %4124 = vmatpush1.msra.mxu0 0.0
  %4125 = vmatprep.subr.mxu0 0.0
  %4126 = vmatpush1.msra.mxu0 0.0
  %4127 = vmatprep.subr.mxu0 0.0
  %4128 = vmatpush1.msra.mxu0 0.0
  %4129 = vmatprep.subr.mxu0 0.0
  %4130 = vmatpush1.msra.mxu0 0.0
  %4131 = vmatprep.subr.mxu0 0.0
  %4132 = vmatpush1.msra.mxu0 0.0
  %4133 = vmatprep.subr.mxu0 0.0
  %4134 = vmatpush1.msra.mxu0 0.0
  %4135 = vmatprep.subr.mxu0 0.0
  %4136 = vmatpush1.msra.mxu0 0.0
  %4137 = vmatprep.subr.mxu0 0.0
  %4138 = vmatpush1.msra.mxu0 0.0
  %4139 = vmatprep.subr.mxu0 0.0
  %4140 = vmatpush1.msra.mxu0 0.0
  %4141 = vmatprep.subr.mxu0 0.0
  %4142 = vmatpush1.msra.mxu0 0.0
  %4143 = vmatprep.subr.mxu0 0.0
  %4144 = vmatpush1.msra.mxu0 0.0
  %4145 = vmatprep.subr.mxu0 0.0
  %4146 = vmatpush1.msra.mxu0 0.0
  %4147 = vmatprep.subr.mxu0 0.0
  %4148 = vmatpush1.msra.mxu0 0.0
  %4149 = vmatprep.subr.mxu0 0.0
  %4150 = vmatpush1.msra.mxu0 0.0
  %4151 = vmatprep.subr.mxu0 0.0
  %4152 = vmatpush1.msra.mxu0 0.0
  %4153 = vmatprep.subr.mxu0 0.0
  %4154 = vmatpush1.msra.mxu0 0.0
  %4155 = vmatprep.subr.mxu0 0.0
  %4156 = vmatpush1.msra.mxu0 0.0
  %4157 = vmatprep.subr.mxu0 0.0
  %4158 = vmatpush1.msra.mxu0 0.0
  %4159 = vmatprep.subr.mxu0 0.0
  %4160 = vmatpush1.msra.mxu0 0.0
  %4161 = vmatprep.subr.mxu0 0.0
  %4162 = vmatpush1.msra.mxu0 0.0
  %4163 = vmatprep.subr.mxu0 0.0
  %4164 = vmatpush1.msra.mxu0 0.0
  %4165 = vmatprep.subr.mxu0 0.0
  %4166 = vmatpush1.msra.mxu0 0.0
  %4167 = vmatprep.subr.mxu0 0.0
  %4168 = vmatpush1.msra.mxu0 0.0
  %4169 = vmatprep.subr.mxu0 0.0
  %4170 = vmatpush1.msra.mxu0 0.0
  %4171 = vmatprep.mubr.f32.mxu0 0.0
  %4172 = vmatmul.mubr.f32.gmra.mrb[0].mxu0 %v4084
  %v4173 = vpop.f32.mrb[0].mxu0
  %v4174 = vadd.f32 0.0, %v4173
  %v4175 = vpop.f32.mrb[0].mxu0
  %4176 = vmatprep.mubr.f32.mxu0 0.0
  %4177 = vmatmul.mubr.f32.gmra.mrb[0].mxu0 %v4087
  %v4178 = vpop.f32.mrb[0].mxu0
  %v4179 = vadd.f32 0.0, %v4178
  %v4180 = vpop.f32.mrb[0].mxu0
  %4181 = vmatprep.mubr.f32.mxu0 0.0
  %4182 = vmatmul.mubr.f32.gmra.mrb[0].mxu0 %v4090
  %v4183 = vpop.f32.mrb[0].mxu0
  %v4184 = vadd.f32 0.0, %v4183
  %v4185 = vpop.f32.mrb[0].mxu0
  %4186 = vmatprep.mubr.f32.mxu0 0.0
  %4187 = vmatmul.mubr.f32.gmra.mrb[0].mxu0 %v4093
  %v4188 = vpop.f32.mrb[0].mxu0
  %v4189 = vadd.f32 0.0, %v4188
  %v4190 = vpop.f32.mrb[0].mxu0
  %4191 = vmatprep.mubr.f32.mxu0 0.0
  %4192 = vmatmul.mubr.f32.gmra.mrb[0].mxu0 %v4096
  %v4193 = vpop.f32.mrb[0].mxu0
  %v4194 = vadd.f32 0.0, %v4193
  %v4195 = vpop.f32.mrb[0].mxu0
  %4196 = vmatprep.mubr.f32.mxu0 0.0
  %4197 = vmatmul.mubr.f32.gmra.mrb[0].mxu0 %v4099
  %v4198 = vpop.f32.mrb[0].mxu0
  %v4199 = vadd.f32 0.0, %v4198
  %v4200 = vpop.f32.mrb[0].mxu0
  %4201 = vmatprep.mubr.f32.mxu0 0.0
  %4202 = vmatmul.mubr.f32.gmra.mrb[0].mxu0 %v4102
  %v4203 = vpop.f32.mrb[0].mxu0
  %v4204 = vadd.f32 0.0, %v4203
  %v4205 = vpop.f32.mrb[0].mxu0
  %4206 = vmatprep.mubr.f32.mxu0 0.0
  %4207 = vmatmul.mubr.f32.gmra.mrb[0].mxu0 %v4105
  %v4208 = vpop.f32.mrb[0].mxu0
  %v4209 = vadd.f32 0.0, %v4208
  %v4210 = vpop.f32.mrb[0].mxu0
  %4211 = vdwg.mxu0
  %4212 = vrot.lane.b32.xlu0 %v431, 40
  %v4213 = vpop.permute.xlu0 %4212
  %4214 = vrot.lane.b32.xlu0 %v436, 40
  %v4215 = vpop.permute.xlu0 %4214
  %4216 = vrot.lane.b32.xlu0 %v441, 40
  %v4217 = vpop.permute.xlu0 %4216
  %4218 = vrot.lane.b32.xlu0 %v446, 40
  %v4219 = vpop.permute.xlu0 %4218
  %4220 = vrot.lane.b32.xlu0 %v451, 40
  %v4221 = vpop.permute.xlu0 %4220
  %4222 = vrot.lane.b32.xlu0 %v456, 40
  %v4223 = vpop.permute.xlu0 %4222
  %4224 = vrot.lane.b32.xlu0 %v461, 40
  %v4225 = vpop.permute.xlu0 %4224
  %4226 = vrot.lane.b32.xlu0 %v466, 40
  %v4227 = vpop.permute.xlu0 %4226
  %v4237 = vsel %vm824, %v4051, 0
  %v4240 = vsel %vm824, %v4052, 0
  %v4243 = vsel %vm824, %v4053, 0
  %v4246 = vsel %vm824, %v4054, 0
  %v4249 = vsel %vm824, %v4055, 0
  %v4252 = vsel %vm824, %v4056, 0
  %v4255 = vsel %vm824, %v4057, 0
  %v4258 = vsel %vm824, %v4058, 0
  %4260 = vmatprep.subr.mxu0 0.0
  %4261 = vmatpush1.msra.mxu0 %v4213
  %4262 = vmatprep.subr.mxu0 0.0
  %4263 = vmatpush1.msra.mxu0 %v4215
  %4264 = vmatprep.subr.mxu0 0.0
  %4265 = vmatpush1.msra.mxu0 %v4217
  %4266 = vmatprep.subr.mxu0 0.0
  %4267 = vmatpush1.msra.mxu0 %v4219
  %4268 = vmatprep.subr.mxu0 0.0
  %4269 = vmatpush1.msra.mxu0 %v4221
  %4270 = vmatprep.subr.mxu0 0.0
  %4271 = vmatpush1.msra.mxu0 %v4223
  %4272 = vmatprep.subr.mxu0 0.0
  %4273 = vmatpush1.msra.mxu0 %v4225
  %4274 = vmatprep.subr.mxu0 0.0
  %4275 = vmatpush1.msra.mxu0 %v4227
  %4276 = vmatprep.subr.mxu0 0.0
  %4277 = vmatpush1.msra.mxu0 0.0
  %4278 = vmatprep.subr.mxu0 0.0
  %4279 = vmatpush1.msra.mxu0 0.0
  %4280 = vmatprep.subr.mxu0 0.0
  %4281 = vmatpush1.msra.mxu0 0.0
  %4282 = vmatprep.subr.mxu0 0.0
  %4283 = vmatpush1.msra.mxu0 0.0
  %4284 = vmatprep.subr.mxu0 0.0
  %4285 = vmatpush1.msra.mxu0 0.0
  %4286 = vmatprep.subr.mxu0 0.0
  %4287 = vmatpush1.msra.mxu0 0.0
  %4288 = vmatprep.subr.mxu0 0.0
  %4289 = vmatpush1.msra.mxu0 0.0
  %4290 = vmatprep.subr.mxu0 0.0
  %4291 = vmatpush1.msra.mxu0 0.0
  %4292 = vmatprep.subr.mxu0 0.0
  %4293 = vmatpush1.msra.mxu0 0.0
  %4294 = vmatprep.subr.mxu0 0.0
  %4295 = vmatpush1.msra.mxu0 0.0
  %4296 = vmatprep.subr.mxu0 0.0
  %4297 = vmatpush1.msra.mxu0 0.0
  %4298 = vmatprep.subr.mxu0 0.0
  %4299 = vmatpush1.msra.mxu0 0.0
  %4300 = vmatprep.subr.mxu0 0.0
  %4301 = vmatpush1.msra.mxu0 0.0
  %4302 = vmatprep.subr.mxu0 0.0
  %4303 = vmatpush1.msra.mxu0 0.0
  %4304 = vmatprep.subr.mxu0 0.0
  %4305 = vmatpush1.msra.mxu0 0.0
  %4306 = vmatprep.subr.mxu0 0.0
  %4307 = vmatpush1.msra.mxu0 0.0
  %4308 = vmatprep.subr.mxu0 0.0
  %4309 = vmatpush1.msra.mxu0 0.0
  %4310 = vmatprep.subr.mxu0 0.0
  %4311 = vmatpush1.msra.mxu0 0.0
  %4312 = vmatprep.subr.mxu0 0.0
  %4313 = vmatpush1.msra.mxu0 0.0
  %4314 = vmatprep.subr.mxu0 0.0
  %4315 = vmatpush1.msra.mxu0 0.0
  %4316 = vmatprep.subr.mxu0 0.0
  %4317 = vmatpush1.msra.mxu0 0.0
  %4318 = vmatprep.subr.mxu0 0.0
  %4319 = vmatpush1.msra.mxu0 0.0
  %4320 = vmatprep.subr.mxu0 0.0
  %4321 = vmatpush1.msra.mxu0 0.0
  %4322 = vmatprep.subr.mxu0 0.0
  %4323 = vmatpush1.msra.mxu0 0.0
  %4324 = vmatprep.mubr.f32.mxu0 0.0
  %4325 = vmatmul.mubr.f32.gmra.mrb[0].mxu0 %v4237
  %v4326 = vpop.f32.mrb[0].mxu0
  %v4327 = vadd.f32 0.0, %v4326
  %v4328 = vpop.f32.mrb[0].mxu0
  %4329 = vmatprep.mubr.f32.mxu0 0.0
  %4330 = vmatmul.mubr.f32.gmra.mrb[0].mxu0 %v4240
  %v4331 = vpop.f32.mrb[0].mxu0
  %v4332 = vadd.f32 0.0, %v4331
  %v4333 = vpop.f32.mrb[0].mxu0
  %4334 = vmatprep.mubr.f32.mxu0 0.0
  %4335 = vmatmul.mubr.f32.gmra.mrb[0].mxu0 %v4243
  %v4336 = vpop.f32.mrb[0].mxu0
  %v4337 = vadd.f32 0.0, %v4336
  %v4338 = vpop.f32.mrb[0].mxu0
  %4339 = vmatprep.mubr.f32.mxu0 0.0
  %4340 = vmatmul.mubr.f32.gmra.mrb[0].mxu0 %v4246
  %v4341 = vpop.f32.mrb[0].mxu0
  %v4342 = vadd.f32 0.0, %v4341
  %v4343 = vpop.f32.mrb[0].mxu0
  %4344 = vmatprep.mubr.f32.mxu0 0.0
  %4345 = vmatmul.mubr.f32.gmra.mrb[0].mxu0 %v4249
  %v4346 = vpop.f32.mrb[0].mxu0
  %v4347 = vadd.f32 0.0, %v4346
  %v4348 = vpop.f32.mrb[0].mxu0
  %4349 = vmatprep.mubr.f32.mxu0 0.0
  %4350 = vmatmul.mubr.f32.gmra.mrb[0].mxu0 %v4252
  %v4351 = vpop.f32.mrb[0].mxu0
  %v4352 = vadd.f32 0.0, %v4351
  %v4353 = vpop.f32.mrb[0].mxu0
  %4354 = vmatprep.mubr.f32.mxu0 0.0
  %4355 = vmatmul.mubr.f32.gmra.mrb[0].mxu0 %v4255
  %v4356 = vpop.f32.mrb[0].mxu0
  %v4357 = vadd.f32 0.0, %v4356
  %v4358 = vpop.f32.mrb[0].mxu0
  %4359 = vmatprep.mubr.f32.mxu0 0.0
  %4360 = vmatmul.mubr.f32.gmra.mrb[0].mxu0 %v4258
  %v4361 = vpop.f32.mrb[0].mxu0
  %v4362 = vadd.f32 0.0, %v4361
  %v4363 = vpop.f32.mrb[0].mxu0
  %4364 = vdwg.mxu0
  %v4365 = vld [vmem:[%s3 + $0x18] sm:$0xff]
  %v4367 = vsel %vm509, %v4174, 0
  %v4370 = vsel %vm509, %v4179, 0
  %v4373 = vsel %vm509, %v4184, 0
  %v4376 = vsel %vm509, %v4189, 0
  %v4379 = vsel %vm509, %v4194, 0
  %v4382 = vsel %vm509, %v4199, 0
  %v4385 = vsel %vm509, %v4204, 0
  %v4388 = vsel %vm509, %v4209, 0
  %v4391 = vsel %vm509, %v4327, 0
  %v4394 = vsel %vm509, %v4332, 0
  %v4397 = vsel %vm509, %v4337, 0
  %v4400 = vsel %vm509, %v4342, 0
  %v4403 = vsel %vm509, %v4347, 0
  %v4406 = vsel %vm509, %v4352, 0
  %v4409 = vsel %vm509, %v4357, 0
  %v4412 = vsel %vm509, %v4362, 0
  %4414 = vmatprep.subr.mxu0 0.0
  %4415 = vmatpush1.msra.mxu0 %v4365
  %4416 = vmatprep.subr.mxu0 0.0
  %4417 = vmatpush1.msra.mxu0 0.0
  %4418 = vmatprep.subr.mxu0 0.0
  %4419 = vmatpush1.msra.mxu0 0.0
  %4420 = vmatprep.subr.mxu0 0.0
  %4421 = vmatpush1.msra.mxu0 0.0
  %4422 = vmatprep.subr.mxu0 0.0
  %4423 = vmatpush1.msra.mxu0 0.0
  %4424 = vmatprep.subr.mxu0 0.0
  %4425 = vmatpush1.msra.mxu0 0.0
  %4426 = vmatprep.subr.mxu0 0.0
  %4427 = vmatpush1.msra.mxu0 0.0
  %4428 = vmatprep.subr.mxu0 0.0
  %4429 = vmatpush1.msra.mxu0 0.0
  %4430 = vmatprep.subr.mxu0 0.0
  %4431 = vmatpush1.msra.mxu0 0.0
  %4432 = vmatprep.subr.mxu0 0.0
  %4433 = vmatpush1.msra.mxu0 0.0
  %4434 = vmatprep.subr.mxu0 0.0
  %4435 = vmatpush1.msra.mxu0 0.0
  %4436 = vmatprep.subr.mxu0 0.0
  %4437 = vmatpush1.msra.mxu0 0.0
  %4438 = vmatprep.subr.mxu0 0.0
  %4439 = vmatpush1.msra.mxu0 0.0
  %4440 = vmatprep.subr.mxu0 0.0
  %4441 = vmatpush1.msra.mxu0 0.0
  %4442 = vmatprep.subr.mxu0 0.0
  %4443 = vmatpush1.msra.mxu0 0.0
  %4444 = vmatprep.subr.mxu0 0.0
  %4445 = vmatpush1.msra.mxu0 0.0
  %4446 = vmatprep.subr.mxu0 0.0
  %4447 = vmatpush1.msra.mxu0 0.0
  %4448 = vmatprep.subr.mxu0 0.0
  %4449 = vmatpush1.msra.mxu0 0.0
  %4450 = vmatprep.subr.mxu0 0.0
  %4451 = vmatpush1.msra.mxu0 0.0
  %4452 = vmatprep.subr.mxu0 0.0
  %4453 = vmatpush1.msra.mxu0 0.0
  %4454 = vmatprep.subr.mxu0 0.0
  %4455 = vmatpush1.msra.mxu0 0.0
  %4456 = vmatprep.subr.mxu0 0.0
  %4457 = vmatpush1.msra.mxu0 0.0
  %4458 = vmatprep.subr.mxu0 0.0
  %4459 = vmatpush1.msra.mxu0 0.0
  %4460 = vmatprep.subr.mxu0 0.0
  %4461 = vmatpush1.msra.mxu0 0.0
  %4462 = vmatprep.subr.mxu0 0.0
  %4463 = vmatpush1.msra.mxu0 0.0
  %4464 = vmatprep.subr.mxu0 0.0
  %4465 = vmatpush1.msra.mxu0 0.0
  %4466 = vmatprep.subr.mxu0 0.0
  %4467 = vmatpush1.msra.mxu0 0.0
  %4468 = vmatprep.subr.mxu0 0.0
  %4469 = vmatpush1.msra.mxu0 0.0
  %4470 = vmatprep.subr.mxu0 0.0
  %4471 = vmatpush1.msra.mxu0 0.0
  %4472 = vmatprep.subr.mxu0 0.0
  %4473 = vmatpush1.msra.mxu0 0.0
  %4474 = vmatprep.subr.mxu0 0.0
  %4475 = vmatpush1.msra.mxu0 0.0
  %4476 = vmatprep.subr.mxu0 0.0
  %4477 = vmatpush1.msra.mxu0 0.0
  %4478 = vmatprep.mubr.f32.mxu0 0.0
  %4479 = vmatmul.mubr.f32.gmra.mrb[0].mxu0 %v4367
  %v4480 = vpop.f32.mrb[0].mxu0
  %v4481 = vadd.f32 0.0, %v4480
  %v4482 = vpop.f32.mrb[0].mxu0
  %4483 = vmatprep.mubr.f32.mxu0 0.0
  %4484 = vmatmul.mubr.f32.gmra.mrb[0].mxu0 %v4370
  %v4485 = vpop.f32.mrb[0].mxu0
  %v4486 = vadd.f32 0.0, %v4485
  %v4487 = vpop.f32.mrb[0].mxu0
  %4488 = vmatprep.mubr.f32.mxu0 0.0
  %4489 = vmatmul.mubr.f32.gmra.mrb[0].mxu0 %v4373
  %v4490 = vpop.f32.mrb[0].mxu0
  %v4491 = vadd.f32 0.0, %v4490
  %v4492 = vpop.f32.mrb[0].mxu0
  %4493 = vmatprep.mubr.f32.mxu0 0.0
  %4494 = vmatmul.mubr.f32.gmra.mrb[0].mxu0 %v4376
  %v4495 = vpop.f32.mrb[0].mxu0
  %v4496 = vadd.f32 0.0, %v4495
  %v4497 = vpop.f32.mrb[0].mxu0
  %4498 = vmatprep.mubr.f32.mxu0 0.0
  %4499 = vmatmul.mubr.f32.gmra.mrb[0].mxu0 %v4379
  %v4500 = vpop.f32.mrb[0].mxu0
  %v4501 = vadd.f32 0.0, %v4500
  %v4502 = vpop.f32.mrb[0].mxu0
  %4503 = vmatprep.mubr.f32.mxu0 0.0
  %4504 = vmatmul.mubr.f32.gmra.mrb[0].mxu0 %v4382
  %v4505 = vpop.f32.mrb[0].mxu0
  %v4506 = vadd.f32 0.0, %v4505
  %v4507 = vpop.f32.mrb[0].mxu0
  %4508 = vmatprep.mubr.f32.mxu0 0.0
  %4509 = vmatmul.mubr.f32.gmra.mrb[0].mxu0 %v4385
  %v4510 = vpop.f32.mrb[0].mxu0
  %v4511 = vadd.f32 0.0, %v4510
  %v4512 = vpop.f32.mrb[0].mxu0
  %4513 = vmatprep.mubr.f32.mxu0 0.0
  %4514 = vmatmul.mubr.f32.gmra.mrb[0].mxu0 %v4388
  %v4515 = vpop.f32.mrb[0].mxu0
  %v4516 = vadd.f32 0.0, %v4515
  %v4517 = vpop.f32.mrb[0].mxu0
  %4518 = vmatprep.mubr.f32.mxu0 0.0
  %4519 = vmatmul.mubr.f32.gmra.mrb[0].mxu0 %v4391
  %v4520 = vpop.f32.mrb[0].mxu0
  %v4521 = vadd.f32 0.0, %v4520
  %v4522 = vpop.f32.mrb[0].mxu0
  %4523 = vmatprep.mubr.f32.mxu0 0.0
  %4524 = vmatmul.mubr.f32.gmra.mrb[0].mxu0 %v4394
  %v4525 = vpop.f32.mrb[0].mxu0
  %v4526 = vadd.f32 0.0, %v4525
  %v4527 = vpop.f32.mrb[0].mxu0
  %4528 = vmatprep.mubr.f32.mxu0 0.0
  %4529 = vmatmul.mubr.f32.gmra.mrb[0].mxu0 %v4397
  %v4530 = vpop.f32.mrb[0].mxu0
  %v4531 = vadd.f32 0.0, %v4530
  %v4532 = vpop.f32.mrb[0].mxu0
  %4533 = vmatprep.mubr.f32.mxu0 0.0
  %4534 = vmatmul.mubr.f32.gmra.mrb[0].mxu0 %v4400
  %v4535 = vpop.f32.mrb[0].mxu0
  %v4536 = vadd.f32 0.0, %v4535
  %v4537 = vpop.f32.mrb[0].mxu0
  %4538 = vmatprep.mubr.f32.mxu0 0.0
  %4539 = vmatmul.mubr.f32.gmra.mrb[0].mxu0 %v4403
  %v4540 = vpop.f32.mrb[0].mxu0
  %v4541 = vadd.f32 0.0, %v4540
  %v4542 = vpop.f32.mrb[0].mxu0
  %4543 = vmatprep.mubr.f32.mxu0 0.0
  %4544 = vmatmul.mubr.f32.gmra.mrb[0].mxu0 %v4406
  %v4545 = vpop.f32.mrb[0].mxu0
  %v4546 = vadd.f32 0.0, %v4545
  %v4547 = vpop.f32.mrb[0].mxu0
  %4548 = vmatprep.mubr.f32.mxu0 0.0
  %4549 = vmatmul.mubr.f32.gmra.mrb[0].mxu0 %v4409
  %v4550 = vpop.f32.mrb[0].mxu0
  %v4551 = vadd.f32 0.0, %v4550
  %v4552 = vpop.f32.mrb[0].mxu0
  %4553 = vmatprep.mubr.f32.mxu0 0.0
  %4554 = vmatmul.mubr.f32.gmra.mrb[0].mxu0 %v4412
  %v4555 = vpop.f32.mrb[0].mxu0
  %v4556 = vadd.f32 0.0, %v4555
  %v4557 = vpop.f32.mrb[0].mxu0
  %4558 = vdwg.mxu0
  %v4559 = vadd.f32 %v3529, %v4481
  %v4560 = vadd.f32 %v3530, %v4486
  %v4561 = vadd.f32 %v3531, %v4491
  %v4562 = vadd.f32 %v3532, %v4496
  %v4563 = vadd.f32 %v3533, %v4501
  %v4564 = vadd.f32 %v3534, %v4506
  %v4565 = vadd.f32 %v3535, %v4511
  %v4566 = vadd.f32 %v3536, %v4516
  %v4567 = vadd.f32 %v3537, %v4521
  %v4568 = vadd.f32 %v3538, %v4526
  %v4569 = vadd.f32 %v3539, %v4531
  %v4570 = vadd.f32 %v3540, %v4536
  %v4571 = vadd.f32 %v3541, %v4541
  %v4572 = vadd.f32 %v3542, %v4546
  %v4573 = vadd.f32 %v3543, %v4551
  %v4574 = vadd.f32 %v3544, %v4556
  %v4575 = vld [vmem:[%s6 + $0x1] sm:$0x1]
  %v4576 = vlaneseq
  %v4577 = vshrl.u32 %v4576, 7
  %v4578 = vsub.s32 0, %v4577
  %v4579 = vrot.slane %v4575, %v4578
  %v4580 = vadd.f32 %v4559, %v4579
  %v4581 = vadd.f32 %v4560, %v4579
  %v4582 = vadd.f32 %v4561, %v4579
  %v4583 = vadd.f32 %v4562, %v4579
  %v4584 = vadd.f32 %v4563, %v4579
  %v4585 = vadd.f32 %v4564, %v4579
  %v4586 = vadd.f32 %v4565, %v4579
  %v4587 = vadd.f32 %v4566, %v4579
  %v4588 = vadd.f32 %v4567, %v4579
  %v4589 = vadd.f32 %v4568, %v4579
  %v4590 = vadd.f32 %v4569, %v4579
  %v4591 = vadd.f32 %v4570, %v4579
  %v4592 = vadd.f32 %v4571, %v4579
  %v4593 = vadd.f32 %v4572, %v4579
  %v4594 = vadd.f32 %v4573, %v4579
  %v4595 = vadd.f32 %v4574, %v4579
  %v4596 = vadd.f32 %v250, %v4580
  %v4597 = vadd.f32 %v251, %v4581
  %v4598 = vadd.f32 %v252, %v4582
  %v4599 = vadd.f32 %v253, %v4583
  %v4600 = vadd.f32 %v254, %v4584
  %v4601 = vadd.f32 %v255, %v4585
  %v4602 = vadd.f32 %v256, %v4586
  %v4603 = vadd.f32 %v257, %v4587
  %v4604 = vadd.f32 %v258, %v4588
  %v4605 = vadd.f32 %v259, %v4589
  %v4606 = vadd.f32 %v260, %v4590
  %v4607 = vadd.f32 %v261, %v4591
  %v4608 = vadd.f32 %v262, %v4592
  %v4609 = vadd.f32 %v263, %v4593
  %v4610 = vadd.f32 %v264, %v4594
  %v4611 = vadd.f32 %v265, %v4595
  %v4612 = vld [vmem:[%s6 + $0x2] sm:$0x1]
  %v4613 = vld [vmem:[%s6 + $0x3] sm:$0x1]
  %v4614 = vsel %vm275, %v4596, 0.0
  %4615 = vadd.xlane.f32.xlu0 %v4614
  %v4616 = vpop.xlane.xlu0 %4615
  %v4617 = vsel %vm275, %v4597, 0.0
  %4618 = vadd.xlane.f32.xlu0 %v4617
  %v4619 = vpop.xlane.xlu0 %4618
  %v4620 = vsel %vm275, %v4598, 0.0
  %4621 = vadd.xlane.f32.xlu0 %v4620
  %v4622 = vpop.xlane.xlu0 %4621
  %v4623 = vsel %vm275, %v4599, 0.0
  %4624 = vadd.xlane.f32.xlu0 %v4623
  %v4625 = vpop.xlane.xlu0 %4624
  %v4626 = vsel %vm275, %v4600, 0.0
  %4627 = vadd.xlane.f32.xlu0 %v4626
  %v4628 = vpop.xlane.xlu0 %4627
  %v4629 = vsel %vm275, %v4601, 0.0
  %4630 = vadd.xlane.f32.xlu0 %v4629
  %v4631 = vpop.xlane.xlu0 %4630
  %v4632 = vsel %vm275, %v4602, 0.0
  %4633 = vadd.xlane.f32.xlu0 %v4632
  %v4634 = vpop.xlane.xlu0 %4633
  %v4635 = vsel %vm275, %v4603, 0.0
  %4636 = vadd.xlane.f32.xlu0 %v4635
  %v4637 = vpop.xlane.xlu0 %4636
  %v4638 = vsel %vm275, %v4604, 0.0
  %4639 = vadd.xlane.f32.xlu0 %v4638
  %v4640 = vpop.xlane.xlu0 %4639
  %v4641 = vsel %vm275, %v4605, 0.0
  %4642 = vadd.xlane.f32.xlu0 %v4641
  %v4643 = vpop.xlane.xlu0 %4642
  %v4644 = vsel %vm275, %v4606, 0.0
  %4645 = vadd.xlane.f32.xlu0 %v4644
  %v4646 = vpop.xlane.xlu0 %4645
  %v4647 = vsel %vm275, %v4607, 0.0
  %4648 = vadd.xlane.f32.xlu0 %v4647
  %v4649 = vpop.xlane.xlu0 %4648
  %v4650 = vsel %vm275, %v4608, 0.0
  %4651 = vadd.xlane.f32.xlu0 %v4650
  %v4652 = vpop.xlane.xlu0 %4651
  %v4653 = vsel %vm275, %v4609, 0.0
  %4654 = vadd.xlane.f32.xlu0 %v4653
  %v4655 = vpop.xlane.xlu0 %4654
  %v4656 = vsel %vm275, %v4610, 0.0
  %4657 = vadd.xlane.f32.xlu0 %v4656
  %v4658 = vpop.xlane.xlu0 %4657
  %v4659 = vsel %vm275, %v4611, 0.0
  %4660 = vadd.xlane.f32.xlu0 %v4659
  %v4661 = vpop.xlane.xlu0 %4660
  %v4662 = vrcp.pop 32.0
  %v4663 = vmul.f32 %v4616, %v4662
  %v4664 = vmul.f32 %v4619, %v4662
  %v4665 = vmul.f32 %v4622, %v4662
  %v4666 = vmul.f32 %v4625, %v4662
  %v4667 = vmul.f32 %v4628, %v4662
  %v4668 = vmul.f32 %v4631, %v4662
  %v4669 = vmul.f32 %v4634, %v4662
  %v4670 = vmul.f32 %v4637, %v4662
  %v4671 = vmul.f32 %v4640, %v4662
  %v4672 = vmul.f32 %v4643, %v4662
  %v4673 = vmul.f32 %v4646, %v4662
  %v4674 = vmul.f32 %v4649, %v4662
  %v4675 = vmul.f32 %v4652, %v4662
  %v4676 = vmul.f32 %v4655, %v4662
  %v4677 = vmul.f32 %v4658, %v4662
  %v4678 = vmul.f32 %v4661, %v4662
  %v4679 = vsub.f32 %v4596, %v4663
  %v4680 = vsub.f32 %v4597, %v4664
  %v4681 = vsub.f32 %v4598, %v4665
  %v4682 = vsub.f32 %v4599, %v4666
  %v4683 = vsub.f32 %v4600, %v4667
  %v4684 = vsub.f32 %v4601, %v4668
  %v4685 = vsub.f32 %v4602, %v4669
  %v4686 = vsub.f32 %v4603, %v4670
  %v4687 = vsub.f32 %v4604, %v4671
  %v4688 = vsub.f32 %v4605, %v4672
  %v4689 = vsub.f32 %v4606, %v4673
  %v4690 = vsub.f32 %v4607, %v4674
  %v4691 = vsub.f32 %v4608, %v4675
  %v4692 = vsub.f32 %v4609, %v4676
  %v4693 = vsub.f32 %v4610, %v4677
  %v4694 = vsub.f32 %v4611, %v4678
  %v4695 = vmul.f32 %v4679, %v4679
  %v4696 = vmul.f32 %v4680, %v4680
  %v4697 = vmul.f32 %v4681, %v4681
  %v4698 = vmul.f32 %v4682, %v4682
  %v4699 = vmul.f32 %v4683, %v4683
  %v4700 = vmul.f32 %v4684, %v4684
  %v4701 = vmul.f32 %v4685, %v4685
  %v4702 = vmul.f32 %v4686, %v4686
  %v4703 = vmul.f32 %v4687, %v4687
  %v4704 = vmul.f32 %v4688, %v4688
  %v4705 = vmul.f32 %v4689, %v4689
  %v4706 = vmul.f32 %v4690, %v4690
  %v4707 = vmul.f32 %v4691, %v4691
  %v4708 = vmul.f32 %v4692, %v4692
  %v4709 = vmul.f32 %v4693, %v4693
  %v4710 = vmul.f32 %v4694, %v4694
  %v4711 = vsel %vm275, %v4695, 0.0
  %4712 = vadd.xlane.f32.xlu0 %v4711
  %v4713 = vpop.xlane.xlu0 %4712
  %v4714 = vsel %vm275, %v4696, 0.0
  %4715 = vadd.xlane.f32.xlu0 %v4714
  %v4716 = vpop.xlane.xlu0 %4715
  %v4717 = vsel %vm275, %v4697, 0.0
  %4718 = vadd.xlane.f32.xlu0 %v4717
  %v4719 = vpop.xlane.xlu0 %4718
  %v4720 = vsel %vm275, %v4698, 0.0
  %4721 = vadd.xlane.f32.xlu0 %v4720
  %v4722 = vpop.xlane.xlu0 %4721
  %v4723 = vsel %vm275, %v4699, 0.0
  %4724 = vadd.xlane.f32.xlu0 %v4723
  %v4725 = vpop.xlane.xlu0 %4724
  %v4726 = vsel %vm275, %v4700, 0.0
  %4727 = vadd.xlane.f32.xlu0 %v4726
  %v4728 = vpop.xlane.xlu0 %4727
  %v4729 = vsel %vm275, %v4701, 0.0
  %4730 = vadd.xlane.f32.xlu0 %v4729
  %v4731 = vpop.xlane.xlu0 %4730
  %v4732 = vsel %vm275, %v4702, 0.0
  %4733 = vadd.xlane.f32.xlu0 %v4732
  %v4734 = vpop.xlane.xlu0 %4733
  %v4735 = vsel %vm275, %v4703, 0.0
  %4736 = vadd.xlane.f32.xlu0 %v4735
  %v4737 = vpop.xlane.xlu0 %4736
  %v4738 = vsel %vm275, %v4704, 0.0
  %4739 = vadd.xlane.f32.xlu0 %v4738
  %v4740 = vpop.xlane.xlu0 %4739
  %v4741 = vsel %vm275, %v4705, 0.0
  %4742 = vadd.xlane.f32.xlu0 %v4741
  %v4743 = vpop.xlane.xlu0 %4742
  %v4744 = vsel %vm275, %v4706, 0.0
  %4745 = vadd.xlane.f32.xlu0 %v4744
  %v4746 = vpop.xlane.xlu0 %4745
  %v4747 = vsel %vm275, %v4707, 0.0
  %4748 = vadd.xlane.f32.xlu0 %v4747
  %v4749 = vpop.xlane.xlu0 %4748
  %v4750 = vsel %vm275, %v4708, 0.0
  %4751 = vadd.xlane.f32.xlu0 %v4750
  %v4752 = vpop.xlane.xlu0 %4751
  %v4753 = vsel %vm275, %v4709, 0.0
  %4754 = vadd.xlane.f32.xlu0 %v4753
  %v4755 = vpop.xlane.xlu0 %4754
  %v4756 = vsel %vm275, %v4710, 0.0
  %4757 = vadd.xlane.f32.xlu0 %v4756
  %v4758 = vpop.xlane.xlu0 %4757
  %v4759 = vmul.f32 %v4713, %v4662
  %v4760 = vmul.f32 %v4716, %v4662
  %v4761 = vmul.f32 %v4719, %v4662
  %v4762 = vmul.f32 %v4722, %v4662
  %v4763 = vmul.f32 %v4725, %v4662
  %v4764 = vmul.f32 %v4728, %v4662
  %v4765 = vmul.f32 %v4731, %v4662
  %v4766 = vmul.f32 %v4734, %v4662
  %v4767 = vmul.f32 %v4737, %v4662
  %v4768 = vmul.f32 %v4740, %v4662
  %v4769 = vmul.f32 %v4743, %v4662
  %v4770 = vmul.f32 %v4746, %v4662
  %v4771 = vmul.f32 %v4749, %v4662
  %v4772 = vmul.f32 %v4752, %v4662
  %v4773 = vmul.f32 %v4755, %v4662
  %v4774 = vmul.f32 %v4758, %v4662
  %v4775 = vadd.f32 %v4759, 1e-05
  %v4776 = vadd.f32 %v4760, 1e-05
  %v4777 = vadd.f32 %v4761, 1e-05
  %v4778 = vadd.f32 %v4762, 1e-05
  %v4779 = vadd.f32 %v4763, 1e-05
  %v4780 = vadd.f32 %v4764, 1e-05
  %v4781 = vadd.f32 %v4765, 1e-05
  %v4782 = vadd.f32 %v4766, 1e-05
  %v4783 = vadd.f32 %v4767, 1e-05
  %v4784 = vadd.f32 %v4768, 1e-05
  %v4785 = vadd.f32 %v4769, 1e-05
  %v4786 = vadd.f32 %v4770, 1e-05
  %v4787 = vadd.f32 %v4771, 1e-05
  %v4788 = vadd.f32 %v4772, 1e-05
  %v4789 = vadd.f32 %v4773, 1e-05
  %v4790 = vadd.f32 %v4774, 1e-05
  %v4791 = vrsqrt.pop %v4775
  %v4792 = vrsqrt.pop %v4776
  %v4793 = vrsqrt.pop %v4777
  %v4794 = vrsqrt.pop %v4778
  %v4795 = vrsqrt.pop %v4779
  %v4796 = vrsqrt.pop %v4780
  %v4797 = vrsqrt.pop %v4781
  %v4798 = vrsqrt.pop %v4782
  %v4799 = vrsqrt.pop %v4783
  %v4800 = vrsqrt.pop %v4784
  %v4801 = vrsqrt.pop %v4785
  %v4802 = vrsqrt.pop %v4786
  %v4803 = vrsqrt.pop %v4787
  %v4804 = vrsqrt.pop %v4788
  %v4805 = vrsqrt.pop %v4789
  %v4806 = vrsqrt.pop %v4790
  %v4807 = vmul.f32 %v4679, %v4791
  %v4808 = vmul.f32 %v4680, %v4792
  %v4809 = vmul.f32 %v4681, %v4793
  %v4810 = vmul.f32 %v4682, %v4794
  %v4811 = vmul.f32 %v4683, %v4795
  %v4812 = vmul.f32 %v4684, %v4796
  %v4813 = vmul.f32 %v4685, %v4797
  %v4814 = vmul.f32 %v4686, %v4798
  %v4815 = vmul.f32 %v4687, %v4799
  %v4816 = vmul.f32 %v4688, %v4800
  %v4817 = vmul.f32 %v4689, %v4801
  %v4818 = vmul.f32 %v4690, %v4802
  %v4819 = vmul.f32 %v4691, %v4803
  %v4820 = vmul.f32 %v4692, %v4804
  %v4821 = vmul.f32 %v4693, %v4805
  %v4822 = vmul.f32 %v4694, %v4806
  %v4823 = vlaneseq
  %v4824 = vshrl.u32 %v4823, 7
  %v4825 = vsub.s32 0, %v4824
  %v4826 = vrot.slane %v4612, %v4825
  %v4827 = vmul.f32 %v4807, %v4826
  %v4828 = vmul.f32 %v4808, %v4826
  %v4829 = vmul.f32 %v4809, %v4826
  %v4830 = vmul.f32 %v4810, %v4826
  %v4831 = vmul.f32 %v4811, %v4826
  %v4832 = vmul.f32 %v4812, %v4826
  %v4833 = vmul.f32 %v4813, %v4826
  %v4834 = vmul.f32 %v4814, %v4826
  %v4835 = vmul.f32 %v4815, %v4826
  %v4836 = vmul.f32 %v4816, %v4826
  %v4837 = vmul.f32 %v4817, %v4826
  %v4838 = vmul.f32 %v4818, %v4826
  %v4839 = vmul.f32 %v4819, %v4826
  %v4840 = vmul.f32 %v4820, %v4826
  %v4841 = vmul.f32 %v4821, %v4826
  %v4842 = vmul.f32 %v4822, %v4826
  %v4843 = vlaneseq
  %v4844 = vshrl.u32 %v4843, 7
  %v4845 = vsub.s32 0, %v4844
  %v4846 = vrot.slane %v4613, %v4845
  %v4847 = vadd.f32 %v4827, %v4846
  %v4848 = vadd.f32 %v4828, %v4846
  %v4849 = vadd.f32 %v4829, %v4846
  %v4850 = vadd.f32 %v4830, %v4846
  %v4851 = vadd.f32 %v4831, %v4846
  %v4852 = vadd.f32 %v4832, %v4846
  %v4853 = vadd.f32 %v4833, %v4846
  %v4854 = vadd.f32 %v4834, %v4846
  %v4855 = vadd.f32 %v4835, %v4846
  %v4856 = vadd.f32 %v4836, %v4846
  %v4857 = vadd.f32 %v4837, %v4846
  %v4858 = vadd.f32 %v4838, %v4846
  %v4859 = vadd.f32 %v4839, %v4846
  %v4860 = vadd.f32 %v4840, %v4846
  %v4861 = vadd.f32 %v4841, %v4846
  %v4862 = vadd.f32 %v4842, %v4846
  %v4863 = vld [vmem:[%s4] sm:$0xff]
  %v4864 = vld [vmem:[%s4 + $0x8] sm:$0xff]
  %v4865 = vld [vmem:[%s4 + $0x10] sm:$0xff]
  %v4866 = vld [vmem:[%s4 + $0x18] sm:$0xff]
  %v4867 = vld [vmem:[%s6 + $0x4] sm:$0x1]
  %v4868 = vlaneseq
  %v4869 = vshrl.u32 %v4868, 7
  %v4870 = vsub.s32 0, %v4869
  %v4871 = vrot.slane %v4867, %v4870
  %v4873 = vsel %vm275, %v4847, 0
  %v4876 = vsel %vm275, %v4848, 0
  %v4879 = vsel %vm275, %v4849, 0
  %v4882 = vsel %vm275, %v4850, 0
  %v4885 = vsel %vm275, %v4851, 0
  %v4888 = vsel %vm275, %v4852, 0
  %v4891 = vsel %vm275, %v4853, 0
  %v4894 = vsel %vm275, %v4854, 0
  %v4897 = vsel %vm275, %v4855, 0
  %v4900 = vsel %vm275, %v4856, 0
  %v4903 = vsel %vm275, %v4857, 0
  %v4906 = vsel %vm275, %v4858, 0
  %v4909 = vsel %vm275, %v4859, 0
  %v4912 = vsel %vm275, %v4860, 0
  %v4915 = vsel %vm275, %v4861, 0
  %v4918 = vsel %vm275, %v4862, 0
  %4920 = vmatprep.subr.mxu0 0.0
  %4921 = vmatpush1.msra.mxu0 %v4863
  %4922 = vmatprep.subr.mxu0 0.0
  %4923 = vmatpush1.msra.mxu0 %v4864
  %4924 = vmatprep.subr.mxu0 0.0
  %4925 = vmatpush1.msra.mxu0 %v4865
  %4926 = vmatprep.subr.mxu0 0.0
  %4927 = vmatpush1.msra.mxu0 %v4866
  %4928 = vmatprep.subr.mxu0 0.0
  %4929 = vmatpush1.msra.mxu0 0.0
  %4930 = vmatprep.subr.mxu0 0.0
  %4931 = vmatpush1.msra.mxu0 0.0
  %4932 = vmatprep.subr.mxu0 0.0
  %4933 = vmatpush1.msra.mxu0 0.0
  %4934 = vmatprep.subr.mxu0 0.0
  %4935 = vmatpush1.msra.mxu0 0.0
  %4936 = vmatprep.subr.mxu0 0.0
  %4937 = vmatpush1.msra.mxu0 0.0
  %4938 = vmatprep.subr.mxu0 0.0
  %4939 = vmatpush1.msra.mxu0 0.0
  %4940 = vmatprep.subr.mxu0 0.0
  %4941 = vmatpush1.msra.mxu0 0.0
  %4942 = vmatprep.subr.mxu0 0.0
  %4943 = vmatpush1.msra.mxu0 0.0
  %4944 = vmatprep.subr.mxu0 0.0
  %4945 = vmatpush1.msra.mxu0 0.0
  %4946 = vmatprep.subr.mxu0 0.0
  %4947 = vmatpush1.msra.mxu0 0.0
  %4948 = vmatprep.subr.mxu0 0.0
  %4949 = vmatpush1.msra.mxu0 0.0
  %4950 = vmatprep.subr.mxu0 0.0
  %4951 = vmatpush1.msra.mxu0 0.0
  %4952 = vmatprep.subr.mxu0 0.0
  %4953 = vmatpush1.msra.mxu0 0.0
  %4954 = vmatprep.subr.mxu0 0.0
  %4955 = vmatpush1.msra.mxu0 0.0
  %4956 = vmatprep.subr.mxu0 0.0
  %4957 = vmatpush1.msra.mxu0 0.0
  %4958 = vmatprep.subr.mxu0 0.0
  %4959 = vmatpush1.msra.mxu0 0.0
  %4960 = vmatprep.subr.mxu0 0.0
  %4961 = vmatpush1.msra.mxu0 0.0
  %4962 = vmatprep.subr.mxu0 0.0
  %4963 = vmatpush1.msra.mxu0 0.0
  %4964 = vmatprep.subr.mxu0 0.0
  %4965 = vmatpush1.msra.mxu0 0.0
  %4966 = vmatprep.subr.mxu0 0.0
  %4967 = vmatpush1.msra.mxu0 0.0
  %4968 = vmatprep.subr.mxu0 0.0
  %4969 = vmatpush1.msra.mxu0 0.0
  %4970 = vmatprep.subr.mxu0 0.0
  %4971 = vmatpush1.msra.mxu0 0.0
  %4972 = vmatprep.subr.mxu0 0.0
  %4973 = vmatpush1.msra.mxu0 0.0
  %4974 = vmatprep.subr.mxu0 0.0
  %4975 = vmatpush1.msra.mxu0 0.0
  %4976 = vmatprep.subr.mxu0 0.0
  %4977 = vmatpush1.msra.mxu0 0.0
  %4978 = vmatprep.subr.mxu0 0.0
  %4979 = vmatpush1.msra.mxu0 0.0
  %4980 = vmatprep.subr.mxu0 0.0
  %4981 = vmatpush1.msra.mxu0 0.0
  %4982 = vmatprep.subr.mxu0 0.0
  %4983 = vmatpush1.msra.mxu0 0.0
  %4984 = vmatprep.mubr.f32.mxu0 0.0
  %4985 = vmatmul.mubr.f32.gmra.mrb[0].mxu0 %v4873
  %v4986 = vpop.f32.mrb[0].mxu0
  %v4987 = vadd.f32 %v4871, %v4986
  %v4988 = vpop.f32.mrb[0].mxu0
  %4989 = vmatprep.mubr.f32.mxu0 0.0
  %4990 = vmatmul.mubr.f32.gmra.mrb[0].mxu0 %v4876
  %v4991 = vpop.f32.mrb[0].mxu0
  %v4992 = vadd.f32 %v4871, %v4991
  %v4993 = vpop.f32.mrb[0].mxu0
  %4994 = vmatprep.mubr.f32.mxu0 0.0
  %4995 = vmatmul.mubr.f32.gmra.mrb[0].mxu0 %v4879
  %v4996 = vpop.f32.mrb[0].mxu0
  %v4997 = vadd.f32 %v4871, %v4996
  %v4998 = vpop.f32.mrb[0].mxu0
  %4999 = vmatprep.mubr.f32.mxu0 0.0
  %5000 = vmatmul.mubr.f32.gmra.mrb[0].mxu0 %v4882
  %v5001 = vpop.f32.mrb[0].mxu0
  %v5002 = vadd.f32 %v4871, %v5001
  %v5003 = vpop.f32.mrb[0].mxu0
  %5004 = vmatprep.mubr.f32.mxu0 0.0
  %5005 = vmatmul.mubr.f32.gmra.mrb[0].mxu0 %v4885
  %v5006 = vpop.f32.mrb[0].mxu0
  %v5007 = vadd.f32 %v4871, %v5006
  %v5008 = vpop.f32.mrb[0].mxu0
  %5009 = vmatprep.mubr.f32.mxu0 0.0
  %5010 = vmatmul.mubr.f32.gmra.mrb[0].mxu0 %v4888
  %v5011 = vpop.f32.mrb[0].mxu0
  %v5012 = vadd.f32 %v4871, %v5011
  %v5013 = vpop.f32.mrb[0].mxu0
  %5014 = vmatprep.mubr.f32.mxu0 0.0
  %5015 = vmatmul.mubr.f32.gmra.mrb[0].mxu0 %v4891
  %v5016 = vpop.f32.mrb[0].mxu0
  %v5017 = vadd.f32 %v4871, %v5016
  %v5018 = vpop.f32.mrb[0].mxu0
  %5019 = vmatprep.mubr.f32.mxu0 0.0
  %5020 = vmatmul.mubr.f32.gmra.mrb[0].mxu0 %v4894
  %v5021 = vpop.f32.mrb[0].mxu0
  %v5022 = vadd.f32 %v4871, %v5021
  %v5023 = vpop.f32.mrb[0].mxu0
  %5024 = vmatprep.mubr.f32.mxu0 0.0
  %5025 = vmatmul.mubr.f32.gmra.mrb[0].mxu0 %v4897
  %v5026 = vpop.f32.mrb[0].mxu0
  %v5027 = vadd.f32 %v4871, %v5026
  %v5028 = vpop.f32.mrb[0].mxu0
  %5029 = vmatprep.mubr.f32.mxu0 0.0
  %5030 = vmatmul.mubr.f32.gmra.mrb[0].mxu0 %v4900
  %v5031 = vpop.f32.mrb[0].mxu0
  %v5032 = vadd.f32 %v4871, %v5031
  %v5033 = vpop.f32.mrb[0].mxu0
  %5034 = vmatprep.mubr.f32.mxu0 0.0
  %5035 = vmatmul.mubr.f32.gmra.mrb[0].mxu0 %v4903
  %v5036 = vpop.f32.mrb[0].mxu0
  %v5037 = vadd.f32 %v4871, %v5036
  %v5038 = vpop.f32.mrb[0].mxu0
  %5039 = vmatprep.mubr.f32.mxu0 0.0
  %5040 = vmatmul.mubr.f32.gmra.mrb[0].mxu0 %v4906
  %v5041 = vpop.f32.mrb[0].mxu0
  %v5042 = vadd.f32 %v4871, %v5041
  %v5043 = vpop.f32.mrb[0].mxu0
  %5044 = vmatprep.mubr.f32.mxu0 0.0
  %5045 = vmatmul.mubr.f32.gmra.mrb[0].mxu0 %v4909
  %v5046 = vpop.f32.mrb[0].mxu0
  %v5047 = vadd.f32 %v4871, %v5046
  %v5048 = vpop.f32.mrb[0].mxu0
  %5049 = vmatprep.mubr.f32.mxu0 0.0
  %5050 = vmatmul.mubr.f32.gmra.mrb[0].mxu0 %v4912
  %v5051 = vpop.f32.mrb[0].mxu0
  %v5052 = vadd.f32 %v4871, %v5051
  %v5053 = vpop.f32.mrb[0].mxu0
  %5054 = vmatprep.mubr.f32.mxu0 0.0
  %5055 = vmatmul.mubr.f32.gmra.mrb[0].mxu0 %v4915
  %v5056 = vpop.f32.mrb[0].mxu0
  %v5057 = vadd.f32 %v4871, %v5056
  %v5058 = vpop.f32.mrb[0].mxu0
  %5059 = vmatprep.mubr.f32.mxu0 0.0
  %5060 = vmatmul.mubr.f32.gmra.mrb[0].mxu0 %v4918
  %v5061 = vpop.f32.mrb[0].mxu0
  %v5062 = vadd.f32 %v4871, %v5061
  %v5063 = vpop.f32.mrb[0].mxu0
  %5064 = vdwg.mxu0
  %v5065 = vmax.f32 %v4987, 0.0
  %v5066 = vmax.f32 %v4992, 0.0
  %v5067 = vmax.f32 %v4997, 0.0
  %v5068 = vmax.f32 %v5002, 0.0
  %v5069 = vmax.f32 %v5007, 0.0
  %v5070 = vmax.f32 %v5012, 0.0
  %v5071 = vmax.f32 %v5017, 0.0
  %v5072 = vmax.f32 %v5022, 0.0
  %v5073 = vmax.f32 %v5027, 0.0
  %v5074 = vmax.f32 %v5032, 0.0
  %v5075 = vmax.f32 %v5037, 0.0
  %v5076 = vmax.f32 %v5042, 0.0
  %v5077 = vmax.f32 %v5047, 0.0
  %v5078 = vmax.f32 %v5052, 0.0
  %v5079 = vmax.f32 %v5057, 0.0
  %v5080 = vmax.f32 %v5062, 0.0
  %v5081 = vld [vmem:[%s5] sm:$0xff]
  %v5082 = vld [vmem:[%s5 + $0x8] sm:$0xff]
  %v5083 = vld [vmem:[%s5 + $0x10] sm:$0xff]
  %v5084 = vld [vmem:[%s5 + $0x18] sm:$0xff]
  %v5085 = vld [vmem:[%s5 + $0x20] sm:$0xff]
  %v5086 = vld [vmem:[%s5 + $0x28] sm:$0xff]
  %v5087 = vld [vmem:[%s5 + $0x30] sm:$0xff]
  %v5088 = vld [vmem:[%s5 + $0x38] sm:$0xff]
  %v5089 = vld [vmem:[%s6 + $0x5] sm:$0x1]
  %v5090 = vlaneseq
  %v5091 = vshrl.u32 %v5090, 7
  %v5092 = vsub.s32 0, %v5091
  %v5093 = vrot.slane %v5089, %v5092
  %v5095 = vsel %vm824, %v5065, 0
  %v5098 = vsel %vm824, %v5066, 0
  %v5101 = vsel %vm824, %v5067, 0
  %v5104 = vsel %vm824, %v5068, 0
  %v5107 = vsel %vm824, %v5069, 0
  %v5110 = vsel %vm824, %v5070, 0
  %v5113 = vsel %vm824, %v5071, 0
  %v5116 = vsel %vm824, %v5072, 0
  %v5119 = vsel %vm824, %v5073, 0
  %v5122 = vsel %vm824, %v5074, 0
  %v5125 = vsel %vm824, %v5075, 0
  %v5128 = vsel %vm824, %v5076, 0
  %v5131 = vsel %vm824, %v5077, 0
  %v5134 = vsel %vm824, %v5078, 0
  %v5137 = vsel %vm824, %v5079, 0
  %v5140 = vsel %vm824, %v5080, 0
  %5142 = vmatprep.subr.mxu0 0.0
  %5143 = vmatpush1.msra.mxu0 %v5081
  %5144 = vmatprep.subr.mxu0 0.0
  %5145 = vmatpush1.msra.mxu0 %v5082
  %5146 = vmatprep.subr.mxu0 0.0
  %5147 = vmatpush1.msra.mxu0 %v5083
  %5148 = vmatprep.subr.mxu0 0.0
  %5149 = vmatpush1.msra.mxu0 %v5084
  %5150 = vmatprep.subr.mxu0 0.0
  %5151 = vmatpush1.msra.mxu0 %v5085
  %5152 = vmatprep.subr.mxu0 0.0
  %5153 = vmatpush1.msra.mxu0 %v5086
  %5154 = vmatprep.subr.mxu0 0.0
  %5155 = vmatpush1.msra.mxu0 %v5087
  %5156 = vmatprep.subr.mxu0 0.0
  %5157 = vmatpush1.msra.mxu0 %v5088
  %5158 = vmatprep.subr.mxu0 0.0
  %5159 = vmatpush1.msra.mxu0 0.0
  %5160 = vmatprep.subr.mxu0 0.0
  %5161 = vmatpush1.msra.mxu0 0.0
  %5162 = vmatprep.subr.mxu0 0.0
  %5163 = vmatpush1.msra.mxu0 0.0
  %5164 = vmatprep.subr.mxu0 0.0
  %5165 = vmatpush1.msra.mxu0 0.0
  %5166 = vmatprep.subr.mxu0 0.0
  %5167 = vmatpush1.msra.mxu0 0.0
  %5168 = vmatprep.subr.mxu0 0.0
  %5169 = vmatpush1.msra.mxu0 0.0
  %5170 = vmatprep.subr.mxu0 0.0
  %5171 = vmatpush1.msra.mxu0 0.0
  %5172 = vmatprep.subr.mxu0 0.0
  %5173 = vmatpush1.msra.mxu0 0.0
  %5174 = vmatprep.subr.mxu0 0.0
  %5175 = vmatpush1.msra.mxu0 0.0
  %5176 = vmatprep.subr.mxu0 0.0
  %5177 = vmatpush1.msra.mxu0 0.0
  %5178 = vmatprep.subr.mxu0 0.0
  %5179 = vmatpush1.msra.mxu0 0.0
  %5180 = vmatprep.subr.mxu0 0.0
  %5181 = vmatpush1.msra.mxu0 0.0
  %5182 = vmatprep.subr.mxu0 0.0
  %5183 = vmatpush1.msra.mxu0 0.0
  %5184 = vmatprep.subr.mxu0 0.0
  %5185 = vmatpush1.msra.mxu0 0.0
  %5186 = vmatprep.subr.mxu0 0.0
  %5187 = vmatpush1.msra.mxu0 0.0
  %5188 = vmatprep.subr.mxu0 0.0
  %5189 = vmatpush1.msra.mxu0 0.0
  %5190 = vmatprep.subr.mxu0 0.0
  %5191 = vmatpush1.msra.mxu0 0.0
  %5192 = vmatprep.subr.mxu0 0.0
  %5193 = vmatpush1.msra.mxu0 0.0
  %5194 = vmatprep.subr.mxu0 0.0
  %5195 = vmatpush1.msra.mxu0 0.0
  %5196 = vmatprep.subr.mxu0 0.0
  %5197 = vmatpush1.msra.mxu0 0.0
  %5198 = vmatprep.subr.mxu0 0.0
  %5199 = vmatpush1.msra.mxu0 0.0
  %5200 = vmatprep.subr.mxu0 0.0
  %5201 = vmatpush1.msra.mxu0 0.0
  %5202 = vmatprep.subr.mxu0 0.0
  %5203 = vmatpush1.msra.mxu0 0.0
  %5204 = vmatprep.subr.mxu0 0.0
  %5205 = vmatpush1.msra.mxu0 0.0
  %5206 = vmatprep.mubr.f32.mxu0 0.0
  %5207 = vmatmul.mubr.f32.gmra.mrb[0].mxu0 %v5095
  %v5208 = vpop.f32.mrb[0].mxu0
  %v5209 = vadd.f32 %v5093, %v5208
  %v5210 = vpop.f32.mrb[0].mxu0
  %5211 = vmatprep.mubr.f32.mxu0 0.0
  %5212 = vmatmul.mubr.f32.gmra.mrb[0].mxu0 %v5098
  %v5213 = vpop.f32.mrb[0].mxu0
  %v5214 = vadd.f32 %v5093, %v5213
  %v5215 = vpop.f32.mrb[0].mxu0
  %5216 = vmatprep.mubr.f32.mxu0 0.0
  %5217 = vmatmul.mubr.f32.gmra.mrb[0].mxu0 %v5101
  %v5218 = vpop.f32.mrb[0].mxu0
  %v5219 = vadd.f32 %v5093, %v5218
  %v5220 = vpop.f32.mrb[0].mxu0
  %5221 = vmatprep.mubr.f32.mxu0 0.0
  %5222 = vmatmul.mubr.f32.gmra.mrb[0].mxu0 %v5104
  %v5223 = vpop.f32.mrb[0].mxu0
  %v5224 = vadd.f32 %v5093, %v5223
  %v5225 = vpop.f32.mrb[0].mxu0
  %5226 = vmatprep.mubr.f32.mxu0 0.0
  %5227 = vmatmul.mubr.f32.gmra.mrb[0].mxu0 %v5107
  %v5228 = vpop.f32.mrb[0].mxu0
  %v5229 = vadd.f32 %v5093, %v5228
  %v5230 = vpop.f32.mrb[0].mxu0
  %5231 = vmatprep.mubr.f32.mxu0 0.0
  %5232 = vmatmul.mubr.f32.gmra.mrb[0].mxu0 %v5110
  %v5233 = vpop.f32.mrb[0].mxu0
  %v5234 = vadd.f32 %v5093, %v5233
  %v5235 = vpop.f32.mrb[0].mxu0
  %5236 = vmatprep.mubr.f32.mxu0 0.0
  %5237 = vmatmul.mubr.f32.gmra.mrb[0].mxu0 %v5113
  %v5238 = vpop.f32.mrb[0].mxu0
  %v5239 = vadd.f32 %v5093, %v5238
  %v5240 = vpop.f32.mrb[0].mxu0
  %5241 = vmatprep.mubr.f32.mxu0 0.0
  %5242 = vmatmul.mubr.f32.gmra.mrb[0].mxu0 %v5116
  %v5243 = vpop.f32.mrb[0].mxu0
  %v5244 = vadd.f32 %v5093, %v5243
  %v5245 = vpop.f32.mrb[0].mxu0
  %5246 = vmatprep.mubr.f32.mxu0 0.0
  %5247 = vmatmul.mubr.f32.gmra.mrb[0].mxu0 %v5119
  %v5248 = vpop.f32.mrb[0].mxu0
  %v5249 = vadd.f32 %v5093, %v5248
  %v5250 = vpop.f32.mrb[0].mxu0
  %5251 = vmatprep.mubr.f32.mxu0 0.0
  %5252 = vmatmul.mubr.f32.gmra.mrb[0].mxu0 %v5122
  %v5253 = vpop.f32.mrb[0].mxu0
  %v5254 = vadd.f32 %v5093, %v5253
  %v5255 = vpop.f32.mrb[0].mxu0
  %5256 = vmatprep.mubr.f32.mxu0 0.0
  %5257 = vmatmul.mubr.f32.gmra.mrb[0].mxu0 %v5125
  %v5258 = vpop.f32.mrb[0].mxu0
  %v5259 = vadd.f32 %v5093, %v5258
  %v5260 = vpop.f32.mrb[0].mxu0
  %5261 = vmatprep.mubr.f32.mxu0 0.0
  %5262 = vmatmul.mubr.f32.gmra.mrb[0].mxu0 %v5128
  %v5263 = vpop.f32.mrb[0].mxu0
  %v5264 = vadd.f32 %v5093, %v5263
  %v5265 = vpop.f32.mrb[0].mxu0
  %5266 = vmatprep.mubr.f32.mxu0 0.0
  %5267 = vmatmul.mubr.f32.gmra.mrb[0].mxu0 %v5131
  %v5268 = vpop.f32.mrb[0].mxu0
  %v5269 = vadd.f32 %v5093, %v5268
  %v5270 = vpop.f32.mrb[0].mxu0
  %5271 = vmatprep.mubr.f32.mxu0 0.0
  %5272 = vmatmul.mubr.f32.gmra.mrb[0].mxu0 %v5134
  %v5273 = vpop.f32.mrb[0].mxu0
  %v5274 = vadd.f32 %v5093, %v5273
  %v5275 = vpop.f32.mrb[0].mxu0
  %5276 = vmatprep.mubr.f32.mxu0 0.0
  %5277 = vmatmul.mubr.f32.gmra.mrb[0].mxu0 %v5137
  %v5278 = vpop.f32.mrb[0].mxu0
  %v5279 = vadd.f32 %v5093, %v5278
  %v5280 = vpop.f32.mrb[0].mxu0
  %5281 = vmatprep.mubr.f32.mxu0 0.0
  %5282 = vmatmul.mubr.f32.gmra.mrb[0].mxu0 %v5140
  %v5283 = vpop.f32.mrb[0].mxu0
  %v5284 = vadd.f32 %v5093, %v5283
  %v5285 = vpop.f32.mrb[0].mxu0
  %5286 = vdwg.mxu0
  %v5287 = vadd.f32 %v4847, %v5209
  %v5288 = vadd.f32 %v4848, %v5214
  %v5289 = vadd.f32 %v4849, %v5219
  %v5290 = vadd.f32 %v4850, %v5224
  %v5291 = vadd.f32 %v4851, %v5229
  %v5292 = vadd.f32 %v4852, %v5234
  %v5293 = vadd.f32 %v4853, %v5239
  %v5294 = vadd.f32 %v4854, %v5244
  %v5295 = vadd.f32 %v4855, %v5249
  %v5296 = vadd.f32 %v4856, %v5254
  %v5297 = vadd.f32 %v4857, %v5259
  %v5298 = vadd.f32 %v4858, %v5264
  %v5299 = vadd.f32 %v4859, %v5269
  %v5300 = vadd.f32 %v4860, %v5274
  %v5301 = vadd.f32 %v4861, %v5279
  %v5302 = vadd.f32 %v4862, %v5284
  %v5303 = vld [vmem:[%s6 + $0x6] sm:$0x1]
  %v5304 = vld [vmem:[%s6 + $0x7] sm:$0x1]
  %v5305 = vsel %vm275, %v5287, 0.0
  %5306 = vadd.xlane.f32.xlu0 %v5305
  %v5307 = vpop.xlane.xlu0 %5306
  %v5308 = vsel %vm275, %v5288, 0.0
  %5309 = vadd.xlane.f32.xlu0 %v5308
  %v5310 = vpop.xlane.xlu0 %5309
  %v5311 = vsel %vm275, %v5289, 0.0
  %5312 = vadd.xlane.f32.xlu0 %v5311
  %v5313 = vpop.xlane.xlu0 %5312
  %v5314 = vsel %vm275, %v5290, 0.0
  %5315 = vadd.xlane.f32.xlu0 %v5314
  %v5316 = vpop.xlane.xlu0 %5315
  %v5317 = vsel %vm275, %v5291, 0.0
  %5318 = vadd.xlane.f32.xlu0 %v5317
  %v5319 = vpop.xlane.xlu0 %5318
  %v5320 = vsel %vm275, %v5292, 0.0
  %5321 = vadd.xlane.f32.xlu0 %v5320
  %v5322 = vpop.xlane.xlu0 %5321
  %v5323 = vsel %vm275, %v5293, 0.0
  %5324 = vadd.xlane.f32.xlu0 %v5323
  %v5325 = vpop.xlane.xlu0 %5324
  %v5326 = vsel %vm275, %v5294, 0.0
  %5327 = vadd.xlane.f32.xlu0 %v5326
  %v5328 = vpop.xlane.xlu0 %5327
  %v5329 = vsel %vm275, %v5295, 0.0
  %5330 = vadd.xlane.f32.xlu0 %v5329
  %v5331 = vpop.xlane.xlu0 %5330
  %v5332 = vsel %vm275, %v5296, 0.0
  %5333 = vadd.xlane.f32.xlu0 %v5332
  %v5334 = vpop.xlane.xlu0 %5333
  %v5335 = vsel %vm275, %v5297, 0.0
  %5336 = vadd.xlane.f32.xlu0 %v5335
  %v5337 = vpop.xlane.xlu0 %5336
  %v5338 = vsel %vm275, %v5298, 0.0
  %5339 = vadd.xlane.f32.xlu0 %v5338
  %v5340 = vpop.xlane.xlu0 %5339
  %v5341 = vsel %vm275, %v5299, 0.0
  %5342 = vadd.xlane.f32.xlu0 %v5341
  %v5343 = vpop.xlane.xlu0 %5342
  %v5344 = vsel %vm275, %v5300, 0.0
  %5345 = vadd.xlane.f32.xlu0 %v5344
  %v5346 = vpop.xlane.xlu0 %5345
  %v5347 = vsel %vm275, %v5301, 0.0
  %5348 = vadd.xlane.f32.xlu0 %v5347
  %v5349 = vpop.xlane.xlu0 %5348
  %v5350 = vsel %vm275, %v5302, 0.0
  %5351 = vadd.xlane.f32.xlu0 %v5350
  %v5352 = vpop.xlane.xlu0 %5351
  %v5353 = vmul.f32 %v5307, %v4662
  %v5354 = vmul.f32 %v5310, %v4662
  %v5355 = vmul.f32 %v5313, %v4662
  %v5356 = vmul.f32 %v5316, %v4662
  %v5357 = vmul.f32 %v5319, %v4662
  %v5358 = vmul.f32 %v5322, %v4662
  %v5359 = vmul.f32 %v5325, %v4662
  %v5360 = vmul.f32 %v5328, %v4662
  %v5361 = vmul.f32 %v5331, %v4662
  %v5362 = vmul.f32 %v5334, %v4662
  %v5363 = vmul.f32 %v5337, %v4662
  %v5364 = vmul.f32 %v5340, %v4662
  %v5365 = vmul.f32 %v5343, %v4662
  %v5366 = vmul.f32 %v5346, %v4662
  %v5367 = vmul.f32 %v5349, %v4662
  %v5368 = vmul.f32 %v5352, %v4662
  %v5369 = vsub.f32 %v5287, %v5353
  %v5370 = vsub.f32 %v5288, %v5354
  %v5371 = vsub.f32 %v5289, %v5355
  %v5372 = vsub.f32 %v5290, %v5356
  %v5373 = vsub.f32 %v5291, %v5357
  %v5374 = vsub.f32 %v5292, %v5358
  %v5375 = vsub.f32 %v5293, %v5359
  %v5376 = vsub.f32 %v5294, %v5360
  %v5377 = vsub.f32 %v5295, %v5361
  %v5378 = vsub.f32 %v5296, %v5362
  %v5379 = vsub.f32 %v5297, %v5363
  %v5380 = vsub.f32 %v5298, %v5364
  %v5381 = vsub.f32 %v5299, %v5365
  %v5382 = vsub.f32 %v5300, %v5366
  %v5383 = vsub.f32 %v5301, %v5367
  %v5384 = vsub.f32 %v5302, %v5368
  %v5385 = vmul.f32 %v5369, %v5369
  %v5386 = vmul.f32 %v5370, %v5370
  %v5387 = vmul.f32 %v5371, %v5371
  %v5388 = vmul.f32 %v5372, %v5372
  %v5389 = vmul.f32 %v5373, %v5373
  %v5390 = vmul.f32 %v5374, %v5374
  %v5391 = vmul.f32 %v5375, %v5375
  %v5392 = vmul.f32 %v5376, %v5376
  %v5393 = vmul.f32 %v5377, %v5377
  %v5394 = vmul.f32 %v5378, %v5378
  %v5395 = vmul.f32 %v5379, %v5379
  %v5396 = vmul.f32 %v5380, %v5380
  %v5397 = vmul.f32 %v5381, %v5381
  %v5398 = vmul.f32 %v5382, %v5382
  %v5399 = vmul.f32 %v5383, %v5383
  %v5400 = vmul.f32 %v5384, %v5384
  %v5401 = vsel %vm275, %v5385, 0.0
  %5402 = vadd.xlane.f32.xlu0 %v5401
  %v5403 = vpop.xlane.xlu0 %5402
  %v5404 = vsel %vm275, %v5386, 0.0
  %5405 = vadd.xlane.f32.xlu0 %v5404
  %v5406 = vpop.xlane.xlu0 %5405
  %v5407 = vsel %vm275, %v5387, 0.0
  %5408 = vadd.xlane.f32.xlu0 %v5407
  %v5409 = vpop.xlane.xlu0 %5408
  %v5410 = vsel %vm275, %v5388, 0.0
  %5411 = vadd.xlane.f32.xlu0 %v5410
  %v5412 = vpop.xlane.xlu0 %5411
  %v5413 = vsel %vm275, %v5389, 0.0
  %5414 = vadd.xlane.f32.xlu0 %v5413
  %v5415 = vpop.xlane.xlu0 %5414
  %v5416 = vsel %vm275, %v5390, 0.0
  %5417 = vadd.xlane.f32.xlu0 %v5416
  %v5418 = vpop.xlane.xlu0 %5417
  %v5419 = vsel %vm275, %v5391, 0.0
  %5420 = vadd.xlane.f32.xlu0 %v5419
  %v5421 = vpop.xlane.xlu0 %5420
  %v5422 = vsel %vm275, %v5392, 0.0
  %5423 = vadd.xlane.f32.xlu0 %v5422
  %v5424 = vpop.xlane.xlu0 %5423
  %v5425 = vsel %vm275, %v5393, 0.0
  %5426 = vadd.xlane.f32.xlu0 %v5425
  %v5427 = vpop.xlane.xlu0 %5426
  %v5428 = vsel %vm275, %v5394, 0.0
  %5429 = vadd.xlane.f32.xlu0 %v5428
  %v5430 = vpop.xlane.xlu0 %5429
  %v5431 = vsel %vm275, %v5395, 0.0
  %5432 = vadd.xlane.f32.xlu0 %v5431
  %v5433 = vpop.xlane.xlu0 %5432
  %v5434 = vsel %vm275, %v5396, 0.0
  %5435 = vadd.xlane.f32.xlu0 %v5434
  %v5436 = vpop.xlane.xlu0 %5435
  %v5437 = vsel %vm275, %v5397, 0.0
  %5438 = vadd.xlane.f32.xlu0 %v5437
  %v5439 = vpop.xlane.xlu0 %5438
  %v5440 = vsel %vm275, %v5398, 0.0
  %5441 = vadd.xlane.f32.xlu0 %v5440
  %v5442 = vpop.xlane.xlu0 %5441
  %v5443 = vsel %vm275, %v5399, 0.0
  %5444 = vadd.xlane.f32.xlu0 %v5443
  %v5445 = vpop.xlane.xlu0 %5444
  %v5446 = vsel %vm275, %v5400, 0.0
  %5447 = vadd.xlane.f32.xlu0 %v5446
  %v5448 = vpop.xlane.xlu0 %5447
  %v5449 = vmul.f32 %v5403, %v4662
  %v5450 = vmul.f32 %v5406, %v4662
  %v5451 = vmul.f32 %v5409, %v4662
  %v5452 = vmul.f32 %v5412, %v4662
  %v5453 = vmul.f32 %v5415, %v4662
  %v5454 = vmul.f32 %v5418, %v4662
  %v5455 = vmul.f32 %v5421, %v4662
  %v5456 = vmul.f32 %v5424, %v4662
  %v5457 = vmul.f32 %v5427, %v4662
  %v5458 = vmul.f32 %v5430, %v4662
  %v5459 = vmul.f32 %v5433, %v4662
  %v5460 = vmul.f32 %v5436, %v4662
  %v5461 = vmul.f32 %v5439, %v4662
  %v5462 = vmul.f32 %v5442, %v4662
  %v5463 = vmul.f32 %v5445, %v4662
  %v5464 = vmul.f32 %v5448, %v4662
  %v5465 = vadd.f32 %v5449, 1e-05
  %v5466 = vadd.f32 %v5450, 1e-05
  %v5467 = vadd.f32 %v5451, 1e-05
  %v5468 = vadd.f32 %v5452, 1e-05
  %v5469 = vadd.f32 %v5453, 1e-05
  %v5470 = vadd.f32 %v5454, 1e-05
  %v5471 = vadd.f32 %v5455, 1e-05
  %v5472 = vadd.f32 %v5456, 1e-05
  %v5473 = vadd.f32 %v5457, 1e-05
  %v5474 = vadd.f32 %v5458, 1e-05
  %v5475 = vadd.f32 %v5459, 1e-05
  %v5476 = vadd.f32 %v5460, 1e-05
  %v5477 = vadd.f32 %v5461, 1e-05
  %v5478 = vadd.f32 %v5462, 1e-05
  %v5479 = vadd.f32 %v5463, 1e-05
  %v5480 = vadd.f32 %v5464, 1e-05
  %v5481 = vrsqrt.pop %v5465
  %v5482 = vrsqrt.pop %v5466
  %v5483 = vrsqrt.pop %v5467
  %v5484 = vrsqrt.pop %v5468
  %v5485 = vrsqrt.pop %v5469
  %v5486 = vrsqrt.pop %v5470
  %v5487 = vrsqrt.pop %v5471
  %v5488 = vrsqrt.pop %v5472
  %v5489 = vrsqrt.pop %v5473
  %v5490 = vrsqrt.pop %v5474
  %v5491 = vrsqrt.pop %v5475
  %v5492 = vrsqrt.pop %v5476
  %v5493 = vrsqrt.pop %v5477
  %v5494 = vrsqrt.pop %v5478
  %v5495 = vrsqrt.pop %v5479
  %v5496 = vrsqrt.pop %v5480
  %v5497 = vmul.f32 %v5369, %v5481
  %v5498 = vmul.f32 %v5370, %v5482
  %v5499 = vmul.f32 %v5371, %v5483
  %v5500 = vmul.f32 %v5372, %v5484
  %v5501 = vmul.f32 %v5373, %v5485
  %v5502 = vmul.f32 %v5374, %v5486
  %v5503 = vmul.f32 %v5375, %v5487
  %v5504 = vmul.f32 %v5376, %v5488
  %v5505 = vmul.f32 %v5377, %v5489
  %v5506 = vmul.f32 %v5378, %v5490
  %v5507 = vmul.f32 %v5379, %v5491
  %v5508 = vmul.f32 %v5380, %v5492
  %v5509 = vmul.f32 %v5381, %v5493
  %v5510 = vmul.f32 %v5382, %v5494
  %v5511 = vmul.f32 %v5383, %v5495
  %v5512 = vmul.f32 %v5384, %v5496
  %v5513 = vlaneseq
  %v5514 = vshrl.u32 %v5513, 7
  %v5515 = vsub.s32 0, %v5514
  %v5516 = vrot.slane %v5303, %v5515
  %v5517 = vmul.f32 %v5497, %v5516
  %v5518 = vmul.f32 %v5498, %v5516
  %v5519 = vmul.f32 %v5499, %v5516
  %v5520 = vmul.f32 %v5500, %v5516
  %v5521 = vmul.f32 %v5501, %v5516
  %v5522 = vmul.f32 %v5502, %v5516
  %v5523 = vmul.f32 %v5503, %v5516
  %v5524 = vmul.f32 %v5504, %v5516
  %v5525 = vmul.f32 %v5505, %v5516
  %v5526 = vmul.f32 %v5506, %v5516
  %v5527 = vmul.f32 %v5507, %v5516
  %v5528 = vmul.f32 %v5508, %v5516
  %v5529 = vmul.f32 %v5509, %v5516
  %v5530 = vmul.f32 %v5510, %v5516
  %v5531 = vmul.f32 %v5511, %v5516
  %v5532 = vmul.f32 %v5512, %v5516
  %v5533 = vlaneseq
  %v5534 = vshrl.u32 %v5533, 7
  %v5535 = vsub.s32 0, %v5534
  %v5536 = vrot.slane %v5304, %v5535
  %v5537 = vadd.f32 %v5517, %v5536
  %v5538 = vadd.f32 %v5518, %v5536
  %v5539 = vadd.f32 %v5519, %v5536
  %v5540 = vadd.f32 %v5520, %v5536
  %v5541 = vadd.f32 %v5521, %v5536
  %v5542 = vadd.f32 %v5522, %v5536
  %v5543 = vadd.f32 %v5523, %v5536
  %v5544 = vadd.f32 %v5524, %v5536
  %v5545 = vadd.f32 %v5525, %v5536
  %v5546 = vadd.f32 %v5526, %v5536
  %v5547 = vadd.f32 %v5527, %v5536
  %v5548 = vadd.f32 %v5528, %v5536
  %v5549 = vadd.f32 %v5529, %v5536
  %v5550 = vadd.f32 %v5530, %v5536
  %v5551 = vadd.f32 %v5531, %v5536
  %v5552 = vadd.f32 %v5532, %v5536
  %5553 = vst.msk [vmem:[%s7] sm:$0xff] %vm275, %v5537
  %5554 = vst.msk [vmem:[%s7 + $0x8] sm:$0xff] %vm275, %v5538
  %5555 = vst.msk [vmem:[%s7 + $0x10] sm:$0xff] %vm275, %v5539
  %5556 = vst.msk [vmem:[%s7 + $0x18] sm:$0xff] %vm275, %v5540
  %5557 = vst.msk [vmem:[%s7 + $0x20] sm:$0xff] %vm275, %v5541
  %5558 = vst.msk [vmem:[%s7 + $0x28] sm:$0xff] %vm275, %v5542
  %5559 = vst.msk [vmem:[%s7 + $0x30] sm:$0xff] %vm275, %v5543
  %5560 = vst.msk [vmem:[%s7 + $0x38] sm:$0xff] %vm275, %v5544
  %5561 = vst.msk [vmem:[%s7 + $0x40] sm:$0xff] %vm275, %v5545
  %5562 = vst.msk [vmem:[%s7 + $0x48] sm:$0xff] %vm275, %v5546
  %5563 = vst.msk [vmem:[%s7 + $0x50] sm:$0xff] %vm275, %v5547
  %5564 = vst.msk [vmem:[%s7 + $0x58] sm:$0xff] %vm275, %v5548
  %5565 = vst.msk [vmem:[%s7 + $0x60] sm:$0xff] %vm275, %v5549
  %5566 = vst.msk [vmem:[%s7 + $0x68] sm:$0xff] %vm275, %v5550
  %5567 = vst.msk [vmem:[%s7 + $0x70] sm:$0xff] %vm275, %v5551
  %5568 = vst.msk [vmem:[%s7 + $0x78] sm:$0xff] %vm275, %v5552
  // Predicated region
  $region30: #{backbone_encoder_only.1} parent=0 // pred_check
    _
  $region31: #{backbone_encoder_only.1} parent=0 // pred_check_branch
    %5570 = sbr.rel (0) target = $region33
  $region32: #{backbone_encoder_only.1} parent=0 // pred_region
    _
  $region33: #{backbone_encoder_only.1} parent=0 // pred_fallthru
    _
  // Predicated region
  $region34: #{backbone_encoder_only.1} parent=0 // pred_check
    _
  $region35: #{backbone_encoder_only.1} parent=0 // pred_check_branch
    %5572 = sbr.rel (0) target = $region37
  $region36: #{backbone_encoder_only.1} parent=0 // pred_region
    _
  $region37: #{backbone_encoder_only.1} parent=0 // pred_fallthru
    _

</llo_original>
